<compile_context>
chip_gen: v6e
topology: v6e:2x2x1
jax: 0.10.0
libtpu: 0.0.40
codegen_flags: <defaults>
</compile_context>

<pallas_src>
import functools
import math

import numpy as np

import jax
import jax.numpy as jnp
from jax import lax
from jax.experimental import pallas as pl
from jax.experimental.pallas import tpu as pltpu


# --------------------------------- config ------------------------------------ #

class Configs:
    input_channels = 4
    mid_channels = 32
    final_out_channels = 32
    kernel_size = 5
    stride = 1
    dropout = 0.5          # Dropout is identity in eval mode
    features_len = 2


FC_W_COL = 8               # column offset of the fc0 weight inside the small-param slab
_BN_EPS = 1e-5


def conv_defs(cfg):
    """(name, K, Cin, Cout, pad) for the six Conv1d layers, in execution order."""
    m, f = cfg.mid_channels, cfg.final_out_channels
    return (
        ("c11", cfg.kernel_size, m, m, cfg.kernel_size // 2),
        ("c12", 3, m, m, 1),
        ("c21", 8, m, m, 4),
        ("c22", 5, m, m, 2),
        ("c31", 8, m, f, 4),
        ("c32", 5, f, f, 2),
    )


# -------------------------- in-kernel building blocks ------------------------- #

def _conv_bn_relu(h, w_ref, sp_ref, spec):
    """Conv1d(bias=False) + folded inference-BN + ReLU, channels-first.  h: (Cin, L)."""
    off, K, cin, cout, pad, bias_col = spec
    L = h.shape[1]
    L_out = L + 2 * pad - K + 1
    # TODO(synk): stride != 1 is never exercised (configs.stride == 1); not implemented.
    if pad > 0:
        z = jnp.zeros((cin, pad), jnp.float32)
        hp = jnp.concatenate([z, h, z], axis=1)              # (Cin, L + 2*pad)
    else:
        hp = h
    acc = None
    for k in range(K):                                       # static unroll, K <= 8
        # point-of-use weight load (BN scale already folded in)
        w_k = w_ref[off + k * cout: off + (k + 1) * cout, 0:cin]     # (Cout, Cin)
        y = jnp.dot(w_k, hp[:, k:k + L_out], preferred_element_type=jnp.float32)
        acc = y if acc is None else acc + y
    bias = sp_ref[0:cout, bias_col:bias_col + 1]             # (Cout, 1) folded BN bias
    return jnp.maximum(acc + bias, 0.0)                      # ReLU


def _maxpool_k2s2p1(h):
    """PyTorch MaxPool1d(kernel=2, stride=2, padding=1) on (C, L); h >= 0 (post-ReLU)."""
    C, L = h.shape
    L_out = L // 2 + 1
    m = jnp.maximum(h[:, :L - 1], h[:, 1:])                  # m[:, i] = max(h[i], h[i+1])
    parts = [h[:, 0:1], m]                                   # window [-inf, x0] -> x0
    if L % 2 == 0:
        parts.append(h[:, L - 1:L])                          # window [x_{L-1}, -inf] -> x_{L-1}
    hm = jnp.concatenate(parts, axis=1)                      # (C, Lhm); out[:, j] == hm[:, 2j]
    Lhm = hm.shape[1]
    r = lax.broadcasted_iota(jnp.int32, (Lhm, L_out), 0)
    c = lax.broadcasted_iota(jnp.int32, (Lhm, L_out), 1)
    sel = (r == 2 * c).astype(jnp.float32)                   # 0/1 even-column selector
    return jnp.dot(hm, sel, preferred_element_type=jnp.float32)   # (C, L_out), on the idle MXU


def _adaptive_avg_pool(h, out_len):
    """PyTorch AdaptiveAvgPool1d window semantics on (C, L)."""
    _, L = h.shape
    cols = []
    for i in range(out_len):
        s = (i * L) // out_len
        e = -((-(i + 1) * L) // out_len)
        cols.append(jnp.mean(h[:, s:e], axis=1, keepdims=True))
    return jnp.concatenate(cols, axis=1)                     # (C, out_len)


# ------------------------------- fused kernel --------------------------------- #

def _cnn_kernel(x_ref, w_ref, sp_ref, o_ref, *, conv_specs, input_channels,
                fc_w_col, features_len):
    # One batch element per program: x_ref block is (1, Cin, L), channels-first (NCL).
    x = x_ref[0]                                             # (Cin, L)
    mid = conv_specs[0][2]                                   # Cin of conv11 == mid_channels

    # fc0: Linear(Cin -> mid) + ReLU (+ Dropout == identity in eval mode).
    # Cin is tiny (4), so use per-input-channel broadcast MACs (pure VPU) which also
    # avoids any transpose of the channels-first input.
    h = None
    for c in range(input_channels):                          # static unroll, Cin == 4
        w_c = sp_ref[0:mid, fc_w_col + c:fc_w_col + c + 1]   # (mid, 1), point of use
        t = w_c * x[c:c + 1, :]                              # (mid, L)
        h = t if h is None else h + t
    h = jnp.maximum(h + sp_ref[0:mid, 0:1], 0.0)             # + fc0 bias, ReLU

    # Three conv blocks: (Conv+BN+ReLU) x2 -> MaxPool1d(2,2,1)   (Dropout == identity)
    for blk in range(3):
        h = _conv_bn_relu(h, w_ref, sp_ref, conv_specs[2 * blk])
        h = _conv_bn_relu(h, w_ref, sp_ref, conv_specs[2 * blk + 1])
        h = _maxpool_k2s2p1(h)

    # AdaptiveAvgPool1d(features_len); output stays channels-first (Cf, features_len).
    o_ref[0] = _adaptive_avg_pool(h, features_len).astype(o_ref.dtype)


# ------------------------------ model wrapper ---------------------------------- #

def cnn_forward(packed, x_ncl, cfg, conv_specs):
    """x_ncl: (B, input_channels, L) PyTorch NCL.  Returns ((B, Cf, features_len), None)."""
    assert cfg.stride == 1  # TODO(synk): strided first conv not implemented (stride == 1 in configs)
    B, cin, L = x_ncl.shape
    cf, fl = cfg.final_out_channels, cfg.features_len
    w_packed, sp = packed["w"], packed["sp"]

    # Advisory cost estimate (flops dominated by the six convs).
    flops = 2 * cin * cfg.mid_channels * L
    l = L
    for i, (_, K, ci, co, pad, _) in enumerate(conv_specs):
        l_out = l + 2 * pad - K + 1
        flops += 2 * K * ci * co * l_out
        l = l_out
        if i % 2 == 1:                                       # maxpool after each block
            l = l // 2 + 1
    flops *= B
    bytes_accessed = 4 * (x_ncl.size + w_packed.size + sp.size + B * cf * fl)

    kern = functools.partial(
        _cnn_kernel, conv_specs=conv_specs, input_channels=cin,
        fc_w_col=FC_W_COL, features_len=fl)

    out = pl.pallas_call(
        kern,
        grid=(B,),
        in_specs=[
            pl.BlockSpec((1, cin, L), lambda b: (b, 0, 0)),          # one batch element
            pl.BlockSpec(w_packed.shape, lambda b: (0, 0)),          # packed conv weights
            pl.BlockSpec(sp.shape, lambda b: (0, 0)),                # fc0 + biases slab
        ],
        out_specs=pl.BlockSpec((1, cf, fl), lambda b: (b, 0, 0)),
        out_shape=jax.ShapeDtypeStruct((B, cf, fl), jnp.float32),
        compiler_params=pltpu.CompilerParams(dimension_semantics=("parallel",)),
        cost_estimate=pl.CostEstimate(flops=int(flops), transcendentals=0,
                                      bytes_accessed=int(bytes_accessed)),
    )(x_ncl, w_packed, sp)
    return out, None


# --------------------------- parameter construction ---------------------------- #

def init_raw_params(key, cfg):
    """Deterministic random params in PyTorch layouts (conv weight (Cout,Cin,K), BN stats)."""
    defs = conv_defs(cfg)
    keys = jax.random.split(key, 2 + 5 * len(defs))
    raw = {
        "fc0_w": jax.random.normal(keys[0], (cfg.mid_channels, cfg.input_channels),
                                   jnp.float32) / math.sqrt(cfg.input_channels),
        "fc0_b": 0.1 * jax.random.normal(keys[1], (cfg.mid_channels,), jnp.float32),
    }
    i = 2
    for name, K, ci, co, _pad in defs:
        raw[name + "_w"] = (jax.random.normal(keys[i], (co, ci, K), jnp.float32)
                            / math.sqrt(ci * K))
        raw[name + "_gamma"] = 1.0 + 0.1 * jax.random.normal(keys[i + 1], (co,), jnp.float32)
        raw[name + "_beta"] = 0.1 * jax.random.normal(keys[i + 2], (co,), jnp.float32)
        raw[name + "_mean"] = 0.1 * jax.random.normal(keys[i + 3], (co,), jnp.float32)
        raw[name + "_var"] = 1.0 + 0.1 * jax.random.uniform(keys[i + 4], (co,), jnp.float32)
        i += 5
    return raw


def pack_params(raw, cfg):
    """Fold inference-BN into conv weights and pack everything into two dense operands.

      packed["w"]  : (sum_j K_j*Cout_j, max Cin) - per-tap (Cout, Cin) conv weights,
                     BN scale folded, stacked along rows (tap offsets are static).
      packed["sp"] : (max_channels, >=16) - col 0 = fc0 bias, cols 1..6 = folded BN
                     biases, cols FC_W_COL.. = fc0 weight (mid, input_channels).
      conv_specs   : static per-conv (row_off, K, Cin, Cout, pad, bias_col) tuples.
    """
    defs = conv_defs(cfg)
    lane_w = max(ci for _, _, ci, _, _ in defs)
    max_c = max(max(co for _, _, _, co, _ in defs), cfg.mid_channels)
    n_cols = max(16, FC_W_COL + cfg.input_channels)

    sp = np.zeros((max_c, n_cols), np.float32)
    sp[:cfg.mid_channels, 0] = np.asarray(raw["fc0_b"])
    sp[:cfg.mid_channels, FC_W_COL:FC_W_COL + cfg.input_channels] = np.asarray(raw["fc0_w"])

    rows, specs, off = [], [], 0
    for idx, (name, K, ci, co, pad) in enumerate(defs):
        scale = np.asarray(raw[name + "_gamma"]) / np.sqrt(np.asarray(raw[name + "_var"]) + _BN_EPS)
        bias = np.asarray(raw[name + "_beta"]) - np.asarray(raw[name + "_mean"]) * scale
        w = np.asarray(raw[name + "_w"]) * scale[:, None, None]        # (Cout, Cin, K)
        for k in range(K):
            wk = np.zeros((co, lane_w), np.float32)
            wk[:, :ci] = w[:, :, k]
            rows.append(wk)
        sp[:co, 1 + idx] = bias
        specs.append((off, K, ci, co, pad, 1 + idx))
        off += K * co

    packed = {"w": jnp.asarray(np.concatenate(rows, axis=0)), "sp": jnp.asarray(sp)}
    return packed, tuple(specs)


# ---------------------------- pure-JAX reference ------------------------------- #

def _ref_forward(raw, cfg, x_ncl):
    hi = lax.Precision.HIGHEST
    defs = conv_defs(cfg)
    xt = jnp.transpose(x_ncl, (0, 2, 1)).astype(jnp.float32)            # (B, L, Cin)
    h = jnp.einsum("blc,mc->blm", xt, raw["fc0_w"], precision=hi) + raw["fc0_b"]
    h = jnp.maximum(h, 0.0)
    h = jnp.transpose(h, (0, 2, 1))                                     # (B, mid, L)
    for idx, (name, K, ci, co, pad) in enumerate(defs):
        y = lax.conv_general_dilated(h, raw[name + "_w"], window_strides=(1,),
                                     padding=[(pad, pad)],
                                     dimension_numbers=("NCH", "OIH", "NCH"),
                                     precision=hi)
        scale = raw[name + "_gamma"] / jnp.sqrt(raw[name + "_var"] + _BN_EPS)
        y = (y - raw[name + "_mean"][None, :, None]) * scale[None, :, None] \
            + raw[name + "_beta"][None, :, None]
        h = jnp.maximum(y, 0.0)
        if idx % 2 == 1:                                                # end of conv block
            B, C, L = h.shape
            L_out = L // 2 + 1
            pad_cols = 2 * L_out - L - 1
            neg = jnp.full((B, C, 1), -jnp.inf, h.dtype)
            hp = jnp.concatenate([neg, h] + [neg] * pad_cols, axis=-1)
            h = jnp.max(hp.reshape(B, C, L_out, 2), axis=-1)
    B, C, L = h.shape
    fl = cfg.features_len
    cols = []
    for i in range(fl):
        s = (i * L) // fl
        e = -((-(i + 1) * L) // fl)
        cols.append(jnp.mean(h[:, :, s:e], axis=-1))
    return jnp.stack(cols, axis=-1)                                     # (B, C, features_len)


# ------------------------------------ main -------------------------------------- #

if __name__ == "__main__":
    cfg = Configs()
    key = jax.random.PRNGKey(0)
    pkey, xkey = jax.random.split(key)

    raw = init_raw_params(pkey, cfg)
    packed, conv_specs = pack_params(raw, cfg)

    B, L = 2, 16
    x = jax.random.normal(xkey, (B, cfg.input_channels, L), jnp.float32)

    fwd = jax.jit(lambda p, xx: cnn_forward(p, xx, cfg, conv_specs))
    out, aux = fwd(packed, x)
    out = jax.block_until_ready(out)

    assert out.shape == (B, cfg.final_out_channels, cfg.features_len), out.shape
    assert aux is None
    assert bool(jnp.all(jnp.isfinite(out)))

    ref = _ref_forward(raw, cfg, x)
    max_err = float(jnp.max(jnp.abs(out - ref)))
    assert jnp.allclose(out, ref, rtol=1e-2, atol=1e-2), max_err

    print("KERNEL_OK")
</pallas_src>

<mosaic_0001>
module attributes {stable_mosaic.version = 11 : i64} {
  func.func @_cnn_kernel(%arg0: i32, %arg1: memref<1x4x16xf32, #tpu.memory_space<vmem>>, %arg2: memref<1088x32xf32, #tpu.memory_space<vmem>>, %arg3: memref<32x16xf32, #tpu.memory_space<vmem>>, %arg4: memref<1x32x2xf32, #tpu.memory_space<vmem>>) attributes {dimension_semantics = [#tpu.dimension_semantics<parallel>], iteration_bounds = array<i64: 2>, scalar_prefetch = 0 : i64, scratch_operands = 0 : i64, tpu.core_type = #tpu.core_type<tc>, window_params = [{transform_indices = @transform_0, window_bounds = array<i64: 1, 4, 16>}, {pipeline_mode = #tpu.pipeline_mode<synchronous>, transform_indices = @transform_1, window_bounds = array<i64: 1088, 32>}, {pipeline_mode = #tpu.pipeline_mode<synchronous>, transform_indices = @transform_2, window_bounds = array<i64: 32, 16>}, {transform_indices = @transform_3, window_bounds = array<i64: 1, 32, 2>}]} {
    %c0 = arith.constant 0 : index
    %c0_0 = arith.constant 0 : index
    %c0_1 = arith.constant 0 : index
    %0 = vector.load %arg1[%c0, %c0_0, %c0_1] : memref<1x4x16xf32, #tpu.memory_space<vmem>>, vector<1x4x16xf32>
    %1 = vector.shape_cast %0 : vector<1x4x16xf32> to vector<4x16xf32>
    %c0_2 = arith.constant 0 : index
    %c8 = arith.constant 8 : index
    %2 = vector.load %arg3[%c0_2, %c8] : memref<32x16xf32, #tpu.memory_space<vmem>>, vector<32x1xf32>
    %3 = vector.extract_strided_slice %1 {offsets = [0, 0], sizes = [1, 16], strides = [1, 1]} : vector<4x16xf32> to vector<1x16xf32>
    %4 = vector.broadcast %2 : vector<32x1xf32> to vector<32x16xf32>
    %5 = vector.broadcast %3 : vector<1x16xf32> to vector<32x16xf32>
    %6 = arith.mulf %4, %5 : vector<32x16xf32>
    %c0_3 = arith.constant 0 : index
    %c9 = arith.constant 9 : index
    %7 = vector.load %arg3[%c0_3, %c9] : memref<32x16xf32, #tpu.memory_space<vmem>>, vector<32x1xf32>
    %8 = vector.extract_strided_slice %1 {offsets = [1, 0], sizes = [1, 16], strides = [1, 1]} : vector<4x16xf32> to vector<1x16xf32>
    %9 = vector.broadcast %7 : vector<32x1xf32> to vector<32x16xf32>
    %10 = vector.broadcast %8 : vector<1x16xf32> to vector<32x16xf32>
    %11 = arith.mulf %9, %10 : vector<32x16xf32>
    %12 = arith.addf %6, %11 : vector<32x16xf32>
    %c0_4 = arith.constant 0 : index
    %c10 = arith.constant 10 : index
    %13 = vector.load %arg3[%c0_4, %c10] : memref<32x16xf32, #tpu.memory_space<vmem>>, vector<32x1xf32>
    %14 = vector.extract_strided_slice %1 {offsets = [2, 0], sizes = [1, 16], strides = [1, 1]} : vector<4x16xf32> to vector<1x16xf32>
    %15 = vector.broadcast %13 : vector<32x1xf32> to vector<32x16xf32>
    %16 = vector.broadcast %14 : vector<1x16xf32> to vector<32x16xf32>
    %17 = arith.mulf %15, %16 : vector<32x16xf32>
    %18 = arith.addf %12, %17 : vector<32x16xf32>
    %c0_5 = arith.constant 0 : index
    %c11 = arith.constant 11 : index
    %19 = vector.load %arg3[%c0_5, %c11] : memref<32x16xf32, #tpu.memory_space<vmem>>, vector<32x1xf32>
    %20 = vector.extract_strided_slice %1 {offsets = [3, 0], sizes = [1, 16], strides = [1, 1]} : vector<4x16xf32> to vector<1x16xf32>
    %21 = vector.broadcast %19 : vector<32x1xf32> to vector<32x16xf32>
    %22 = vector.broadcast %20 : vector<1x16xf32> to vector<32x16xf32>
    %23 = arith.mulf %21, %22 : vector<32x16xf32>
    %24 = arith.addf %18, %23 : vector<32x16xf32>
    %c0_6 = arith.constant 0 : index
    %c0_7 = arith.constant 0 : index
    %25 = vector.load %arg3[%c0_6, %c0_7] : memref<32x16xf32, #tpu.memory_space<vmem>>, vector<32x1xf32>
    %26 = vector.broadcast %25 : vector<32x1xf32> to vector<32x16xf32>
    %27 = arith.addf %24, %26 : vector<32x16xf32>
    %cst = arith.constant 0.000000e+00 : f32
    %28 = vector.broadcast %cst : f32 to vector<32x16xf32>
    %29 = arith.maximumf %27, %28 : vector<32x16xf32>
    %cst_8 = arith.constant 0.000000e+00 : f32
    %30 = vector.broadcast %cst_8 : f32 to vector<32x2xf32>
    %31 = tpu.concatenate %30, %29, %30 in 1 : vector<32x2xf32>, vector<32x16xf32>, vector<32x2xf32> -> vector<32x20xf32>
    %c0_9 = arith.constant 0 : index
    %c0_10 = arith.constant 0 : index
    %32 = vector.load %arg2[%c0_9, %c0_10] : memref<1088x32xf32, #tpu.memory_space<vmem>>, vector<32x32xf32>
    %33 = vector.extract_strided_slice %31 {offsets = [0, 0], sizes = [32, 16], strides = [1, 1]} : vector<32x20xf32> to vector<32x16xf32>
    %cst_11 = arith.constant dense<0.000000e+00> : vector<32x16xf32>
    %34 = tpu.matmul %32, %33, %cst_11 {dimension_numbers = #tpu.dot_dimension_numbers<[1], [0], [0], [1], [0, 0, 1, 1], [], []>} : vector<32x32xf32>, vector<32x16xf32>, vector<32x16xf32> -> vector<32x16xf32>
    %c32 = arith.constant 32 : index
    %c0_12 = arith.constant 0 : index
    %35 = vector.load %arg2[%c32, %c0_12] : memref<1088x32xf32, #tpu.memory_space<vmem>>, vector<32x32xf32>
    %36 = vector.extract_strided_slice %31 {offsets = [0, 1], sizes = [32, 16], strides = [1, 1]} : vector<32x20xf32> to vector<32x16xf32>
    %cst_13 = arith.constant dense<0.000000e+00> : vector<32x16xf32>
    %37 = tpu.matmul %35, %36, %cst_13 {dimension_numbers = #tpu.dot_dimension_numbers<[1], [0], [0], [1], [0, 0, 1, 1], [], []>} : vector<32x32xf32>, vector<32x16xf32>, vector<32x16xf32> -> vector<32x16xf32>
    %38 = arith.addf %34, %37 : vector<32x16xf32>
    %c64 = arith.constant 64 : index
    %c0_14 = arith.constant 0 : index
    %39 = vector.load %arg2[%c64, %c0_14] : memref<1088x32xf32, #tpu.memory_space<vmem>>, vector<32x32xf32>
    %40 = vector.extract_strided_slice %31 {offsets = [0, 2], sizes = [32, 16], strides = [1, 1]} : vector<32x20xf32> to vector<32x16xf32>
    %cst_15 = arith.constant dense<0.000000e+00> : vector<32x16xf32>
    %41 = tpu.matmul %39, %40, %cst_15 {dimension_numbers = #tpu.dot_dimension_numbers<[1], [0], [0], [1], [0, 0, 1, 1], [], []>} : vector<32x32xf32>, vector<32x16xf32>, vector<32x16xf32> -> vector<32x16xf32>
    %42 = arith.addf %38, %41 : vector<32x16xf32>
    %c96 = arith.constant 96 : index
    %c0_16 = arith.constant 0 : index
    %43 = vector.load %arg2[%c96, %c0_16] : memref<1088x32xf32, #tpu.memory_space<vmem>>, vector<32x32xf32>
    %44 = vector.extract_strided_slice %31 {offsets = [0, 3], sizes = [32, 16], strides = [1, 1]} : vector<32x20xf32> to vector<32x16xf32>
    %cst_17 = arith.constant dense<0.000000e+00> : vector<32x16xf32>
    %45 = tpu.matmul %43, %44, %cst_17 {dimension_numbers = #tpu.dot_dimension_numbers<[1], [0], [0], [1], [0, 0, 1, 1], [], []>} : vector<32x32xf32>, vector<32x16xf32>, vector<32x16xf32> -> vector<32x16xf32>
    %46 = arith.addf %42, %45 : vector<32x16xf32>
    %c128 = arith.constant 128 : index
    %c0_18 = arith.constant 0 : index
    %47 = vector.load %arg2[%c128, %c0_18] : memref<1088x32xf32, #tpu.memory_space<vmem>>, vector<32x32xf32>
    %48 = vector.extract_strided_slice %31 {offsets = [0, 4], sizes = [32, 16], strides = [1, 1]} : vector<32x20xf32> to vector<32x16xf32>
    %cst_19 = arith.constant dense<0.000000e+00> : vector<32x16xf32>
    %49 = tpu.matmul %47, %48, %cst_19 {dimension_numbers = #tpu.dot_dimension_numbers<[1], [0], [0], [1], [0, 0, 1, 1], [], []>} : vector<32x32xf32>, vector<32x16xf32>, vector<32x16xf32> -> vector<32x16xf32>
    %50 = arith.addf %46, %49 : vector<32x16xf32>
    %c0_20 = arith.constant 0 : index
    %c1 = arith.constant 1 : index
    %51 = vector.load %arg3[%c0_20, %c1] : memref<32x16xf32, #tpu.memory_space<vmem>>, vector<32x1xf32>
    %52 = vector.broadcast %51 : vector<32x1xf32> to vector<32x16xf32>
    %53 = arith.addf %50, %52 : vector<32x16xf32>
    %cst_21 = arith.constant 0.000000e+00 : f32
    %54 = vector.broadcast %cst_21 : f32 to vector<32x16xf32>
    %55 = arith.maximumf %53, %54 : vector<32x16xf32>
    %cst_22 = arith.constant 0.000000e+00 : f32
    %56 = vector.broadcast %cst_22 : f32 to vector<32x1xf32>
    %57 = tpu.concatenate %56, %55, %56 in 1 : vector<32x1xf32>, vector<32x16xf32>, vector<32x1xf32> -> vector<32x18xf32>
    %c160 = arith.constant 160 : index
    %c0_23 = arith.constant 0 : index
    %58 = vector.load %arg2[%c160, %c0_23] : memref<1088x32xf32, #tpu.memory_space<vmem>>, vector<32x32xf32>
    %59 = vector.extract_strided_slice %57 {offsets = [0, 0], sizes = [32, 16], strides = [1, 1]} : vector<32x18xf32> to vector<32x16xf32>
    %cst_24 = arith.constant dense<0.000000e+00> : vector<32x16xf32>
    %60 = tpu.matmul %58, %59, %cst_24 {dimension_numbers = #tpu.dot_dimension_numbers<[1], [0], [0], [1], [0, 0, 1, 1], [], []>} : vector<32x32xf32>, vector<32x16xf32>, vector<32x16xf32> -> vector<32x16xf32>
    %c192 = arith.constant 192 : index
    %c0_25 = arith.constant 0 : index
    %61 = vector.load %arg2[%c192, %c0_25] : memref<1088x32xf32, #tpu.memory_space<vmem>>, vector<32x32xf32>
    %62 = vector.extract_strided_slice %57 {offsets = [0, 1], sizes = [32, 16], strides = [1, 1]} : vector<32x18xf32> to vector<32x16xf32>
    %cst_26 = arith.constant dense<0.000000e+00> : vector<32x16xf32>
    %63 = tpu.matmul %61, %62, %cst_26 {dimension_numbers = #tpu.dot_dimension_numbers<[1], [0], [0], [1], [0, 0, 1, 1], [], []>} : vector<32x32xf32>, vector<32x16xf32>, vector<32x16xf32> -> vector<32x16xf32>
    %64 = arith.addf %60, %63 : vector<32x16xf32>
    %c224 = arith.constant 224 : index
    %c0_27 = arith.constant 0 : index
    %65 = vector.load %arg2[%c224, %c0_27] : memref<1088x32xf32, #tpu.memory_space<vmem>>, vector<32x32xf32>
    %66 = vector.extract_strided_slice %57 {offsets = [0, 2], sizes = [32, 16], strides = [1, 1]} : vector<32x18xf32> to vector<32x16xf32>
    %cst_28 = arith.constant dense<0.000000e+00> : vector<32x16xf32>
    %67 = tpu.matmul %65, %66, %cst_28 {dimension_numbers = #tpu.dot_dimension_numbers<[1], [0], [0], [1], [0, 0, 1, 1], [], []>} : vector<32x32xf32>, vector<32x16xf32>, vector<32x16xf32> -> vector<32x16xf32>
    %68 = arith.addf %64, %67 : vector<32x16xf32>
    %c0_29 = arith.constant 0 : index
    %c2 = arith.constant 2 : index
    %69 = vector.load %arg3[%c0_29, %c2] : memref<32x16xf32, #tpu.memory_space<vmem>>, vector<32x1xf32>
    %70 = vector.broadcast %69 : vector<32x1xf32> to vector<32x16xf32>
    %71 = arith.addf %68, %70 : vector<32x16xf32>
    %cst_30 = arith.constant 0.000000e+00 : f32
    %72 = vector.broadcast %cst_30 : f32 to vector<32x16xf32>
    %73 = arith.maximumf %71, %72 : vector<32x16xf32>
    %74 = vector.extract_strided_slice %73 {offsets = [0, 0], sizes = [32, 15], strides = [1, 1]} : vector<32x16xf32> to vector<32x15xf32>
    %75 = vector.extract_strided_slice %73 {offsets = [0, 1], sizes = [32, 15], strides = [1, 1]} : vector<32x16xf32> to vector<32x15xf32>
    %76 = arith.maximumf %74, %75 : vector<32x15xf32>
    %77 = vector.extract_strided_slice %73 {offsets = [0, 0], sizes = [32, 1], strides = [1, 1]} : vector<32x16xf32> to vector<32x1xf32>
    %78 = vector.extract_strided_slice %73 {offsets = [0, 15], sizes = [32, 1], strides = [1, 1]} : vector<32x16xf32> to vector<32x1xf32>
    %79 = tpu.concatenate %77, %76, %78 in 1 : vector<32x1xf32>, vector<32x15xf32>, vector<32x1xf32> -> vector<32x17xf32>
    %80 = tpu.iota {dimensions = array<i32: 0>} : vector<17x9xi32>
    %81 = tpu.iota {dimensions = array<i32: 1>} : vector<17x9xi32>
    %c2_i32 = arith.constant 2 : i32
    %82 = vector.broadcast %c2_i32 : i32 to vector<17x9xi32>
    %83 = arith.muli %82, %81 : vector<17x9xi32>
    %84 = arith.cmpi eq, %80, %83 : vector<17x9xi32>
    %85 = arith.extui %84 : vector<17x9xi1> to vector<17x9xi32>
    %86 = arith.sitofp %85 : vector<17x9xi32> to vector<17x9xf32>
    %cst_31 = arith.constant dense<0.000000e+00> : vector<32x9xf32>
    %87 = tpu.matmul %79, %86, %cst_31 {dimension_numbers = #tpu.dot_dimension_numbers<[1], [0], [0], [1], [0, 0, 1, 1], [], []>} : vector<32x17xf32>, vector<17x9xf32>, vector<32x9xf32> -> vector<32x9xf32>
    %cst_32 = arith.constant 0.000000e+00 : f32
    %88 = vector.broadcast %cst_32 : f32 to vector<32x4xf32>
    %89 = tpu.concatenate %88, %87, %88 in 1 : vector<32x4xf32>, vector<32x9xf32>, vector<32x4xf32> -> vector<32x17xf32>
    %c256 = arith.constant 256 : index
    %c0_33 = arith.constant 0 : index
    %90 = vector.load %arg2[%c256, %c0_33] : memref<1088x32xf32, #tpu.memory_space<vmem>>, vector<32x32xf32>
    %91 = vector.extract_strided_slice %89 {offsets = [0, 0], sizes = [32, 10], strides = [1, 1]} : vector<32x17xf32> to vector<32x10xf32>
    %cst_34 = arith.constant dense<0.000000e+00> : vector<32x10xf32>
    %92 = tpu.matmul %90, %91, %cst_34 {dimension_numbers = #tpu.dot_dimension_numbers<[1], [0], [0], [1], [0, 0, 1, 1], [], []>} : vector<32x32xf32>, vector<32x10xf32>, vector<32x10xf32> -> vector<32x10xf32>
    %c288 = arith.constant 288 : index
    %c0_35 = arith.constant 0 : index
    %93 = vector.load %arg2[%c288, %c0_35] : memref<1088x32xf32, #tpu.memory_space<vmem>>, vector<32x32xf32>
    %94 = vector.extract_strided_slice %89 {offsets = [0, 1], sizes = [32, 10], strides = [1, 1]} : vector<32x17xf32> to vector<32x10xf32>
    %cst_36 = arith.constant dense<0.000000e+00> : vector<32x10xf32>
    %95 = tpu.matmul %93, %94, %cst_36 {dimension_numbers = #tpu.dot_dimension_numbers<[1], [0], [0], [1], [0, 0, 1, 1], [], []>} : vector<32x32xf32>, vector<32x10xf32>, vector<32x10xf32> -> vector<32x10xf32>
    %96 = arith.addf %92, %95 : vector<32x10xf32>
    %c320 = arith.constant 320 : index
    %c0_37 = arith.constant 0 : index
    %97 = vector.load %arg2[%c320, %c0_37] : memref<1088x32xf32, #tpu.memory_space<vmem>>, vector<32x32xf32>
    %98 = vector.extract_strided_slice %89 {offsets = [0, 2], sizes = [32, 10], strides = [1, 1]} : vector<32x17xf32> to vector<32x10xf32>
    %cst_38 = arith.constant dense<0.000000e+00> : vector<32x10xf32>
    %99 = tpu.matmul %97, %98, %cst_38 {dimension_numbers = #tpu.dot_dimension_numbers<[1], [0], [0], [1], [0, 0, 1, 1], [], []>} : vector<32x32xf32>, vector<32x10xf32>, vector<32x10xf32> -> vector<32x10xf32>
    %100 = arith.addf %96, %99 : vector<32x10xf32>
    %c352 = arith.constant 352 : index
    %c0_39 = arith.constant 0 : index
    %101 = vector.load %arg2[%c352, %c0_39] : memref<1088x32xf32, #tpu.memory_space<vmem>>, vector<32x32xf32>
    %102 = vector.extract_strided_slice %89 {offsets = [0, 3], sizes = [32, 10], strides = [1, 1]} : vector<32x17xf32> to vector<32x10xf32>
    %cst_40 = arith.constant dense<0.000000e+00> : vector<32x10xf32>
    %103 = tpu.matmul %101, %102, %cst_40 {dimension_numbers = #tpu.dot_dimension_numbers<[1], [0], [0], [1], [0, 0, 1, 1], [], []>} : vector<32x32xf32>, vector<32x10xf32>, vector<32x10xf32> -> vector<32x10xf32>
    %104 = arith.addf %100, %103 : vector<32x10xf32>
    %c384 = arith.constant 384 : index
    %c0_41 = arith.constant 0 : index
    %105 = vector.load %arg2[%c384, %c0_41] : memref<1088x32xf32, #tpu.memory_space<vmem>>, vector<32x32xf32>
    %106 = vector.extract_strided_slice %89 {offsets = [0, 4], sizes = [32, 10], strides = [1, 1]} : vector<32x17xf32> to vector<32x10xf32>
    %cst_42 = arith.constant dense<0.000000e+00> : vector<32x10xf32>
    %107 = tpu.matmul %105, %106, %cst_42 {dimension_numbers = #tpu.dot_dimension_numbers<[1], [0], [0], [1], [0, 0, 1, 1], [], []>} : vector<32x32xf32>, vector<32x10xf32>, vector<32x10xf32> -> vector<32x10xf32>
    %108 = arith.addf %104, %107 : vector<32x10xf32>
    %c416 = arith.constant 416 : index
    %c0_43 = arith.constant 0 : index
    %109 = vector.load %arg2[%c416, %c0_43] : memref<1088x32xf32, #tpu.memory_space<vmem>>, vector<32x32xf32>
    %110 = vector.extract_strided_slice %89 {offsets = [0, 5], sizes = [32, 10], strides = [1, 1]} : vector<32x17xf32> to vector<32x10xf32>
    %cst_44 = arith.constant dense<0.000000e+00> : vector<32x10xf32>
    %111 = tpu.matmul %109, %110, %cst_44 {dimension_numbers = #tpu.dot_dimension_numbers<[1], [0], [0], [1], [0, 0, 1, 1], [], []>} : vector<32x32xf32>, vector<32x10xf32>, vector<32x10xf32> -> vector<32x10xf32>
    %112 = arith.addf %108, %111 : vector<32x10xf32>
    %c448 = arith.constant 448 : index
    %c0_45 = arith.constant 0 : index
    %113 = vector.load %arg2[%c448, %c0_45] : memref<1088x32xf32, #tpu.memory_space<vmem>>, vector<32x32xf32>
    %114 = vector.extract_strided_slice %89 {offsets = [0, 6], sizes = [32, 10], strides = [1, 1]} : vector<32x17xf32> to vector<32x10xf32>
    %cst_46 = arith.constant dense<0.000000e+00> : vector<32x10xf32>
    %115 = tpu.matmul %113, %114, %cst_46 {dimension_numbers = #tpu.dot_dimension_numbers<[1], [0], [0], [1], [0, 0, 1, 1], [], []>} : vector<32x32xf32>, vector<32x10xf32>, vector<32x10xf32> -> vector<32x10xf32>
    %116 = arith.addf %112, %115 : vector<32x10xf32>
    %c480 = arith.constant 480 : index
    %c0_47 = arith.constant 0 : index
    %117 = vector.load %arg2[%c480, %c0_47] : memref<1088x32xf32, #tpu.memory_space<vmem>>, vector<32x32xf32>
    %118 = vector.extract_strided_slice %89 {offsets = [0, 7], sizes = [32, 10], strides = [1, 1]} : vector<32x17xf32> to vector<32x10xf32>
    %cst_48 = arith.constant dense<0.000000e+00> : vector<32x10xf32>
    %119 = tpu.matmul %117, %118, %cst_48 {dimension_numbers = #tpu.dot_dimension_numbers<[1], [0], [0], [1], [0, 0, 1, 1], [], []>} : vector<32x32xf32>, vector<32x10xf32>, vector<32x10xf32> -> vector<32x10xf32>
    %120 = arith.addf %116, %119 : vector<32x10xf32>
    %c0_49 = arith.constant 0 : index
    %c3 = arith.constant 3 : index
    %121 = vector.load %arg3[%c0_49, %c3] : memref<32x16xf32, #tpu.memory_space<vmem>>, vector<32x1xf32>
    %122 = vector.broadcast %121 : vector<32x1xf32> to vector<32x10xf32>
    %123 = arith.addf %120, %122 : vector<32x10xf32>
    %cst_50 = arith.constant 0.000000e+00 : f32
    %124 = vector.broadcast %cst_50 : f32 to vector<32x10xf32>
    %125 = arith.maximumf %123, %124 : vector<32x10xf32>
    %cst_51 = arith.constant 0.000000e+00 : f32
    %126 = vector.broadcast %cst_51 : f32 to vector<32x2xf32>
    %127 = tpu.concatenate %126, %125, %126 in 1 : vector<32x2xf32>, vector<32x10xf32>, vector<32x2xf32> -> vector<32x14xf32>
    %c512 = arith.constant 512 : index
    %c0_52 = arith.constant 0 : index
    %128 = vector.load %arg2[%c512, %c0_52] : memref<1088x32xf32, #tpu.memory_space<vmem>>, vector<32x32xf32>
    %129 = vector.extract_strided_slice %127 {offsets = [0, 0], sizes = [32, 10], strides = [1, 1]} : vector<32x14xf32> to vector<32x10xf32>
    %cst_53 = arith.constant dense<0.000000e+00> : vector<32x10xf32>
    %130 = tpu.matmul %128, %129, %cst_53 {dimension_numbers = #tpu.dot_dimension_numbers<[1], [0], [0], [1], [0, 0, 1, 1], [], []>} : vector<32x32xf32>, vector<32x10xf32>, vector<32x10xf32> -> vector<32x10xf32>
    %c544 = arith.constant 544 : index
    %c0_54 = arith.constant 0 : index
    %131 = vector.load %arg2[%c544, %c0_54] : memref<1088x32xf32, #tpu.memory_space<vmem>>, vector<32x32xf32>
    %132 = vector.extract_strided_slice %127 {offsets = [0, 1], sizes = [32, 10], strides = [1, 1]} : vector<32x14xf32> to vector<32x10xf32>
    %cst_55 = arith.constant dense<0.000000e+00> : vector<32x10xf32>
    %133 = tpu.matmul %131, %132, %cst_55 {dimension_numbers = #tpu.dot_dimension_numbers<[1], [0], [0], [1], [0, 0, 1, 1], [], []>} : vector<32x32xf32>, vector<32x10xf32>, vector<32x10xf32> -> vector<32x10xf32>
    %134 = arith.addf %130, %133 : vector<32x10xf32>
    %c576 = arith.constant 576 : index
    %c0_56 = arith.constant 0 : index
    %135 = vector.load %arg2[%c576, %c0_56] : memref<1088x32xf32, #tpu.memory_space<vmem>>, vector<32x32xf32>
    %136 = vector.extract_strided_slice %127 {offsets = [0, 2], sizes = [32, 10], strides = [1, 1]} : vector<32x14xf32> to vector<32x10xf32>
    %cst_57 = arith.constant dense<0.000000e+00> : vector<32x10xf32>
    %137 = tpu.matmul %135, %136, %cst_57 {dimension_numbers = #tpu.dot_dimension_numbers<[1], [0], [0], [1], [0, 0, 1, 1], [], []>} : vector<32x32xf32>, vector<32x10xf32>, vector<32x10xf32> -> vector<32x10xf32>
    %138 = arith.addf %134, %137 : vector<32x10xf32>
    %c608 = arith.constant 608 : index
    %c0_58 = arith.constant 0 : index
    %139 = vector.load %arg2[%c608, %c0_58] : memref<1088x32xf32, #tpu.memory_space<vmem>>, vector<32x32xf32>
    %140 = vector.extract_strided_slice %127 {offsets = [0, 3], sizes = [32, 10], strides = [1, 1]} : vector<32x14xf32> to vector<32x10xf32>
    %cst_59 = arith.constant dense<0.000000e+00> : vector<32x10xf32>
    %141 = tpu.matmul %139, %140, %cst_59 {dimension_numbers = #tpu.dot_dimension_numbers<[1], [0], [0], [1], [0, 0, 1, 1], [], []>} : vector<32x32xf32>, vector<32x10xf32>, vector<32x10xf32> -> vector<32x10xf32>
    %142 = arith.addf %138, %141 : vector<32x10xf32>
    %c640 = arith.constant 640 : index
    %c0_60 = arith.constant 0 : index
    %143 = vector.load %arg2[%c640, %c0_60] : memref<1088x32xf32, #tpu.memory_space<vmem>>, vector<32x32xf32>
    %144 = vector.extract_strided_slice %127 {offsets = [0, 4], sizes = [32, 10], strides = [1, 1]} : vector<32x14xf32> to vector<32x10xf32>
    %cst_61 = arith.constant dense<0.000000e+00> : vector<32x10xf32>
    %145 = tpu.matmul %143, %144, %cst_61 {dimension_numbers = #tpu.dot_dimension_numbers<[1], [0], [0], [1], [0, 0, 1, 1], [], []>} : vector<32x32xf32>, vector<32x10xf32>, vector<32x10xf32> -> vector<32x10xf32>
    %146 = arith.addf %142, %145 : vector<32x10xf32>
    %c0_62 = arith.constant 0 : index
    %c4 = arith.constant 4 : index
    %147 = vector.load %arg3[%c0_62, %c4] : memref<32x16xf32, #tpu.memory_space<vmem>>, vector<32x1xf32>
    %148 = vector.broadcast %147 : vector<32x1xf32> to vector<32x10xf32>
    %149 = arith.addf %146, %148 : vector<32x10xf32>
    %cst_63 = arith.constant 0.000000e+00 : f32
    %150 = vector.broadcast %cst_63 : f32 to vector<32x10xf32>
    %151 = arith.maximumf %149, %150 : vector<32x10xf32>
    %152 = vector.extract_strided_slice %151 {offsets = [0, 0], sizes = [32, 9], strides = [1, 1]} : vector<32x10xf32> to vector<32x9xf32>
    %153 = vector.extract_strided_slice %151 {offsets = [0, 1], sizes = [32, 9], strides = [1, 1]} : vector<32x10xf32> to vector<32x9xf32>
    %154 = arith.maximumf %152, %153 : vector<32x9xf32>
    %155 = vector.extract_strided_slice %151 {offsets = [0, 0], sizes = [32, 1], strides = [1, 1]} : vector<32x10xf32> to vector<32x1xf32>
    %156 = vector.extract_strided_slice %151 {offsets = [0, 9], sizes = [32, 1], strides = [1, 1]} : vector<32x10xf32> to vector<32x1xf32>
    %157 = tpu.concatenate %155, %154, %156 in 1 : vector<32x1xf32>, vector<32x9xf32>, vector<32x1xf32> -> vector<32x11xf32>
    %158 = tpu.iota {dimensions = array<i32: 0>} : vector<11x6xi32>
    %159 = tpu.iota {dimensions = array<i32: 1>} : vector<11x6xi32>
    %c2_i32_64 = arith.constant 2 : i32
    %160 = vector.broadcast %c2_i32_64 : i32 to vector<11x6xi32>
    %161 = arith.muli %160, %159 : vector<11x6xi32>
    %162 = arith.cmpi eq, %158, %161 : vector<11x6xi32>
    %163 = arith.extui %162 : vector<11x6xi1> to vector<11x6xi32>
    %164 = arith.sitofp %163 : vector<11x6xi32> to vector<11x6xf32>
    %cst_65 = arith.constant dense<0.000000e+00> : vector<32x6xf32>
    %165 = tpu.matmul %157, %164, %cst_65 {dimension_numbers = #tpu.dot_dimension_numbers<[1], [0], [0], [1], [0, 0, 1, 1], [], []>} : vector<32x11xf32>, vector<11x6xf32>, vector<32x6xf32> -> vector<32x6xf32>
    %cst_66 = arith.constant 0.000000e+00 : f32
    %166 = vector.broadcast %cst_66 : f32 to vector<32x4xf32>
    %167 = tpu.concatenate %166, %165, %166 in 1 : vector<32x4xf32>, vector<32x6xf32>, vector<32x4xf32> -> vector<32x14xf32>
    %c672 = arith.constant 672 : index
    %c0_67 = arith.constant 0 : index
    %168 = vector.load %arg2[%c672, %c0_67] : memref<1088x32xf32, #tpu.memory_space<vmem>>, vector<32x32xf32>
    %169 = vector.extract_strided_slice %167 {offsets = [0, 0], sizes = [32, 7], strides = [1, 1]} : vector<32x14xf32> to vector<32x7xf32>
    %cst_68 = arith.constant dense<0.000000e+00> : vector<32x7xf32>
    %170 = tpu.matmul %168, %169, %cst_68 {dimension_numbers = #tpu.dot_dimension_numbers<[1], [0], [0], [1], [0, 0, 1, 1], [], []>} : vector<32x32xf32>, vector<32x7xf32>, vector<32x7xf32> -> vector<32x7xf32>
    %c704 = arith.constant 704 : index
    %c0_69 = arith.constant 0 : index
    %171 = vector.load %arg2[%c704, %c0_69] : memref<1088x32xf32, #tpu.memory_space<vmem>>, vector<32x32xf32>
    %172 = vector.extract_strided_slice %167 {offsets = [0, 1], sizes = [32, 7], strides = [1, 1]} : vector<32x14xf32> to vector<32x7xf32>
    %cst_70 = arith.constant dense<0.000000e+00> : vector<32x7xf32>
    %173 = tpu.matmul %171, %172, %cst_70 {dimension_numbers = #tpu.dot_dimension_numbers<[1], [0], [0], [1], [0, 0, 1, 1], [], []>} : vector<32x32xf32>, vector<32x7xf32>, vector<32x7xf32> -> vector<32x7xf32>
    %174 = arith.addf %170, %173 : vector<32x7xf32>
    %c736 = arith.constant 736 : index
    %c0_71 = arith.constant 0 : index
    %175 = vector.load %arg2[%c736, %c0_71] : memref<1088x32xf32, #tpu.memory_space<vmem>>, vector<32x32xf32>
    %176 = vector.extract_strided_slice %167 {offsets = [0, 2], sizes = [32, 7], strides = [1, 1]} : vector<32x14xf32> to vector<32x7xf32>
    %cst_72 = arith.constant dense<0.000000e+00> : vector<32x7xf32>
    %177 = tpu.matmul %175, %176, %cst_72 {dimension_numbers = #tpu.dot_dimension_numbers<[1], [0], [0], [1], [0, 0, 1, 1], [], []>} : vector<32x32xf32>, vector<32x7xf32>, vector<32x7xf32> -> vector<32x7xf32>
    %178 = arith.addf %174, %177 : vector<32x7xf32>
    %c768 = arith.constant 768 : index
    %c0_73 = arith.constant 0 : index
    %179 = vector.load %arg2[%c768, %c0_73] : memref<1088x32xf32, #tpu.memory_space<vmem>>, vector<32x32xf32>
    %180 = vector.extract_strided_slice %167 {offsets = [0, 3], sizes = [32, 7], strides = [1, 1]} : vector<32x14xf32> to vector<32x7xf32>
    %cst_74 = arith.constant dense<0.000000e+00> : vector<32x7xf32>
    %181 = tpu.matmul %179, %180, %cst_74 {dimension_numbers = #tpu.dot_dimension_numbers<[1], [0], [0], [1], [0, 0, 1, 1], [], []>} : vector<32x32xf32>, vector<32x7xf32>, vector<32x7xf32> -> vector<32x7xf32>
    %182 = arith.addf %178, %181 : vector<32x7xf32>
    %c800 = arith.constant 800 : index
    %c0_75 = arith.constant 0 : index
    %183 = vector.load %arg2[%c800, %c0_75] : memref<1088x32xf32, #tpu.memory_space<vmem>>, vector<32x32xf32>
    %184 = vector.extract_strided_slice %167 {offsets = [0, 4], sizes = [32, 7], strides = [1, 1]} : vector<32x14xf32> to vector<32x7xf32>
    %cst_76 = arith.constant dense<0.000000e+00> : vector<32x7xf32>
    %185 = tpu.matmul %183, %184, %cst_76 {dimension_numbers = #tpu.dot_dimension_numbers<[1], [0], [0], [1], [0, 0, 1, 1], [], []>} : vector<32x32xf32>, vector<32x7xf32>, vector<32x7xf32> -> vector<32x7xf32>
    %186 = arith.addf %182, %185 : vector<32x7xf32>
    %c832 = arith.constant 832 : index
    %c0_77 = arith.constant 0 : index
    %187 = vector.load %arg2[%c832, %c0_77] : memref<1088x32xf32, #tpu.memory_space<vmem>>, vector<32x32xf32>
    %188 = vector.extract_strided_slice %167 {offsets = [0, 5], sizes = [32, 7], strides = [1, 1]} : vector<32x14xf32> to vector<32x7xf32>
    %cst_78 = arith.constant dense<0.000000e+00> : vector<32x7xf32>
    %189 = tpu.matmul %187, %188, %cst_78 {dimension_numbers = #tpu.dot_dimension_numbers<[1], [0], [0], [1], [0, 0, 1, 1], [], []>} : vector<32x32xf32>, vector<32x7xf32>, vector<32x7xf32> -> vector<32x7xf32>
    %190 = arith.addf %186, %189 : vector<32x7xf32>
    %c864 = arith.constant 864 : index
    %c0_79 = arith.constant 0 : index
    %191 = vector.load %arg2[%c864, %c0_79] : memref<1088x32xf32, #tpu.memory_space<vmem>>, vector<32x32xf32>
    %192 = vector.extract_strided_slice %167 {offsets = [0, 6], sizes = [32, 7], strides = [1, 1]} : vector<32x14xf32> to vector<32x7xf32>
    %cst_80 = arith.constant dense<0.000000e+00> : vector<32x7xf32>
    %193 = tpu.matmul %191, %192, %cst_80 {dimension_numbers = #tpu.dot_dimension_numbers<[1], [0], [0], [1], [0, 0, 1, 1], [], []>} : vector<32x32xf32>, vector<32x7xf32>, vector<32x7xf32> -> vector<32x7xf32>
    %194 = arith.addf %190, %193 : vector<32x7xf32>
    %c896 = arith.constant 896 : index
    %c0_81 = arith.constant 0 : index
    %195 = vector.load %arg2[%c896, %c0_81] : memref<1088x32xf32, #tpu.memory_space<vmem>>, vector<32x32xf32>
    %196 = vector.extract_strided_slice %167 {offsets = [0, 7], sizes = [32, 7], strides = [1, 1]} : vector<32x14xf32> to vector<32x7xf32>
    %cst_82 = arith.constant dense<0.000000e+00> : vector<32x7xf32>
    %197 = tpu.matmul %195, %196, %cst_82 {dimension_numbers = #tpu.dot_dimension_numbers<[1], [0], [0], [1], [0, 0, 1, 1], [], []>} : vector<32x32xf32>, vector<32x7xf32>, vector<32x7xf32> -> vector<32x7xf32>
    %198 = arith.addf %194, %197 : vector<32x7xf32>
    %c0_83 = arith.constant 0 : index
    %c5 = arith.constant 5 : index
    %199 = vector.load %arg3[%c0_83, %c5] : memref<32x16xf32, #tpu.memory_space<vmem>>, vector<32x1xf32>
    %200 = vector.broadcast %199 : vector<32x1xf32> to vector<32x7xf32>
    %201 = arith.addf %198, %200 : vector<32x7xf32>
    %cst_84 = arith.constant 0.000000e+00 : f32
    %202 = vector.broadcast %cst_84 : f32 to vector<32x7xf32>
    %203 = arith.maximumf %201, %202 : vector<32x7xf32>
    %cst_85 = arith.constant 0.000000e+00 : f32
    %204 = vector.broadcast %cst_85 : f32 to vector<32x2xf32>
    %205 = tpu.concatenate %204, %203, %204 in 1 : vector<32x2xf32>, vector<32x7xf32>, vector<32x2xf32> -> vector<32x11xf32>
    %c928 = arith.constant 928 : index
    %c0_86 = arith.constant 0 : index
    %206 = vector.load %arg2[%c928, %c0_86] : memref<1088x32xf32, #tpu.memory_space<vmem>>, vector<32x32xf32>
    %207 = vector.extract_strided_slice %205 {offsets = [0, 0], sizes = [32, 7], strides = [1, 1]} : vector<32x11xf32> to vector<32x7xf32>
    %cst_87 = arith.constant dense<0.000000e+00> : vector<32x7xf32>
    %208 = tpu.matmul %206, %207, %cst_87 {dimension_numbers = #tpu.dot_dimension_numbers<[1], [0], [0], [1], [0, 0, 1, 1], [], []>} : vector<32x32xf32>, vector<32x7xf32>, vector<32x7xf32> -> vector<32x7xf32>
    %c960 = arith.constant 960 : index
    %c0_88 = arith.constant 0 : index
    %209 = vector.load %arg2[%c960, %c0_88] : memref<1088x32xf32, #tpu.memory_space<vmem>>, vector<32x32xf32>
    %210 = vector.extract_strided_slice %205 {offsets = [0, 1], sizes = [32, 7], strides = [1, 1]} : vector<32x11xf32> to vector<32x7xf32>
    %cst_89 = arith.constant dense<0.000000e+00> : vector<32x7xf32>
    %211 = tpu.matmul %209, %210, %cst_89 {dimension_numbers = #tpu.dot_dimension_numbers<[1], [0], [0], [1], [0, 0, 1, 1], [], []>} : vector<32x32xf32>, vector<32x7xf32>, vector<32x7xf32> -> vector<32x7xf32>
    %212 = arith.addf %208, %211 : vector<32x7xf32>
    %c992 = arith.constant 992 : index
    %c0_90 = arith.constant 0 : index
    %213 = vector.load %arg2[%c992, %c0_90] : memref<1088x32xf32, #tpu.memory_space<vmem>>, vector<32x32xf32>
    %214 = vector.extract_strided_slice %205 {offsets = [0, 2], sizes = [32, 7], strides = [1, 1]} : vector<32x11xf32> to vector<32x7xf32>
    %cst_91 = arith.constant dense<0.000000e+00> : vector<32x7xf32>
    %215 = tpu.matmul %213, %214, %cst_91 {dimension_numbers = #tpu.dot_dimension_numbers<[1], [0], [0], [1], [0, 0, 1, 1], [], []>} : vector<32x32xf32>, vector<32x7xf32>, vector<32x7xf32> -> vector<32x7xf32>
    %216 = arith.addf %212, %215 : vector<32x7xf32>
    %c1024 = arith.constant 1024 : index
    %c0_92 = arith.constant 0 : index
    %217 = vector.load %arg2[%c1024, %c0_92] : memref<1088x32xf32, #tpu.memory_space<vmem>>, vector<32x32xf32>
    %218 = vector.extract_strided_slice %205 {offsets = [0, 3], sizes = [32, 7], strides = [1, 1]} : vector<32x11xf32> to vector<32x7xf32>
    %cst_93 = arith.constant dense<0.000000e+00> : vector<32x7xf32>
    %219 = tpu.matmul %217, %218, %cst_93 {dimension_numbers = #tpu.dot_dimension_numbers<[1], [0], [0], [1], [0, 0, 1, 1], [], []>} : vector<32x32xf32>, vector<32x7xf32>, vector<32x7xf32> -> vector<32x7xf32>
    %220 = arith.addf %216, %219 : vector<32x7xf32>
    %c1056 = arith.constant 1056 : index
    %c0_94 = arith.constant 0 : index
    %221 = vector.load %arg2[%c1056, %c0_94] : memref<1088x32xf32, #tpu.memory_space<vmem>>, vector<32x32xf32>
    %222 = vector.extract_strided_slice %205 {offsets = [0, 4], sizes = [32, 7], strides = [1, 1]} : vector<32x11xf32> to vector<32x7xf32>
    %cst_95 = arith.constant dense<0.000000e+00> : vector<32x7xf32>
    %223 = tpu.matmul %221, %222, %cst_95 {dimension_numbers = #tpu.dot_dimension_numbers<[1], [0], [0], [1], [0, 0, 1, 1], [], []>} : vector<32x32xf32>, vector<32x7xf32>, vector<32x7xf32> -> vector<32x7xf32>
    %224 = arith.addf %220, %223 : vector<32x7xf32>
    %c0_96 = arith.constant 0 : index
    %c6 = arith.constant 6 : index
    %225 = vector.load %arg3[%c0_96, %c6] : memref<32x16xf32, #tpu.memory_space<vmem>>, vector<32x1xf32>
    %226 = vector.broadcast %225 : vector<32x1xf32> to vector<32x7xf32>
    %227 = arith.addf %224, %226 : vector<32x7xf32>
    %cst_97 = arith.constant 0.000000e+00 : f32
    %228 = vector.broadcast %cst_97 : f32 to vector<32x7xf32>
    %229 = arith.maximumf %227, %228 : vector<32x7xf32>
    %230 = vector.extract_strided_slice %229 {offsets = [0, 0], sizes = [32, 6], strides = [1, 1]} : vector<32x7xf32> to vector<32x6xf32>
    %231 = vector.extract_strided_slice %229 {offsets = [0, 1], sizes = [32, 6], strides = [1, 1]} : vector<32x7xf32> to vector<32x6xf32>
    %232 = arith.maximumf %230, %231 : vector<32x6xf32>
    %233 = vector.extract_strided_slice %229 {offsets = [0, 0], sizes = [32, 1], strides = [1, 1]} : vector<32x7xf32> to vector<32x1xf32>
    %234 = tpu.concatenate %233, %232 in 1 : vector<32x1xf32>, vector<32x6xf32> -> vector<32x7xf32>
    %235 = tpu.iota {dimensions = array<i32: 0>} : vector<7x4xi32>
    %236 = tpu.iota {dimensions = array<i32: 1>} : vector<7x4xi32>
    %c2_i32_98 = arith.constant 2 : i32
    %237 = vector.broadcast %c2_i32_98 : i32 to vector<7x4xi32>
    %238 = arith.muli %237, %236 : vector<7x4xi32>
    %239 = arith.cmpi eq, %235, %238 : vector<7x4xi32>
    %240 = arith.extui %239 : vector<7x4xi1> to vector<7x4xi32>
    %241 = arith.sitofp %240 : vector<7x4xi32> to vector<7x4xf32>
    %cst_99 = arith.constant dense<0.000000e+00> : vector<32x4xf32>
    %242 = tpu.matmul %234, %241, %cst_99 {dimension_numbers = #tpu.dot_dimension_numbers<[1], [0], [0], [1], [0, 0, 1, 1], [], []>} : vector<32x7xf32>, vector<7x4xf32>, vector<32x4xf32> -> vector<32x4xf32>
    %243 = vector.extract_strided_slice %242 {offsets = [0, 0], sizes = [32, 2], strides = [1, 1]} : vector<32x4xf32> to vector<32x2xf32>
    %cst_100 = arith.constant dense<0.000000e+00> : vector<32xf32>
    %244 = vector.multi_reduction <add>, %243, %cst_100 [1] : vector<32x2xf32> to vector<32xf32>
    %245 = vector.shape_cast %244 : vector<32xf32> to vector<32x1xf32>
    %cst_101 = arith.constant 2.000000e+00 : f32
    %246 = vector.broadcast %cst_101 : f32 to vector<32x1xf32>
    %247 = arith.divf %245, %246 : vector<32x1xf32>
    %248 = vector.extract_strided_slice %242 {offsets = [0, 2], sizes = [32, 2], strides = [1, 1]} : vector<32x4xf32> to vector<32x2xf32>
    %cst_102 = arith.constant dense<0.000000e+00> : vector<32xf32>
    %249 = vector.multi_reduction <add>, %248, %cst_102 [1] : vector<32x2xf32> to vector<32xf32>
    %250 = vector.shape_cast %249 : vector<32xf32> to vector<32x1xf32>
    %cst_103 = arith.constant 2.000000e+00 : f32
    %251 = vector.broadcast %cst_103 : f32 to vector<32x1xf32>
    %252 = arith.divf %250, %251 : vector<32x1xf32>
    %253 = tpu.concatenate %247, %252 in 1 : vector<32x1xf32>, vector<32x1xf32> -> vector<32x2xf32>
    %c0_104 = arith.constant 0 : index
    %c0_105 = arith.constant 0 : index
    %c0_106 = arith.constant 0 : index
    %254 = vector.load %arg4[%c0_104, %c0_105, %c0_106] : memref<1x32x2xf32, #tpu.memory_space<vmem>>, vector<1x32x2xf32>
    %255 = vector.shape_cast %254 : vector<1x32x2xf32> to vector<32x2xf32>
    %256 = vector.shape_cast %253 : vector<32x2xf32> to vector<1x32x2xf32>
    tpu.vector_store %arg4[%c0_104, %c0_105, %c0_106], %256 {strides = array<i32>} : memref<1x32x2xf32, #tpu.memory_space<vmem>>, vector<1x32x2xf32>,
    return
  }
  func.func @transform_0(%arg0: i32) -> (i32, i32, i32) {
    %c0_i32 = arith.constant 0 : i32
    %c0_i32_0 = arith.constant 0 : i32
    %c0_i32_1 = arith.constant 0 : i32
    return %arg0, %c0_i32, %c0_i32_0 : i32, i32, i32
  }
  func.func @transform_1(%arg0: i32) -> (i32, i32) {
    %c0_i32 = arith.constant 0 : i32
    %c0_i32_0 = arith.constant 0 : i32
    %c0_i32_1 = arith.constant 0 : i32
    return %c0_i32, %c0_i32_0 : i32, i32
  }
  func.func @transform_2(%arg0: i32) -> (i32, i32) {
    %c0_i32 = arith.constant 0 : i32
    %c0_i32_0 = arith.constant 0 : i32
    %c0_i32_1 = arith.constant 0 : i32
    return %c0_i32, %c0_i32_0 : i32, i32
  }
  func.func @transform_3(%arg0: i32) -> (i32, i32, i32) {
    %c0_i32 = arith.constant 0 : i32
    %c0_i32_0 = arith.constant 0 : i32
    %c0_i32_1 = arith.constant 0 : i32
    return %arg0, %c0_i32, %c0_i32_0 : i32, i32, i32
  }
}

</mosaic_0001>

<llo_original>
// kernel: _lambda_.1
$region0: #{_lambda_.1}
  #allocation0 [shape = 'u32[]', space=smem, size = 0x4, offset = 0x4, fixed_abs, tag = 'smem constant byte address 0x4 - core index']
  #allocation1 [shape = 'u32[144,128]{1,0:T(1,128)}', space=vmem, size = 0x12000, scoped, tag = 'internal scratch']
  %s0 = inlined_call_operand.vmem [shape: f32[2,4,16], index: 0, kind: input, shape index: {}]
  %s1 = inlined_call_operand.vmem [shape: f32[1088,32], index: 1, kind: input, shape index: {}]
  %s2 = inlined_call_operand.vmem [shape: f32[32,16], index: 2, kind: input, shape index: {}]
  %s3 = inlined_call_operand.vmem [shape: f32[2,32,2], index: 3, kind: output, shape index: {}]
  %s4 = sld [smem:[#allocation0]]
  $region45: #{_lambda_.1} parent=0
    _
  %s6 = ssub.s32 1, %s4
  %s7 = scalar_select 0, %s6, %s4
  loop: start=0, step=1, limit=4
  $region2: #{_lambda_.1} parent=0 // loop_pre_header
    _
  $region3: #{_lambda_.1} parent=0 // loop_header
    %s9 = sphi 0, %s13
    %p10 = scmp.ge.s32.totalorder %s9, 4
    %s19 = sphi 0, %s21
    %s22 = sphi 0, %s19
    %s23 = sphi 0, %s22
    %s39 = sphi 0, %s23
    %s43 = sphi 0, %s43
    %s45 = sphi 0, %s43
    %s46 = sphi 0, %s45
    %s60 = sphi 0, %s46
    %s64 = sphi 0, %s64
    %s66 = sphi 0, %s64
    %s67 = sphi 0, %s66
    %s81 = sphi 0, %s67
    %s87 = sphi 0, %s89
    %s90 = sphi 0, %s87
    %s91 = sphi 0, %s90
    %s107 = sphi 0, %s91
  $region4: #{_lambda_.1} parent=0 // loop_header_branch
    %12 = sbr.rel (%p10) target = $region8
  $region5: #{_lambda_.1} parent=0 // loop_body
    %s14 = ssub.s32 %s9, 1
    %s15 = ssub.s32 %s9, 2
    %s16 = sadd.s32 %s9, 1
    %s17 = ssub.s32 %s9, %s16
    %p18 = scmp.eq.s32.totalorder %s17, 0
    %s20 = sadd.s32 %s19, 1
    %s21 = scalar_select %p18, %s19, %s20
    %p24 = pneg %p18
    %p25 = scmp.eq.s32.totalorder %s9, 1
    %p26 = por %p24, %p25
    %p27 = scmp.ne.s32.totalorder %s19, %s22
    %p28 = scmp.eq.s32.totalorder %s9, 0
    %p29 = por %p27, %p28
    %p30 = scmp.ne.s32.totalorder %s19, %s22
    %p31 = scmp.eq.s32.totalorder %s14, 1
    %p32 = por %p30, %p31
    %p33 = scmp.ne.s32.totalorder %s22, %s23
    %p34 = scmp.eq.s32.totalorder %s14, 0
    %p35 = por %p33, %p34
    %p36 = scmp.ne.s32.totalorder %s22, %s23
    %p37 = scmp.eq.s32.totalorder %s15, 1
    %p38 = por %p36, %p37
    %p40 = scmp.ne.s32.totalorder %s23, %s39
    %p41 = scmp.eq.s32.totalorder %s15, 0
    %p42 = por %p40, %p41
    %s44 = sadd.s32 %s43, 1
    %p47 = scmp.eq.s32.totalorder %s9, 1
    %p48 = scmp.ne.s32.totalorder %s43, %s45
    %p49 = scmp.eq.s32.totalorder %s9, 0
    %p50 = por %p48, %p49
    %p51 = scmp.ne.s32.totalorder %s43, %s45
    %p52 = scmp.eq.s32.totalorder %s14, 1
    %p53 = por %p51, %p52
    %p54 = scmp.ne.s32.totalorder %s45, %s46
    %p55 = scmp.eq.s32.totalorder %s14, 0
    %p56 = por %p54, %p55
    %p57 = scmp.ne.s32.totalorder %s45, %s46
    %p58 = scmp.eq.s32.totalorder %s15, 1
    %p59 = por %p57, %p58
    %p61 = scmp.ne.s32.totalorder %s46, %s60
    %p62 = scmp.eq.s32.totalorder %s15, 0
    %p63 = por %p61, %p62
    %s65 = sadd.s32 %s64, 1
    %p68 = scmp.eq.s32.totalorder %s9, 1
    %p69 = scmp.ne.s32.totalorder %s64, %s66
    %p70 = scmp.eq.s32.totalorder %s9, 0
    %p71 = por %p69, %p70
    %p72 = scmp.ne.s32.totalorder %s64, %s66
    %p73 = scmp.eq.s32.totalorder %s14, 1
    %p74 = por %p72, %p73
    %p75 = scmp.ne.s32.totalorder %s66, %s67
    %p76 = scmp.eq.s32.totalorder %s14, 0
    %p77 = por %p75, %p76
    %p78 = scmp.ne.s32.totalorder %s66, %s67
    %p79 = scmp.eq.s32.totalorder %s15, 1
    %p80 = por %p78, %p79
    %p82 = scmp.ne.s32.totalorder %s67, %s81
    %p83 = scmp.eq.s32.totalorder %s15, 0
    %p84 = por %p82, %p83
    %s85 = ssub.s32 %s9, %s16
    %p86 = scmp.eq.s32.totalorder %s85, 0
    %s88 = sadd.s32 %s87, 1
    %s89 = scalar_select %p86, %s87, %s88
    %p92 = pneg %p86
    %p93 = scmp.eq.s32.totalorder %s9, 1
    %p94 = por %p92, %p93
    %p95 = scmp.ne.s32.totalorder %s87, %s90
    %p96 = scmp.eq.s32.totalorder %s9, 0
    %p97 = por %p95, %p96
    %p98 = scmp.ne.s32.totalorder %s87, %s90
    %p99 = scmp.eq.s32.totalorder %s14, 1
    %p100 = por %p98, %p99
    %p101 = scmp.ne.s32.totalorder %s90, %s91
    %p102 = scmp.eq.s32.totalorder %s14, 0
    %p103 = por %p101, %p102
    %p104 = scmp.ne.s32.totalorder %s90, %s91
    %p105 = scmp.eq.s32.totalorder %s15, 1
    %p106 = por %p104, %p105
    %p108 = scmp.ne.s32.totalorder %s91, %s107
    %p109 = scmp.eq.s32.totalorder %s15, 0
    %p110 = por %p108, %p109
    %p111 = scmp.le.s32.totalorder 1, %s9
    %p112 = scmp.lt.s32.totalorder %s9, 3
    %p113 = pnand %p111, %p112
    %p114 = pneg %p113
    // Predicated region
    $region9: #{_lambda_.1} parent=5 // pred_check
      _
    $region10: #{_lambda_.1} parent=5 // pred_check_branch
      %116 = sbr.rel (%p113) target = $region12
    $region11: #{_lambda_.1} parent=5 // pred_region
      %s117 = ssub.s32 %s9, 1
      // Predicated region
      $region13: #{_lambda_.1} parent=11 // pred_check
        %p118 = pneg %p56
      $region14: #{_lambda_.1} parent=11 // pred_check_branch
        %120 = sbr.rel (%p118) target = $region16
      $region15: #{_lambda_.1} parent=11 // pred_region
        _
      $region16: #{_lambda_.1} parent=11 // pred_fallthru
        _
      // Predicated region
      $region17: #{_lambda_.1} parent=11 // pred_check
        %p121 = pneg %p77
      $region18: #{_lambda_.1} parent=11 // pred_check_branch
        %123 = sbr.rel (%p121) target = $region20
      $region19: #{_lambda_.1} parent=11 // pred_region
        _
      $region20: #{_lambda_.1} parent=11 // pred_fallthru
        _
    $region12: #{_lambda_.1} parent=5 // pred_fallthru
      _
    %p124 = scmp.lt.s32.totalorder %s9, 2
    // Predicated region
    $region21: #{_lambda_.1} parent=5 // pred_check
      %p125 = pneg %p124
    $region22: #{_lambda_.1} parent=5 // pred_check_branch
      %127 = sbr.rel (%p125) target = $region24
    $region23: #{_lambda_.1} parent=5 // pred_region
      // Predicated region
      $region25: #{_lambda_.1} parent=23 // pred_check
        %p128 = pneg %p29
      $region26: #{_lambda_.1} parent=23 // pred_check_branch
        %130 = sbr.rel (%p128) target = $region28
      $region27: #{_lambda_.1} parent=23 // pred_region
        %p131 = scmp.lt.s32.totalorder %s9, 1
        %s132 = scalar_select %p131, %s9, 1
        %s133 = smul.addr %s132, 4
        %s134 = scalar_lea.vmem %s0, %s133
      $region28: #{_lambda_.1} parent=23 // pred_fallthru
        _
    $region24: #{_lambda_.1} parent=5 // pred_fallthru
      _
    %p135 = scmp.le.s32.totalorder 1, %s9
    %p136 = scmp.lt.s32.totalorder %s9, 3
    %p137 = pnand %p135, %p136
    %p138 = pneg %p137
    // Predicated region
    $region29: #{_lambda_.1} parent=5 // pred_check
      _
    $region30: #{_lambda_.1} parent=5 // pred_check_branch
      %140 = sbr.rel (%p137) target = $region32
    $region31: #{_lambda_.1} parent=5 // pred_region
      %s141 = ssub.s32 %s9, 1
      %p142 = scmp.lt.s32.totalorder %s14, 1
      %s143 = scalar_select %p142, %s14, 1
      %s144 = smul.addr %s143, 4
      %s145 = scalar_lea.vmem %s0, %s144
      %p146 = pneg %p35
      %p147 = pneg %p32
      %p148 = pneg %p56
      %p149 = pneg %p53
      %p150 = pneg %p77
      %p151 = pneg %p74
      %p152 = pneg %p103
      %p153 = pneg %p100
      %p154 = scmp.lt.s32.totalorder %s14, 1
      %s155 = scalar_select %p154, %s14, 1
      %s156 = smul.addr %s155, 4
      %s157 = smul.addr %s156, 8
      %s158 = scalar_lea.vmem %s3, %s157
      %p159 = scmp.lt.s32.totalorder %s14, 1
      %s160 = scalar_select %p159, %s14, 1
      %s161 = smul.addr %s160, 4
      %s162 = scalar_lea.vmem %s0, %s161
      %p163 = scmp.lt.s32.totalorder %s14, 1
      %s164 = scalar_select %p163, %s14, 1
      %s165 = smul.addr %s164, 4
      %s166 = smul.addr %s165, 8
      %s167 = scalar_lea.vmem %s3, %s166
      %v168 = vld [vmem:[%s162] sm:$0xf]
      %v169 = vld [vmem:[%s2] sm:$0xff]
      %v170 = vld [vmem:[%s2 + $0x8] sm:$0xff]
      %v171 = vld [vmem:[%s2 + $0x10] sm:$0xff]
      %v172 = vld [vmem:[%s2 + $0x18] sm:$0xff]
      %174 = vset.pattern.permute.xlu0 8
      %175 = vperm.xlu0 %174, %v169
      %v176 = vpop.permute.xlu0 %175
      %179 = vset.pattern.permute.xlu0 8
      %180 = vperm.xlu0 %179, %v170
      %v181 = vpop.permute.xlu0 %180
      %184 = vset.pattern.permute.xlu0 8
      %185 = vperm.xlu0 %184, %v171
      %v186 = vpop.permute.xlu0 %185
      %189 = vset.pattern.permute.xlu0 8
      %190 = vperm.xlu0 %189, %v172
      %v191 = vpop.permute.xlu0 %190
      %v193 = vlaneseq
      %v194 = vshrl.u32 %v193, 7
      %v195 = vsub.s32 0, %v194
      %v196 = vrot.slane %v168, %v195
      %v197 = vmul.f32 %v176, %v196
      %v198 = vmul.f32 %v181, %v196
      %v199 = vmul.f32 %v186, %v196
      %v200 = vmul.f32 %v191, %v196
      %201 = vset.pattern.permute.xlu0 9
      %202 = vperm.xlu0 %201, %v169
      %v203 = vpop.permute.xlu0 %202
      %205 = vset.pattern.permute.xlu0 9
      %206 = vperm.xlu0 %205, %v170
      %v207 = vpop.permute.xlu0 %206
      %209 = vset.pattern.permute.xlu0 9
      %210 = vperm.xlu0 %209, %v171
      %v211 = vpop.permute.xlu0 %210
      %213 = vset.pattern.permute.xlu0 9
      %214 = vperm.xlu0 %213, %v172
      %v215 = vpop.permute.xlu0 %214
      %v217 = vlaneseq
      %v218 = vshrl.u32 %v217, 7
      %v219 = vsub.s32 1, %v218
      %v220 = vrot.slane %v168, %v219
      %v221 = vmul.f32 %v203, %v220
      %v222 = vmul.f32 %v207, %v220
      %v223 = vmul.f32 %v211, %v220
      %v224 = vmul.f32 %v215, %v220
      %v225 = vadd.f32 %v197, %v221
      %v226 = vadd.f32 %v198, %v222
      %v227 = vadd.f32 %v199, %v223
      %v228 = vadd.f32 %v200, %v224
      %229 = vset.pattern.permute.xlu0 10
      %230 = vperm.xlu0 %229, %v169
      %v231 = vpop.permute.xlu0 %230
      %233 = vset.pattern.permute.xlu0 10
      %234 = vperm.xlu0 %233, %v170
      %v235 = vpop.permute.xlu0 %234
      %237 = vset.pattern.permute.xlu0 10
      %238 = vperm.xlu0 %237, %v171
      %v239 = vpop.permute.xlu0 %238
      %241 = vset.pattern.permute.xlu0 10
      %242 = vperm.xlu0 %241, %v172
      %v243 = vpop.permute.xlu0 %242
      %v245 = vlaneseq
      %v246 = vshrl.u32 %v245, 7
      %v247 = vsub.s32 2, %v246
      %v248 = vrot.slane %v168, %v247
      %v249 = vmul.f32 %v231, %v248
      %v250 = vmul.f32 %v235, %v248
      %v251 = vmul.f32 %v239, %v248
      %v252 = vmul.f32 %v243, %v248
      %v253 = vadd.f32 %v225, %v249
      %v254 = vadd.f32 %v226, %v250
      %v255 = vadd.f32 %v227, %v251
      %v256 = vadd.f32 %v228, %v252
      %257 = vset.pattern.permute.xlu0 11
      %258 = vperm.xlu0 %257, %v169
      %v259 = vpop.permute.xlu0 %258
      %261 = vset.pattern.permute.xlu0 11
      %262 = vperm.xlu0 %261, %v170
      %v263 = vpop.permute.xlu0 %262
      %265 = vset.pattern.permute.xlu0 11
      %266 = vperm.xlu0 %265, %v171
      %v267 = vpop.permute.xlu0 %266
      %269 = vset.pattern.permute.xlu0 11
      %270 = vperm.xlu0 %269, %v172
      %v271 = vpop.permute.xlu0 %270
      %v273 = vlaneseq
      %v274 = vshrl.u32 %v273, 7
      %v275 = vsub.s32 3, %v274
      %v276 = vrot.slane %v168, %v275
      %v277 = vmul.f32 %v259, %v276
      %v278 = vmul.f32 %v263, %v276
      %v279 = vmul.f32 %v267, %v276
      %v280 = vmul.f32 %v271, %v276
      %v281 = vadd.f32 %v253, %v277
      %v282 = vadd.f32 %v254, %v278
      %v283 = vadd.f32 %v255, %v279
      %v284 = vadd.f32 %v256, %v280
      %285 = vset.pattern.permute.xlu0 0
      %286 = vperm.xlu0 %285, %v169
      %v287 = vpop.permute.xlu0 %286
      %289 = vset.pattern.permute.xlu0 0
      %290 = vperm.xlu0 %289, %v170
      %v291 = vpop.permute.xlu0 %290
      %293 = vset.pattern.permute.xlu0 0
      %294 = vperm.xlu0 %293, %v171
      %v295 = vpop.permute.xlu0 %294
      %297 = vset.pattern.permute.xlu0 0
      %298 = vperm.xlu0 %297, %v172
      %v299 = vpop.permute.xlu0 %298
      %v301 = vadd.f32 %v281, %v287
      %v302 = vadd.f32 %v282, %v291
      %v303 = vadd.f32 %v283, %v295
      %v304 = vadd.f32 %v284, %v299
      %v305 = vmax.f32 %v301, 0.0
      %v306 = vmax.f32 %v302, 0.0
      %v307 = vmax.f32 %v303, 0.0
      %v308 = vmax.f32 %v304, 0.0
      %313 = vrot.lane.b32.xlu0 %v305, 2
      %v314 = vpop.permute.xlu0 %313
      %315 = vrot.lane.b32.xlu0 %v306, 2
      %v316 = vpop.permute.xlu0 %315
      %317 = vrot.lane.b32.xlu0 %v307, 2
      %v318 = vpop.permute.xlu0 %317
      %319 = vrot.lane.b32.xlu0 %v308, 2
      %v320 = vpop.permute.xlu0 %319
      %vm325 = vcmask 15360
      %v326 = vsel %vm325, 0.0, %v314
      %v327 = vsel %vm325, 0.0, %v316
      %v328 = vsel %vm325, 0.0, %v318
      %v329 = vsel %vm325, 0.0, %v320
      %vm330 = vcmask 146432
      %v331 = vsel %vm330, %v326, 0.0
      %v332 = vsel %vm330, %v327, 0.0
      %v333 = vsel %vm330, %v328, 0.0
      %v334 = vsel %vm330, %v329, 0.0
      %v335 = vld [vmem:[%s1] sm:$0xff]
      %v336 = vld [vmem:[%s1 + $0x8] sm:$0xff]
      %v337 = vld [vmem:[%s1 + $0x10] sm:$0xff]
      %v338 = vld [vmem:[%s1 + $0x18] sm:$0xff]
      %v339 = vld [vmem:[%s1 + $0x20] sm:$0xff]
      %v340 = vld [vmem:[%s1 + $0x28] sm:$0xff]
      %v341 = vld [vmem:[%s1 + $0x30] sm:$0xff]
      %v342 = vld [vmem:[%s1 + $0x38] sm:$0xff]
      %347 = vrot.lane.b32.xlu0 %v331, 127
      %v348 = vpop.permute.xlu0 %347
      %349 = vrot.lane.b32.xlu0 %v332, 127
      %v350 = vpop.permute.xlu0 %349
      %351 = vrot.lane.b32.xlu0 %v333, 127
      %v352 = vpop.permute.xlu0 %351
      %353 = vrot.lane.b32.xlu0 %v334, 127
      %v354 = vpop.permute.xlu0 %353
      %vm359 = vcmask 261120
      %v361 = vsel %vm359, %v339, 0
      %v364 = vsel %vm359, %v340, 0
      %v367 = vsel %vm359, %v341, 0
      %v370 = vsel %vm359, %v342, 0
      %372 = vmatprep.subr.mxu0 0.0
      %373 = vmatpush1.msra.mxu0 0.0
      %374 = vmatprep.subr.mxu0 0.0
      %375 = vmatpush1.msra.mxu0 0.0
      %376 = vmatprep.subr.mxu0 0.0
      %377 = vmatpush1.msra.mxu0 0.0
      %378 = vmatprep.subr.mxu0 0.0
      %379 = vmatpush1.msra.mxu0 0.0
      %380 = vmatprep.subr.mxu0 0.0
      %381 = vmatpush1.msra.mxu0 0.0
      %382 = vmatprep.subr.mxu0 0.0
      %383 = vmatpush1.msra.mxu0 0.0
      %384 = vmatprep.subr.mxu0 0.0
      %385 = vmatpush1.msra.mxu0 0.0
      %386 = vmatprep.subr.mxu0 0.0
      %387 = vmatpush1.msra.mxu0 0.0
      %388 = vmatprep.subr.mxu0 0.0
      %389 = vmatpush1.msra.mxu0 0.0
      %390 = vmatprep.subr.mxu0 0.0
      %391 = vmatpush1.msra.mxu0 0.0
      %392 = vmatprep.subr.mxu0 0.0
      %393 = vmatpush1.msra.mxu0 0.0
      %394 = vmatprep.subr.mxu0 0.0
      %395 = vmatpush1.msra.mxu0 0.0
      %396 = vmatprep.subr.mxu0 0.0
      %397 = vmatpush1.msra.mxu0 %v354
      %398 = vmatprep.subr.mxu0 0.0
      %399 = vmatpush1.msra.mxu0 %v352
      %400 = vmatprep.subr.mxu0 0.0
      %401 = vmatpush1.msra.mxu0 %v350
      %402 = vmatprep.subr.mxu0 0.0
      %403 = vmatpush1.msra.mxu0 %v348
      %404 = vmatprep.subr.mxu0 0.0
      %405 = vmatpush2.msra.mxu0 0.0
      %406 = vmatprep.subr.mxu0 0.0
      %407 = vmatpush2.msra.mxu0 0.0
      %408 = vmatprep.subr.mxu0 0.0
      %409 = vmatpush2.msra.mxu0 0.0
      %410 = vmatprep.subr.mxu0 0.0
      %411 = vmatpush2.msra.mxu0 0.0
      %412 = vmatprep.subr.mxu0 0.0
      %413 = vmatpush2.msra.mxu0 0.0
      %414 = vmatprep.subr.mxu0 0.0
      %415 = vmatpush2.msra.mxu0 0.0
      %416 = vmatprep.subr.mxu0 0.0
      %417 = vmatpush2.msra.mxu0 0.0
      %418 = vmatprep.subr.mxu0 0.0
      %419 = vmatpush2.msra.mxu0 0.0
      %420 = vmatprep.subr.mxu0 0.0
      %421 = vmatpush2.msra.mxu0 0.0
      %422 = vmatprep.subr.mxu0 0.0
      %423 = vmatpush2.msra.mxu0 0.0
      %424 = vmatprep.subr.mxu0 0.0
      %425 = vmatpush2.msra.mxu0 0.0
      %426 = vmatprep.subr.mxu0 0.0
      %427 = vmatpush2.msra.mxu0 0.0
      %428 = vmatprep.subr.mxu0 0.0
      %429 = vmatpush2.msra.mxu0 0.0
      %430 = vmatprep.subr.mxu0 0.0
      %431 = vmatpush2.msra.mxu0 0.0
      %432 = vmatprep.subr.mxu0 0.0
      %433 = vmatpush2.msra.mxu0 0.0
      %434 = vmatprep.subr.mxu0 0.0
      %435 = vmatpush2.msra.mxu0 0.0
      %436 = vmatprep.mubr.f32.mxu0 0.0
      %437 = vmatmul.mubr.f32.gmra.mxu0 %v361
      %v438 = vpop.f32.mrf.mxu0
      %v439 = vadd.f32 0.0, %v438
      %v440 = vpop.f32.mrf.mxu0
      %441 = vmatprep.mubr.f32.mxu0 0.0
      %442 = vmatmul.mubr.f32.gmra.mxu0 %v364
      %v443 = vpop.f32.mrf.mxu0
      %v444 = vadd.f32 0.0, %v443
      %v445 = vpop.f32.mrf.mxu0
      %446 = vmatprep.mubr.f32.mxu0 0.0
      %447 = vmatmul.mubr.f32.gmra.mxu0 %v367
      %v448 = vpop.f32.mrf.mxu0
      %v449 = vadd.f32 0.0, %v448
      %v450 = vpop.f32.mrf.mxu0
      %451 = vmatprep.mubr.f32.mxu0 0.0
      %452 = vmatmul.mubr.f32.gmra.mxu0 %v370
      %v453 = vpop.f32.mrf.mxu0
      %v454 = vadd.f32 0.0, %v453
      %v455 = vpop.f32.mrf.mxu0
      %456 = vdwg.mxu0
      %v458 = vsel %vm359, %v335, 0
      %v461 = vsel %vm359, %v336, 0
      %v464 = vsel %vm359, %v337, 0
      %v467 = vsel %vm359, %v338, 0
      %469 = vmatprep.subr.mxu0 0.0
      %470 = vmatpush1.msra.mxu0 0.0
      %471 = vmatprep.subr.mxu0 0.0
      %472 = vmatpush1.msra.mxu0 0.0
      %473 = vmatprep.subr.mxu0 0.0
      %474 = vmatpush1.msra.mxu0 0.0
      %475 = vmatprep.subr.mxu0 0.0
      %476 = vmatpush1.msra.mxu0 0.0
      %477 = vmatprep.subr.mxu0 0.0
      %478 = vmatpush1.msra.mxu0 0.0
      %479 = vmatprep.subr.mxu0 0.0
      %480 = vmatpush1.msra.mxu0 0.0
      %481 = vmatprep.subr.mxu0 0.0
      %482 = vmatpush1.msra.mxu0 0.0
      %483 = vmatprep.subr.mxu0 0.0
      %484 = vmatpush1.msra.mxu0 0.0
      %485 = vmatprep.subr.mxu0 0.0
      %486 = vmatpush1.msra.mxu0 0.0
      %487 = vmatprep.subr.mxu0 0.0
      %488 = vmatpush1.msra.mxu0 0.0
      %489 = vmatprep.subr.mxu0 0.0
      %490 = vmatpush1.msra.mxu0 0.0
      %491 = vmatprep.subr.mxu0 0.0
      %492 = vmatpush1.msra.mxu0 0.0
      %493 = vmatprep.subr.mxu0 0.0
      %494 = vmatpush1.msra.mxu0 %v334
      %495 = vmatprep.subr.mxu0 0.0
      %496 = vmatpush1.msra.mxu0 %v333
      %497 = vmatprep.subr.mxu0 0.0
      %498 = vmatpush1.msra.mxu0 %v332
      %499 = vmatprep.subr.mxu0 0.0
      %500 = vmatpush1.msra.mxu0 %v331
      %501 = vmatprep.subr.mxu0 0.0
      %502 = vmatpush2.msra.mxu0 0.0
      %503 = vmatprep.subr.mxu0 0.0
      %504 = vmatpush2.msra.mxu0 0.0
      %505 = vmatprep.subr.mxu0 0.0
      %506 = vmatpush2.msra.mxu0 0.0
      %507 = vmatprep.subr.mxu0 0.0
      %508 = vmatpush2.msra.mxu0 0.0
      %509 = vmatprep.subr.mxu0 0.0
      %510 = vmatpush2.msra.mxu0 0.0
      %511 = vmatprep.subr.mxu0 0.0
      %512 = vmatpush2.msra.mxu0 0.0
      %513 = vmatprep.subr.mxu0 0.0
      %514 = vmatpush2.msra.mxu0 0.0
      %515 = vmatprep.subr.mxu0 0.0
      %516 = vmatpush2.msra.mxu0 0.0
      %517 = vmatprep.subr.mxu0 0.0
      %518 = vmatpush2.msra.mxu0 0.0
      %519 = vmatprep.subr.mxu0 0.0
      %520 = vmatpush2.msra.mxu0 0.0
      %521 = vmatprep.subr.mxu0 0.0
      %522 = vmatpush2.msra.mxu0 0.0
      %523 = vmatprep.subr.mxu0 0.0
      %524 = vmatpush2.msra.mxu0 0.0
      %525 = vmatprep.subr.mxu0 0.0
      %526 = vmatpush2.msra.mxu0 0.0
      %527 = vmatprep.subr.mxu0 0.0
      %528 = vmatpush2.msra.mxu0 0.0
      %529 = vmatprep.subr.mxu0 0.0
      %530 = vmatpush2.msra.mxu0 0.0
      %531 = vmatprep.subr.mxu0 0.0
      %532 = vmatpush2.msra.mxu0 0.0
      %533 = vmatprep.mubr.f32.mxu0 0.0
      %534 = vmatmul.mubr.f32.gmra.mxu0 %v458
      %v535 = vpop.f32.mrf.mxu0
      %v536 = vadd.f32 %v439, %v535
      %v537 = vpop.f32.mrf.mxu0
      %538 = vmatprep.mubr.f32.mxu0 0.0
      %539 = vmatmul.mubr.f32.gmra.mxu0 %v461
      %v540 = vpop.f32.mrf.mxu0
      %v541 = vadd.f32 %v444, %v540
      %v542 = vpop.f32.mrf.mxu0
      %543 = vmatprep.mubr.f32.mxu0 0.0
      %544 = vmatmul.mubr.f32.gmra.mxu0 %v464
      %v545 = vpop.f32.mrf.mxu0
      %v546 = vadd.f32 %v449, %v545
      %v547 = vpop.f32.mrf.mxu0
      %548 = vmatprep.mubr.f32.mxu0 0.0
      %549 = vmatmul.mubr.f32.gmra.mxu0 %v467
      %v550 = vpop.f32.mrf.mxu0
      %v551 = vadd.f32 %v454, %v550
      %v552 = vpop.f32.mrf.mxu0
      %553 = vdwg.mxu0
      %v554 = vld [vmem:[%s1 + $0x40] sm:$0xff]
      %v555 = vld [vmem:[%s1 + $0x48] sm:$0xff]
      %v556 = vld [vmem:[%s1 + $0x50] sm:$0xff]
      %v557 = vld [vmem:[%s1 + $0x58] sm:$0xff]
      %558 = vrot.lane.b32.xlu0 %v331, 126
      %v559 = vpop.permute.xlu0 %558
      %560 = vrot.lane.b32.xlu0 %v332, 126
      %v561 = vpop.permute.xlu0 %560
      %562 = vrot.lane.b32.xlu0 %v333, 126
      %v563 = vpop.permute.xlu0 %562
      %564 = vrot.lane.b32.xlu0 %v334, 126
      %v565 = vpop.permute.xlu0 %564
      %v571 = vsel %vm359, %v554, 0
      %v574 = vsel %vm359, %v555, 0
      %v577 = vsel %vm359, %v556, 0
      %v580 = vsel %vm359, %v557, 0
      %582 = vmatprep.subr.mxu0 0.0
      %583 = vmatpush1.msra.mxu0 0.0
      %584 = vmatprep.subr.mxu0 0.0
      %585 = vmatpush1.msra.mxu0 0.0
      %586 = vmatprep.subr.mxu0 0.0
      %587 = vmatpush1.msra.mxu0 0.0
      %588 = vmatprep.subr.mxu0 0.0
      %589 = vmatpush1.msra.mxu0 0.0
      %590 = vmatprep.subr.mxu0 0.0
      %591 = vmatpush1.msra.mxu0 0.0
      %592 = vmatprep.subr.mxu0 0.0
      %593 = vmatpush1.msra.mxu0 0.0
      %594 = vmatprep.subr.mxu0 0.0
      %595 = vmatpush1.msra.mxu0 0.0
      %596 = vmatprep.subr.mxu0 0.0
      %597 = vmatpush1.msra.mxu0 0.0
      %598 = vmatprep.subr.mxu0 0.0
      %599 = vmatpush1.msra.mxu0 0.0
      %600 = vmatprep.subr.mxu0 0.0
      %601 = vmatpush1.msra.mxu0 0.0
      %602 = vmatprep.subr.mxu0 0.0
      %603 = vmatpush1.msra.mxu0 0.0
      %604 = vmatprep.subr.mxu0 0.0
      %605 = vmatpush1.msra.mxu0 0.0
      %606 = vmatprep.subr.mxu0 0.0
      %607 = vmatpush1.msra.mxu0 %v565
      %608 = vmatprep.subr.mxu0 0.0
      %609 = vmatpush1.msra.mxu0 %v563
      %610 = vmatprep.subr.mxu0 0.0
      %611 = vmatpush1.msra.mxu0 %v561
      %612 = vmatprep.subr.mxu0 0.0
      %613 = vmatpush1.msra.mxu0 %v559
      %614 = vmatprep.subr.mxu0 0.0
      %615 = vmatpush2.msra.mxu0 0.0
      %616 = vmatprep.subr.mxu0 0.0
      %617 = vmatpush2.msra.mxu0 0.0
      %618 = vmatprep.subr.mxu0 0.0
      %619 = vmatpush2.msra.mxu0 0.0
      %620 = vmatprep.subr.mxu0 0.0
      %621 = vmatpush2.msra.mxu0 0.0
      %622 = vmatprep.subr.mxu0 0.0
      %623 = vmatpush2.msra.mxu0 0.0
      %624 = vmatprep.subr.mxu0 0.0
      %625 = vmatpush2.msra.mxu0 0.0
      %626 = vmatprep.subr.mxu0 0.0
      %627 = vmatpush2.msra.mxu0 0.0
      %628 = vmatprep.subr.mxu0 0.0
      %629 = vmatpush2.msra.mxu0 0.0
      %630 = vmatprep.subr.mxu0 0.0
      %631 = vmatpush2.msra.mxu0 0.0
      %632 = vmatprep.subr.mxu0 0.0
      %633 = vmatpush2.msra.mxu0 0.0
      %634 = vmatprep.subr.mxu0 0.0
      %635 = vmatpush2.msra.mxu0 0.0
      %636 = vmatprep.subr.mxu0 0.0
      %637 = vmatpush2.msra.mxu0 0.0
      %638 = vmatprep.subr.mxu0 0.0
      %639 = vmatpush2.msra.mxu0 0.0
      %640 = vmatprep.subr.mxu0 0.0
      %641 = vmatpush2.msra.mxu0 0.0
      %642 = vmatprep.subr.mxu0 0.0
      %643 = vmatpush2.msra.mxu0 0.0
      %644 = vmatprep.subr.mxu0 0.0
      %645 = vmatpush2.msra.mxu0 0.0
      %646 = vmatprep.mubr.f32.mxu0 0.0
      %647 = vmatmul.mubr.f32.gmra.mxu0 %v571
      %v648 = vpop.f32.mrf.mxu0
      %v649 = vadd.f32 0.0, %v648
      %v650 = vpop.f32.mrf.mxu0
      %651 = vmatprep.mubr.f32.mxu0 0.0
      %652 = vmatmul.mubr.f32.gmra.mxu0 %v574
      %v653 = vpop.f32.mrf.mxu0
      %v654 = vadd.f32 0.0, %v653
      %v655 = vpop.f32.mrf.mxu0
      %656 = vmatprep.mubr.f32.mxu0 0.0
      %657 = vmatmul.mubr.f32.gmra.mxu0 %v577
      %v658 = vpop.f32.mrf.mxu0
      %v659 = vadd.f32 0.0, %v658
      %v660 = vpop.f32.mrf.mxu0
      %661 = vmatprep.mubr.f32.mxu0 0.0
      %662 = vmatmul.mubr.f32.gmra.mxu0 %v580
      %v663 = vpop.f32.mrf.mxu0
      %v664 = vadd.f32 0.0, %v663
      %v665 = vpop.f32.mrf.mxu0
      %666 = vdwg.mxu0
      %v667 = vadd.f32 %v536, %v649
      %v668 = vadd.f32 %v541, %v654
      %v669 = vadd.f32 %v546, %v659
      %v670 = vadd.f32 %v551, %v664
      %v671 = vld [vmem:[%s1 + $0x60] sm:$0xff]
      %v672 = vld [vmem:[%s1 + $0x68] sm:$0xff]
      %v673 = vld [vmem:[%s1 + $0x70] sm:$0xff]
      %v674 = vld [vmem:[%s1 + $0x78] sm:$0xff]
      %675 = vrot.lane.b32.xlu0 %v331, 125
      %v676 = vpop.permute.xlu0 %675
      %677 = vrot.lane.b32.xlu0 %v332, 125
      %v678 = vpop.permute.xlu0 %677
      %679 = vrot.lane.b32.xlu0 %v333, 125
      %v680 = vpop.permute.xlu0 %679
      %681 = vrot.lane.b32.xlu0 %v334, 125
      %v682 = vpop.permute.xlu0 %681
      %v688 = vsel %vm359, %v671, 0
      %v691 = vsel %vm359, %v672, 0
      %v694 = vsel %vm359, %v673, 0
      %v697 = vsel %vm359, %v674, 0
      %699 = vmatprep.subr.mxu0 0.0
      %700 = vmatpush1.msra.mxu0 0.0
      %701 = vmatprep.subr.mxu0 0.0
      %702 = vmatpush1.msra.mxu0 0.0
      %703 = vmatprep.subr.mxu0 0.0
      %704 = vmatpush1.msra.mxu0 0.0
      %705 = vmatprep.subr.mxu0 0.0
      %706 = vmatpush1.msra.mxu0 0.0
      %707 = vmatprep.subr.mxu0 0.0
      %708 = vmatpush1.msra.mxu0 0.0
      %709 = vmatprep.subr.mxu0 0.0
      %710 = vmatpush1.msra.mxu0 0.0
      %711 = vmatprep.subr.mxu0 0.0
      %712 = vmatpush1.msra.mxu0 0.0
      %713 = vmatprep.subr.mxu0 0.0
      %714 = vmatpush1.msra.mxu0 0.0
      %715 = vmatprep.subr.mxu0 0.0
      %716 = vmatpush1.msra.mxu0 0.0
      %717 = vmatprep.subr.mxu0 0.0
      %718 = vmatpush1.msra.mxu0 0.0
      %719 = vmatprep.subr.mxu0 0.0
      %720 = vmatpush1.msra.mxu0 0.0
      %721 = vmatprep.subr.mxu0 0.0
      %722 = vmatpush1.msra.mxu0 0.0
      %723 = vmatprep.subr.mxu0 0.0
      %724 = vmatpush1.msra.mxu0 %v682
      %725 = vmatprep.subr.mxu0 0.0
      %726 = vmatpush1.msra.mxu0 %v680
      %727 = vmatprep.subr.mxu0 0.0
      %728 = vmatpush1.msra.mxu0 %v678
      %729 = vmatprep.subr.mxu0 0.0
      %730 = vmatpush1.msra.mxu0 %v676
      %731 = vmatprep.subr.mxu0 0.0
      %732 = vmatpush2.msra.mxu0 0.0
      %733 = vmatprep.subr.mxu0 0.0
      %734 = vmatpush2.msra.mxu0 0.0
      %735 = vmatprep.subr.mxu0 0.0
      %736 = vmatpush2.msra.mxu0 0.0
      %737 = vmatprep.subr.mxu0 0.0
      %738 = vmatpush2.msra.mxu0 0.0
      %739 = vmatprep.subr.mxu0 0.0
      %740 = vmatpush2.msra.mxu0 0.0
      %741 = vmatprep.subr.mxu0 0.0
      %742 = vmatpush2.msra.mxu0 0.0
      %743 = vmatprep.subr.mxu0 0.0
      %744 = vmatpush2.msra.mxu0 0.0
      %745 = vmatprep.subr.mxu0 0.0
      %746 = vmatpush2.msra.mxu0 0.0
      %747 = vmatprep.subr.mxu0 0.0
      %748 = vmatpush2.msra.mxu0 0.0
      %749 = vmatprep.subr.mxu0 0.0
      %750 = vmatpush2.msra.mxu0 0.0
      %751 = vmatprep.subr.mxu0 0.0
      %752 = vmatpush2.msra.mxu0 0.0
      %753 = vmatprep.subr.mxu0 0.0
      %754 = vmatpush2.msra.mxu0 0.0
      %755 = vmatprep.subr.mxu0 0.0
      %756 = vmatpush2.msra.mxu0 0.0
      %757 = vmatprep.subr.mxu0 0.0
      %758 = vmatpush2.msra.mxu0 0.0
      %759 = vmatprep.subr.mxu0 0.0
      %760 = vmatpush2.msra.mxu0 0.0
      %761 = vmatprep.subr.mxu0 0.0
      %762 = vmatpush2.msra.mxu0 0.0
      %763 = vmatprep.mubr.f32.mxu0 0.0
      %764 = vmatmul.mubr.f32.gmra.mxu0 %v688
      %v765 = vpop.f32.mrf.mxu0
      %v766 = vadd.f32 0.0, %v765
      %v767 = vpop.f32.mrf.mxu0
      %768 = vmatprep.mubr.f32.mxu0 0.0
      %769 = vmatmul.mubr.f32.gmra.mxu0 %v691
      %v770 = vpop.f32.mrf.mxu0
      %v771 = vadd.f32 0.0, %v770
      %v772 = vpop.f32.mrf.mxu0
      %773 = vmatprep.mubr.f32.mxu0 0.0
      %774 = vmatmul.mubr.f32.gmra.mxu0 %v694
      %v775 = vpop.f32.mrf.mxu0
      %v776 = vadd.f32 0.0, %v775
      %v777 = vpop.f32.mrf.mxu0
      %778 = vmatprep.mubr.f32.mxu0 0.0
      %779 = vmatmul.mubr.f32.gmra.mxu0 %v697
      %v780 = vpop.f32.mrf.mxu0
      %v781 = vadd.f32 0.0, %v780
      %v782 = vpop.f32.mrf.mxu0
      %783 = vdwg.mxu0
      %v784 = vadd.f32 %v667, %v766
      %v785 = vadd.f32 %v668, %v771
      %v786 = vadd.f32 %v669, %v776
      %v787 = vadd.f32 %v670, %v781
      %v788 = vld [vmem:[%s1 + $0x80] sm:$0xff]
      %v789 = vld [vmem:[%s1 + $0x88] sm:$0xff]
      %v790 = vld [vmem:[%s1 + $0x90] sm:$0xff]
      %v791 = vld [vmem:[%s1 + $0x98] sm:$0xff]
      %792 = vrot.lane.b32.xlu0 %v331, 124
      %v793 = vpop.permute.xlu0 %792
      %794 = vrot.lane.b32.xlu0 %v332, 124
      %v795 = vpop.permute.xlu0 %794
      %796 = vrot.lane.b32.xlu0 %v333, 124
      %v797 = vpop.permute.xlu0 %796
      %798 = vrot.lane.b32.xlu0 %v334, 124
      %v799 = vpop.permute.xlu0 %798
      %v805 = vsel %vm359, %v788, 0
      %v808 = vsel %vm359, %v789, 0
      %v811 = vsel %vm359, %v790, 0
      %v814 = vsel %vm359, %v791, 0
      %816 = vmatprep.subr.mxu0 0.0
      %817 = vmatpush1.msra.mxu0 0.0
      %818 = vmatprep.subr.mxu0 0.0
      %819 = vmatpush1.msra.mxu0 0.0
      %820 = vmatprep.subr.mxu0 0.0
      %821 = vmatpush1.msra.mxu0 0.0
      %822 = vmatprep.subr.mxu0 0.0
      %823 = vmatpush1.msra.mxu0 0.0
      %824 = vmatprep.subr.mxu0 0.0
      %825 = vmatpush1.msra.mxu0 0.0
      %826 = vmatprep.subr.mxu0 0.0
      %827 = vmatpush1.msra.mxu0 0.0
      %828 = vmatprep.subr.mxu0 0.0
      %829 = vmatpush1.msra.mxu0 0.0
      %830 = vmatprep.subr.mxu0 0.0
      %831 = vmatpush1.msra.mxu0 0.0
      %832 = vmatprep.subr.mxu0 0.0
      %833 = vmatpush1.msra.mxu0 0.0
      %834 = vmatprep.subr.mxu0 0.0
      %835 = vmatpush1.msra.mxu0 0.0
      %836 = vmatprep.subr.mxu0 0.0
      %837 = vmatpush1.msra.mxu0 0.0
      %838 = vmatprep.subr.mxu0 0.0
      %839 = vmatpush1.msra.mxu0 0.0
      %840 = vmatprep.subr.mxu0 0.0
      %841 = vmatpush1.msra.mxu0 %v799
      %842 = vmatprep.subr.mxu0 0.0
      %843 = vmatpush1.msra.mxu0 %v797
      %844 = vmatprep.subr.mxu0 0.0
      %845 = vmatpush1.msra.mxu0 %v795
      %846 = vmatprep.subr.mxu0 0.0
      %847 = vmatpush1.msra.mxu0 %v793
      %848 = vmatprep.subr.mxu0 0.0
      %849 = vmatpush2.msra.mxu0 0.0
      %850 = vmatprep.subr.mxu0 0.0
      %851 = vmatpush2.msra.mxu0 0.0
      %852 = vmatprep.subr.mxu0 0.0
      %853 = vmatpush2.msra.mxu0 0.0
      %854 = vmatprep.subr.mxu0 0.0
      %855 = vmatpush2.msra.mxu0 0.0
      %856 = vmatprep.subr.mxu0 0.0
      %857 = vmatpush2.msra.mxu0 0.0
      %858 = vmatprep.subr.mxu0 0.0
      %859 = vmatpush2.msra.mxu0 0.0
      %860 = vmatprep.subr.mxu0 0.0
      %861 = vmatpush2.msra.mxu0 0.0
      %862 = vmatprep.subr.mxu0 0.0
      %863 = vmatpush2.msra.mxu0 0.0
      %864 = vmatprep.subr.mxu0 0.0
      %865 = vmatpush2.msra.mxu0 0.0
      %866 = vmatprep.subr.mxu0 0.0
      %867 = vmatpush2.msra.mxu0 0.0
      %868 = vmatprep.subr.mxu0 0.0
      %869 = vmatpush2.msra.mxu0 0.0
      %870 = vmatprep.subr.mxu0 0.0
      %871 = vmatpush2.msra.mxu0 0.0
      %872 = vmatprep.subr.mxu0 0.0
      %873 = vmatpush2.msra.mxu0 0.0
      %874 = vmatprep.subr.mxu0 0.0
      %875 = vmatpush2.msra.mxu0 0.0
      %876 = vmatprep.subr.mxu0 0.0
      %877 = vmatpush2.msra.mxu0 0.0
      %878 = vmatprep.subr.mxu0 0.0
      %879 = vmatpush2.msra.mxu0 0.0
      %880 = vmatprep.mubr.f32.mxu0 0.0
      %881 = vmatmul.mubr.f32.gmra.mxu0 %v805
      %v882 = vpop.f32.mrf.mxu0
      %v883 = vadd.f32 0.0, %v882
      %v884 = vpop.f32.mrf.mxu0
      %885 = vmatprep.mubr.f32.mxu0 0.0
      %886 = vmatmul.mubr.f32.gmra.mxu0 %v808
      %v887 = vpop.f32.mrf.mxu0
      %v888 = vadd.f32 0.0, %v887
      %v889 = vpop.f32.mrf.mxu0
      %890 = vmatprep.mubr.f32.mxu0 0.0
      %891 = vmatmul.mubr.f32.gmra.mxu0 %v811
      %v892 = vpop.f32.mrf.mxu0
      %v893 = vadd.f32 0.0, %v892
      %v894 = vpop.f32.mrf.mxu0
      %895 = vmatprep.mubr.f32.mxu0 0.0
      %896 = vmatmul.mubr.f32.gmra.mxu0 %v814
      %v897 = vpop.f32.mrf.mxu0
      %v898 = vadd.f32 0.0, %v897
      %v899 = vpop.f32.mrf.mxu0
      %900 = vdwg.mxu0
      %v901 = vadd.f32 %v784, %v883
      %v902 = vadd.f32 %v785, %v888
      %v903 = vadd.f32 %v786, %v893
      %v904 = vadd.f32 %v787, %v898
      %905 = vset.pattern.permute.xlu0 1
      %906 = vperm.xlu0 %905, %v169
      %v907 = vpop.permute.xlu0 %906
      %909 = vset.pattern.permute.xlu0 1
      %910 = vperm.xlu0 %909, %v170
      %v911 = vpop.permute.xlu0 %910
      %913 = vset.pattern.permute.xlu0 1
      %914 = vperm.xlu0 %913, %v171
      %v915 = vpop.permute.xlu0 %914
      %917 = vset.pattern.permute.xlu0 1
      %918 = vperm.xlu0 %917, %v172
      %v919 = vpop.permute.xlu0 %918
      %v921 = vadd.f32 %v901, %v907
      %v922 = vadd.f32 %v902, %v911
      %v923 = vadd.f32 %v903, %v915
      %v924 = vadd.f32 %v904, %v919
      %v925 = vmax.f32 %v921, 0.0
      %v926 = vmax.f32 %v922, 0.0
      %v927 = vmax.f32 %v923, 0.0
      %v928 = vmax.f32 %v924, 0.0
      %933 = vrot.lane.b32.xlu0 %v925, 1
      %v934 = vpop.permute.xlu0 %933
      %935 = vrot.lane.b32.xlu0 %v926, 1
      %v936 = vpop.permute.xlu0 %935
      %937 = vrot.lane.b32.xlu0 %v927, 1
      %v938 = vpop.permute.xlu0 %937
      %939 = vrot.lane.b32.xlu0 %v928, 1
      %v940 = vpop.permute.xlu0 %939
      %vm945 = vcmask 7168
      %v946 = vsel %vm945, 0.0, %v934
      %v947 = vsel %vm945, 0.0, %v936
      %v948 = vsel %vm945, 0.0, %v938
      %v949 = vsel %vm945, 0.0, %v940
      %vm950 = vcmask 138240
      %v951 = vsel %vm950, %v946, 0.0
      %v952 = vsel %vm950, %v947, 0.0
      %v953 = vsel %vm950, %v948, 0.0
      %v954 = vsel %vm950, %v949, 0.0
      %v955 = vld [vmem:[%s1 + $0xa0] sm:$0xff]
      %v956 = vld [vmem:[%s1 + $0xa8] sm:$0xff]
      %v957 = vld [vmem:[%s1 + $0xb0] sm:$0xff]
      %v958 = vld [vmem:[%s1 + $0xb8] sm:$0xff]
      %v959 = vld [vmem:[%s1 + $0xc0] sm:$0xff]
      %v960 = vld [vmem:[%s1 + $0xc8] sm:$0xff]
      %v961 = vld [vmem:[%s1 + $0xd0] sm:$0xff]
      %v962 = vld [vmem:[%s1 + $0xd8] sm:$0xff]
      %967 = vrot.lane.b32.xlu0 %v951, 127
      %v968 = vpop.permute.xlu0 %967
      %969 = vrot.lane.b32.xlu0 %v952, 127
      %v970 = vpop.permute.xlu0 %969
      %971 = vrot.lane.b32.xlu0 %v953, 127
      %v972 = vpop.permute.xlu0 %971
      %973 = vrot.lane.b32.xlu0 %v954, 127
      %v974 = vpop.permute.xlu0 %973
      %v980 = vsel %vm359, %v959, 0
      %v983 = vsel %vm359, %v960, 0
      %v986 = vsel %vm359, %v961, 0
      %v989 = vsel %vm359, %v962, 0
      %991 = vmatprep.subr.mxu0 0.0
      %992 = vmatpush1.msra.mxu0 0.0
      %993 = vmatprep.subr.mxu0 0.0
      %994 = vmatpush1.msra.mxu0 0.0
      %995 = vmatprep.subr.mxu0 0.0
      %996 = vmatpush1.msra.mxu0 0.0
      %997 = vmatprep.subr.mxu0 0.0
      %998 = vmatpush1.msra.mxu0 0.0
      %999 = vmatprep.subr.mxu0 0.0
      %1000 = vmatpush1.msra.mxu0 0.0
      %1001 = vmatprep.subr.mxu0 0.0
      %1002 = vmatpush1.msra.mxu0 0.0
      %1003 = vmatprep.subr.mxu0 0.0
      %1004 = vmatpush1.msra.mxu0 0.0
      %1005 = vmatprep.subr.mxu0 0.0
      %1006 = vmatpush1.msra.mxu0 0.0
      %1007 = vmatprep.subr.mxu0 0.0
      %1008 = vmatpush1.msra.mxu0 0.0
      %1009 = vmatprep.subr.mxu0 0.0
      %1010 = vmatpush1.msra.mxu0 0.0
      %1011 = vmatprep.subr.mxu0 0.0
      %1012 = vmatpush1.msra.mxu0 0.0
      %1013 = vmatprep.subr.mxu0 0.0
      %1014 = vmatpush1.msra.mxu0 0.0
      %1015 = vmatprep.subr.mxu0 0.0
      %1016 = vmatpush1.msra.mxu0 %v974
      %1017 = vmatprep.subr.mxu0 0.0
      %1018 = vmatpush1.msra.mxu0 %v972
      %1019 = vmatprep.subr.mxu0 0.0
      %1020 = vmatpush1.msra.mxu0 %v970
      %1021 = vmatprep.subr.mxu0 0.0
      %1022 = vmatpush1.msra.mxu0 %v968
      %1023 = vmatprep.subr.mxu0 0.0
      %1024 = vmatpush2.msra.mxu0 0.0
      %1025 = vmatprep.subr.mxu0 0.0
      %1026 = vmatpush2.msra.mxu0 0.0
      %1027 = vmatprep.subr.mxu0 0.0
      %1028 = vmatpush2.msra.mxu0 0.0
      %1029 = vmatprep.subr.mxu0 0.0
      %1030 = vmatpush2.msra.mxu0 0.0
      %1031 = vmatprep.subr.mxu0 0.0
      %1032 = vmatpush2.msra.mxu0 0.0
      %1033 = vmatprep.subr.mxu0 0.0
      %1034 = vmatpush2.msra.mxu0 0.0
      %1035 = vmatprep.subr.mxu0 0.0
      %1036 = vmatpush2.msra.mxu0 0.0
      %1037 = vmatprep.subr.mxu0 0.0
      %1038 = vmatpush2.msra.mxu0 0.0
      %1039 = vmatprep.subr.mxu0 0.0
      %1040 = vmatpush2.msra.mxu0 0.0
      %1041 = vmatprep.subr.mxu0 0.0
      %1042 = vmatpush2.msra.mxu0 0.0
      %1043 = vmatprep.subr.mxu0 0.0
      %1044 = vmatpush2.msra.mxu0 0.0
      %1045 = vmatprep.subr.mxu0 0.0
      %1046 = vmatpush2.msra.mxu0 0.0
      %1047 = vmatprep.subr.mxu0 0.0
      %1048 = vmatpush2.msra.mxu0 0.0
      %1049 = vmatprep.subr.mxu0 0.0
      %1050 = vmatpush2.msra.mxu0 0.0
      %1051 = vmatprep.subr.mxu0 0.0
      %1052 = vmatpush2.msra.mxu0 0.0
      %1053 = vmatprep.subr.mxu0 0.0
      %1054 = vmatpush2.msra.mxu0 0.0
      %1055 = vmatprep.mubr.f32.mxu0 0.0
      %1056 = vmatmul.mubr.f32.gmra.mxu0 %v980
      %v1057 = vpop.f32.mrf.mxu0
      %v1058 = vadd.f32 0.0, %v1057
      %v1059 = vpop.f32.mrf.mxu0
      %1060 = vmatprep.mubr.f32.mxu0 0.0
      %1061 = vmatmul.mubr.f32.gmra.mxu0 %v983
      %v1062 = vpop.f32.mrf.mxu0
      %v1063 = vadd.f32 0.0, %v1062
      %v1064 = vpop.f32.mrf.mxu0
      %1065 = vmatprep.mubr.f32.mxu0 0.0
      %1066 = vmatmul.mubr.f32.gmra.mxu0 %v986
      %v1067 = vpop.f32.mrf.mxu0
      %v1068 = vadd.f32 0.0, %v1067
      %v1069 = vpop.f32.mrf.mxu0
      %1070 = vmatprep.mubr.f32.mxu0 0.0
      %1071 = vmatmul.mubr.f32.gmra.mxu0 %v989
      %v1072 = vpop.f32.mrf.mxu0
      %v1073 = vadd.f32 0.0, %v1072
      %v1074 = vpop.f32.mrf.mxu0
      %1075 = vdwg.mxu0
      %v1077 = vsel %vm359, %v955, 0
      %v1080 = vsel %vm359, %v956, 0
      %v1083 = vsel %vm359, %v957, 0
      %v1086 = vsel %vm359, %v958, 0
      %1088 = vmatprep.subr.mxu0 0.0
      %1089 = vmatpush1.msra.mxu0 0.0
      %1090 = vmatprep.subr.mxu0 0.0
      %1091 = vmatpush1.msra.mxu0 0.0
      %1092 = vmatprep.subr.mxu0 0.0
      %1093 = vmatpush1.msra.mxu0 0.0
      %1094 = vmatprep.subr.mxu0 0.0
      %1095 = vmatpush1.msra.mxu0 0.0
      %1096 = vmatprep.subr.mxu0 0.0
      %1097 = vmatpush1.msra.mxu0 0.0
      %1098 = vmatprep.subr.mxu0 0.0
      %1099 = vmatpush1.msra.mxu0 0.0
      %1100 = vmatprep.subr.mxu0 0.0
      %1101 = vmatpush1.msra.mxu0 0.0
      %1102 = vmatprep.subr.mxu0 0.0
      %1103 = vmatpush1.msra.mxu0 0.0
      %1104 = vmatprep.subr.mxu0 0.0
      %1105 = vmatpush1.msra.mxu0 0.0
      %1106 = vmatprep.subr.mxu0 0.0
      %1107 = vmatpush1.msra.mxu0 0.0
      %1108 = vmatprep.subr.mxu0 0.0
      %1109 = vmatpush1.msra.mxu0 0.0
      %1110 = vmatprep.subr.mxu0 0.0
      %1111 = vmatpush1.msra.mxu0 0.0
      %1112 = vmatprep.subr.mxu0 0.0
      %1113 = vmatpush1.msra.mxu0 %v954
      %1114 = vmatprep.subr.mxu0 0.0
      %1115 = vmatpush1.msra.mxu0 %v953
      %1116 = vmatprep.subr.mxu0 0.0
      %1117 = vmatpush1.msra.mxu0 %v952
      %1118 = vmatprep.subr.mxu0 0.0
      %1119 = vmatpush1.msra.mxu0 %v951
      %1120 = vmatprep.subr.mxu0 0.0
      %1121 = vmatpush2.msra.mxu0 0.0
      %1122 = vmatprep.subr.mxu0 0.0
      %1123 = vmatpush2.msra.mxu0 0.0
      %1124 = vmatprep.subr.mxu0 0.0
      %1125 = vmatpush2.msra.mxu0 0.0
      %1126 = vmatprep.subr.mxu0 0.0
      %1127 = vmatpush2.msra.mxu0 0.0
      %1128 = vmatprep.subr.mxu0 0.0
      %1129 = vmatpush2.msra.mxu0 0.0
      %1130 = vmatprep.subr.mxu0 0.0
      %1131 = vmatpush2.msra.mxu0 0.0
      %1132 = vmatprep.subr.mxu0 0.0
      %1133 = vmatpush2.msra.mxu0 0.0
      %1134 = vmatprep.subr.mxu0 0.0
      %1135 = vmatpush2.msra.mxu0 0.0
      %1136 = vmatprep.subr.mxu0 0.0
      %1137 = vmatpush2.msra.mxu0 0.0
      %1138 = vmatprep.subr.mxu0 0.0
      %1139 = vmatpush2.msra.mxu0 0.0
      %1140 = vmatprep.subr.mxu0 0.0
      %1141 = vmatpush2.msra.mxu0 0.0
      %1142 = vmatprep.subr.mxu0 0.0
      %1143 = vmatpush2.msra.mxu0 0.0
      %1144 = vmatprep.subr.mxu0 0.0
      %1145 = vmatpush2.msra.mxu0 0.0
      %1146 = vmatprep.subr.mxu0 0.0
      %1147 = vmatpush2.msra.mxu0 0.0
      %1148 = vmatprep.subr.mxu0 0.0
      %1149 = vmatpush2.msra.mxu0 0.0
      %1150 = vmatprep.subr.mxu0 0.0
      %1151 = vmatpush2.msra.mxu0 0.0
      %1152 = vmatprep.mubr.f32.mxu0 0.0
      %1153 = vmatmul.mubr.f32.gmra.mxu0 %v1077
      %v1154 = vpop.f32.mrf.mxu0
      %v1155 = vadd.f32 %v1058, %v1154
      %v1156 = vpop.f32.mrf.mxu0
      %1157 = vmatprep.mubr.f32.mxu0 0.0
      %1158 = vmatmul.mubr.f32.gmra.mxu0 %v1080
      %v1159 = vpop.f32.mrf.mxu0
      %v1160 = vadd.f32 %v1063, %v1159
      %v1161 = vpop.f32.mrf.mxu0
      %1162 = vmatprep.mubr.f32.mxu0 0.0
      %1163 = vmatmul.mubr.f32.gmra.mxu0 %v1083
      %v1164 = vpop.f32.mrf.mxu0
      %v1165 = vadd.f32 %v1068, %v1164
      %v1166 = vpop.f32.mrf.mxu0
      %1167 = vmatprep.mubr.f32.mxu0 0.0
      %1168 = vmatmul.mubr.f32.gmra.mxu0 %v1086
      %v1169 = vpop.f32.mrf.mxu0
      %v1170 = vadd.f32 %v1073, %v1169
      %v1171 = vpop.f32.mrf.mxu0
      %1172 = vdwg.mxu0
      %v1173 = vld [vmem:[%s1 + $0xe0] sm:$0xff]
      %v1174 = vld [vmem:[%s1 + $0xe8] sm:$0xff]
      %v1175 = vld [vmem:[%s1 + $0xf0] sm:$0xff]
      %v1176 = vld [vmem:[%s1 + $0xf8] sm:$0xff]
      %1177 = vrot.lane.b32.xlu0 %v951, 126
      %v1178 = vpop.permute.xlu0 %1177
      %1179 = vrot.lane.b32.xlu0 %v952, 126
      %v1180 = vpop.permute.xlu0 %1179
      %1181 = vrot.lane.b32.xlu0 %v953, 126
      %v1182 = vpop.permute.xlu0 %1181
      %1183 = vrot.lane.b32.xlu0 %v954, 126
      %v1184 = vpop.permute.xlu0 %1183
      %v1190 = vsel %vm359, %v1173, 0
      %v1193 = vsel %vm359, %v1174, 0
      %v1196 = vsel %vm359, %v1175, 0
      %v1199 = vsel %vm359, %v1176, 0
      %1201 = vmatprep.subr.mxu0 0.0
      %1202 = vmatpush1.msra.mxu0 0.0
      %1203 = vmatprep.subr.mxu0 0.0
      %1204 = vmatpush1.msra.mxu0 0.0
      %1205 = vmatprep.subr.mxu0 0.0
      %1206 = vmatpush1.msra.mxu0 0.0
      %1207 = vmatprep.subr.mxu0 0.0
      %1208 = vmatpush1.msra.mxu0 0.0
      %1209 = vmatprep.subr.mxu0 0.0
      %1210 = vmatpush1.msra.mxu0 0.0
      %1211 = vmatprep.subr.mxu0 0.0
      %1212 = vmatpush1.msra.mxu0 0.0
      %1213 = vmatprep.subr.mxu0 0.0
      %1214 = vmatpush1.msra.mxu0 0.0
      %1215 = vmatprep.subr.mxu0 0.0
      %1216 = vmatpush1.msra.mxu0 0.0
      %1217 = vmatprep.subr.mxu0 0.0
      %1218 = vmatpush1.msra.mxu0 0.0
      %1219 = vmatprep.subr.mxu0 0.0
      %1220 = vmatpush1.msra.mxu0 0.0
      %1221 = vmatprep.subr.mxu0 0.0
      %1222 = vmatpush1.msra.mxu0 0.0
      %1223 = vmatprep.subr.mxu0 0.0
      %1224 = vmatpush1.msra.mxu0 0.0
      %1225 = vmatprep.subr.mxu0 0.0
      %1226 = vmatpush1.msra.mxu0 %v1184
      %1227 = vmatprep.subr.mxu0 0.0
      %1228 = vmatpush1.msra.mxu0 %v1182
      %1229 = vmatprep.subr.mxu0 0.0
      %1230 = vmatpush1.msra.mxu0 %v1180
      %1231 = vmatprep.subr.mxu0 0.0
      %1232 = vmatpush1.msra.mxu0 %v1178
      %1233 = vmatprep.subr.mxu0 0.0
      %1234 = vmatpush2.msra.mxu0 0.0
      %1235 = vmatprep.subr.mxu0 0.0
      %1236 = vmatpush2.msra.mxu0 0.0
      %1237 = vmatprep.subr.mxu0 0.0
      %1238 = vmatpush2.msra.mxu0 0.0
      %1239 = vmatprep.subr.mxu0 0.0
      %1240 = vmatpush2.msra.mxu0 0.0
      %1241 = vmatprep.subr.mxu0 0.0
      %1242 = vmatpush2.msra.mxu0 0.0
      %1243 = vmatprep.subr.mxu0 0.0
      %1244 = vmatpush2.msra.mxu0 0.0
      %1245 = vmatprep.subr.mxu0 0.0
      %1246 = vmatpush2.msra.mxu0 0.0
      %1247 = vmatprep.subr.mxu0 0.0
      %1248 = vmatpush2.msra.mxu0 0.0
      %1249 = vmatprep.subr.mxu0 0.0
      %1250 = vmatpush2.msra.mxu0 0.0
      %1251 = vmatprep.subr.mxu0 0.0
      %1252 = vmatpush2.msra.mxu0 0.0
      %1253 = vmatprep.subr.mxu0 0.0
      %1254 = vmatpush2.msra.mxu0 0.0
      %1255 = vmatprep.subr.mxu0 0.0
      %1256 = vmatpush2.msra.mxu0 0.0
      %1257 = vmatprep.subr.mxu0 0.0
      %1258 = vmatpush2.msra.mxu0 0.0
      %1259 = vmatprep.subr.mxu0 0.0
      %1260 = vmatpush2.msra.mxu0 0.0
      %1261 = vmatprep.subr.mxu0 0.0
      %1262 = vmatpush2.msra.mxu0 0.0
      %1263 = vmatprep.subr.mxu0 0.0
      %1264 = vmatpush2.msra.mxu0 0.0
      %1265 = vmatprep.mubr.f32.mxu0 0.0
      %1266 = vmatmul.mubr.f32.gmra.mxu0 %v1190
      %v1267 = vpop.f32.mrf.mxu0
      %v1268 = vadd.f32 0.0, %v1267
      %v1269 = vpop.f32.mrf.mxu0
      %1270 = vmatprep.mubr.f32.mxu0 0.0
      %1271 = vmatmul.mubr.f32.gmra.mxu0 %v1193
      %v1272 = vpop.f32.mrf.mxu0
      %v1273 = vadd.f32 0.0, %v1272
      %v1274 = vpop.f32.mrf.mxu0
      %1275 = vmatprep.mubr.f32.mxu0 0.0
      %1276 = vmatmul.mubr.f32.gmra.mxu0 %v1196
      %v1277 = vpop.f32.mrf.mxu0
      %v1278 = vadd.f32 0.0, %v1277
      %v1279 = vpop.f32.mrf.mxu0
      %1280 = vmatprep.mubr.f32.mxu0 0.0
      %1281 = vmatmul.mubr.f32.gmra.mxu0 %v1199
      %v1282 = vpop.f32.mrf.mxu0
      %v1283 = vadd.f32 0.0, %v1282
      %v1284 = vpop.f32.mrf.mxu0
      %1285 = vdwg.mxu0
      %v1286 = vadd.f32 %v1155, %v1268
      %v1287 = vadd.f32 %v1160, %v1273
      %v1288 = vadd.f32 %v1165, %v1278
      %v1289 = vadd.f32 %v1170, %v1283
      %1290 = vset.pattern.permute.xlu0 2
      %1291 = vperm.xlu0 %1290, %v169
      %v1292 = vpop.permute.xlu0 %1291
      %1294 = vset.pattern.permute.xlu0 2
      %1295 = vperm.xlu0 %1294, %v170
      %v1296 = vpop.permute.xlu0 %1295
      %1298 = vset.pattern.permute.xlu0 2
      %1299 = vperm.xlu0 %1298, %v171
      %v1300 = vpop.permute.xlu0 %1299
      %1302 = vset.pattern.permute.xlu0 2
      %1303 = vperm.xlu0 %1302, %v172
      %v1304 = vpop.permute.xlu0 %1303
      %v1306 = vadd.f32 %v1286, %v1292
      %v1307 = vadd.f32 %v1287, %v1296
      %v1308 = vadd.f32 %v1288, %v1300
      %v1309 = vadd.f32 %v1289, %v1304
      %v1310 = vmax.f32 %v1306, 0.0
      %v1311 = vmax.f32 %v1307, 0.0
      %v1312 = vmax.f32 %v1308, 0.0
      %v1313 = vmax.f32 %v1309, 0.0
      %1318 = vrot.lane.b32.xlu0 %v1310, 127
      %v1319 = vpop.permute.xlu0 %1318
      %1320 = vrot.lane.b32.xlu0 %v1311, 127
      %v1321 = vpop.permute.xlu0 %1320
      %1322 = vrot.lane.b32.xlu0 %v1312, 127
      %v1323 = vpop.permute.xlu0 %1322
      %1324 = vrot.lane.b32.xlu0 %v1313, 127
      %v1325 = vpop.permute.xlu0 %1324
      %v1330 = vmax.f32 %v1310, %v1319
      %v1331 = vmax.f32 %v1311, %v1321
      %v1332 = vmax.f32 %v1312, %v1323
      %v1333 = vmax.f32 %v1313, %v1325
      %1338 = vrot.lane.b32.xlu0 %v1330, 1
      %v1339 = vpop.permute.xlu0 %1338
      %1340 = vrot.lane.b32.xlu0 %v1331, 1
      %v1341 = vpop.permute.xlu0 %1340
      %1342 = vrot.lane.b32.xlu0 %v1332, 1
      %v1343 = vpop.permute.xlu0 %1342
      %1344 = vrot.lane.b32.xlu0 %v1333, 1
      %v1345 = vpop.permute.xlu0 %1344
      %1350 = vrot.lane.b32.xlu0 %v1310, 1
      %v1351 = vpop.permute.xlu0 %1350
      %1352 = vrot.lane.b32.xlu0 %v1311, 1
      %v1353 = vpop.permute.xlu0 %1352
      %1354 = vrot.lane.b32.xlu0 %v1312, 1
      %v1355 = vpop.permute.xlu0 %1354
      %1356 = vrot.lane.b32.xlu0 %v1313, 1
      %v1357 = vpop.permute.xlu0 %1356
      %v1362 = vsel %vm945, %v1310, %v1339
      %v1363 = vsel %vm945, %v1311, %v1341
      %v1364 = vsel %vm945, %v1312, %v1343
      %v1365 = vsel %vm945, %v1313, %v1345
      %vm1366 = vcmask 130048
      %v1367 = vsel %vm1366, %v1362, %v1351
      %v1368 = vsel %vm1366, %v1363, %v1353
      %v1369 = vsel %vm1366, %v1364, %v1355
      %v1370 = vsel %vm1366, %v1365, %v1357
      %v1371 = vlaneseq
      %v1372 = vshrl.u32 %v1371, 7
      %v1373 = vadd.s32 %v1372, 8
      %v1374 = vadd.s32 %v1372, 16
      %v1375 = vlaneseq
      %v1376 = vand.u32 %v1375, 127
      %v1377 = vmul.u32 %v1376, 2
      %vm1378 = vcmp.eq.s32.totalorder %v1372, %v1377
      %vm1379 = vcmp.eq.s32.totalorder %v1373, %v1377
      %vm1380 = vcmp.eq.s32.totalorder %v1374, %v1377
      %v1381 = vsel %vm1378, 1, 0
      %v1382 = vsel %vm1379, 1, 0
      %v1383 = vsel %vm1380, 1, 0
      %v1384 = vcvt.s32.f32 %v1381
      %v1385 = vcvt.s32.f32 %v1382
      %v1386 = vcvt.s32.f32 %v1383
      %v1388 = vsel %vm950, %v1367, 0
      %v1391 = vsel %vm950, %v1368, 0
      %v1394 = vsel %vm950, %v1369, 0
      %v1397 = vsel %vm950, %v1370, 0
      %vm1399 = vcmask 1040384
      %v1401 = vsel %vm1399, %v1386, 0
      %1403 = vmatprep.subr.mxu0 0.0
      %1404 = vmatpush1.msra.mxu0 0.0
      %1405 = vmatprep.subr.mxu0 0.0
      %1406 = vmatpush1.msra.mxu0 0.0
      %1407 = vmatprep.subr.mxu0 0.0
      %1408 = vmatpush1.msra.mxu0 0.0
      %1409 = vmatprep.subr.mxu0 0.0
      %1410 = vmatpush1.msra.mxu0 0.0
      %1411 = vmatprep.subr.mxu0 0.0
      %1412 = vmatpush1.msra.mxu0 0.0
      %1413 = vmatprep.subr.mxu0 0.0
      %1414 = vmatpush1.msra.mxu0 0.0
      %1415 = vmatprep.subr.mxu0 0.0
      %1416 = vmatpush1.msra.mxu0 0.0
      %1417 = vmatprep.subr.mxu0 0.0
      %1418 = vmatpush1.msra.mxu0 0.0
      %1419 = vmatprep.subr.mxu0 0.0
      %1420 = vmatpush1.msra.mxu0 0.0
      %1421 = vmatprep.subr.mxu0 0.0
      %1422 = vmatpush1.msra.mxu0 0.0
      %1423 = vmatprep.subr.mxu0 0.0
      %1424 = vmatpush1.msra.mxu0 0.0
      %1425 = vmatprep.subr.mxu0 0.0
      %1426 = vmatpush1.msra.mxu0 0.0
      %1427 = vmatprep.subr.mxu0 0.0
      %1428 = vmatpush1.msra.mxu0 0.0
      %1429 = vmatprep.subr.mxu0 0.0
      %1430 = vmatpush1.msra.mxu0 %v1401
      %1431 = vmatprep.subr.mxu0 0.0
      %1432 = vmatpush1.msra.mxu0 %v1385
      %1433 = vmatprep.subr.mxu0 0.0
      %1434 = vmatpush1.msra.mxu0 %v1384
      %1435 = vmatprep.subr.mxu0 0.0
      %1436 = vmatpush2.msra.mxu0 0.0
      %1437 = vmatprep.subr.mxu0 0.0
      %1438 = vmatpush2.msra.mxu0 0.0
      %1439 = vmatprep.subr.mxu0 0.0
      %1440 = vmatpush2.msra.mxu0 0.0
      %1441 = vmatprep.subr.mxu0 0.0
      %1442 = vmatpush2.msra.mxu0 0.0
      %1443 = vmatprep.subr.mxu0 0.0
      %1444 = vmatpush2.msra.mxu0 0.0
      %1445 = vmatprep.subr.mxu0 0.0
      %1446 = vmatpush2.msra.mxu0 0.0
      %1447 = vmatprep.subr.mxu0 0.0
      %1448 = vmatpush2.msra.mxu0 0.0
      %1449 = vmatprep.subr.mxu0 0.0
      %1450 = vmatpush2.msra.mxu0 0.0
      %1451 = vmatprep.subr.mxu0 0.0
      %1452 = vmatpush2.msra.mxu0 0.0
      %1453 = vmatprep.subr.mxu0 0.0
      %1454 = vmatpush2.msra.mxu0 0.0
      %1455 = vmatprep.subr.mxu0 0.0
      %1456 = vmatpush2.msra.mxu0 0.0
      %1457 = vmatprep.subr.mxu0 0.0
      %1458 = vmatpush2.msra.mxu0 0.0
      %1459 = vmatprep.subr.mxu0 0.0
      %1460 = vmatpush2.msra.mxu0 0.0
      %1461 = vmatprep.subr.mxu0 0.0
      %1462 = vmatpush2.msra.mxu0 0.0
      %1463 = vmatprep.subr.mxu0 0.0
      %1464 = vmatpush2.msra.mxu0 0.0
      %1465 = vmatprep.subr.mxu0 0.0
      %1466 = vmatpush2.msra.mxu0 0.0
      %1467 = vmatprep.mubr.f32.mxu0 0.0
      %1468 = vmatmul.mubr.f32.gmra.mxu0 %v1388
      %v1469 = vpop.f32.mrf.mxu0
      %v1470 = vadd.f32 0.0, %v1469
      %v1471 = vpop.f32.mrf.mxu0
      %1472 = vmatprep.mubr.f32.mxu0 0.0
      %1473 = vmatmul.mubr.f32.gmra.mxu0 %v1391
      %v1474 = vpop.f32.mrf.mxu0
      %v1475 = vadd.f32 0.0, %v1474
      %v1476 = vpop.f32.mrf.mxu0
      %1477 = vmatprep.mubr.f32.mxu0 0.0
      %1478 = vmatmul.mubr.f32.gmra.mxu0 %v1394
      %v1479 = vpop.f32.mrf.mxu0
      %v1480 = vadd.f32 0.0, %v1479
      %v1481 = vpop.f32.mrf.mxu0
      %1482 = vmatprep.mubr.f32.mxu0 0.0
      %1483 = vmatmul.mubr.f32.gmra.mxu0 %v1397
      %v1484 = vpop.f32.mrf.mxu0
      %v1485 = vadd.f32 0.0, %v1484
      %v1486 = vpop.f32.mrf.mxu0
      %1487 = vdwg.mxu0
      %1492 = vrot.lane.b32.xlu0 %v1470, 4
      %v1493 = vpop.permute.xlu0 %1492
      %1494 = vrot.lane.b32.xlu0 %v1475, 4
      %v1495 = vpop.permute.xlu0 %1494
      %1496 = vrot.lane.b32.xlu0 %v1480, 4
      %v1497 = vpop.permute.xlu0 %1496
      %1498 = vrot.lane.b32.xlu0 %v1485, 4
      %v1499 = vpop.permute.xlu0 %1498
      %vm1504 = vcmask 31744
      %v1505 = vsel %vm1504, 0.0, %v1493
      %v1506 = vsel %vm1504, 0.0, %v1495
      %v1507 = vsel %vm1504, 0.0, %v1497
      %v1508 = vsel %vm1504, 0.0, %v1499
      %vm1509 = vcmask 105472
      %v1510 = vsel %vm1509, %v1505, 0.0
      %v1511 = vsel %vm1509, %v1506, 0.0
      %v1512 = vsel %vm1509, %v1507, 0.0
      %v1513 = vsel %vm1509, %v1508, 0.0
      %v1514 = vld [vmem:[%s1 + $0x100] sm:$0xff]
      %v1515 = vld [vmem:[%s1 + $0x108] sm:$0xff]
      %v1516 = vld [vmem:[%s1 + $0x110] sm:$0xff]
      %v1517 = vld [vmem:[%s1 + $0x118] sm:$0xff]
      %v1518 = vld [vmem:[%s1 + $0x120] sm:$0xff]
      %v1519 = vld [vmem:[%s1 + $0x128] sm:$0xff]
      %v1520 = vld [vmem:[%s1 + $0x130] sm:$0xff]
      %v1521 = vld [vmem:[%s1 + $0x138] sm:$0xff]
      %1526 = vrot.lane.b32.xlu0 %v1510, 127
      %v1527 = vpop.permute.xlu0 %1526
      %1528 = vrot.lane.b32.xlu0 %v1511, 127
      %v1529 = vpop.permute.xlu0 %1528
      %1530 = vrot.lane.b32.xlu0 %v1512, 127
      %v1531 = vpop.permute.xlu0 %1530
      %1532 = vrot.lane.b32.xlu0 %v1513, 127
      %v1533 = vpop.permute.xlu0 %1532
      %v1539 = vsel %vm359, %v1518, 0
      %v1542 = vsel %vm359, %v1519, 0
      %v1545 = vsel %vm359, %v1520, 0
      %v1548 = vsel %vm359, %v1521, 0
      %1550 = vmatprep.subr.mxu0 0.0
      %1551 = vmatpush1.msra.mxu0 0.0
      %1552 = vmatprep.subr.mxu0 0.0
      %1553 = vmatpush1.msra.mxu0 0.0
      %1554 = vmatprep.subr.mxu0 0.0
      %1555 = vmatpush1.msra.mxu0 0.0
      %1556 = vmatprep.subr.mxu0 0.0
      %1557 = vmatpush1.msra.mxu0 0.0
      %1558 = vmatprep.subr.mxu0 0.0
      %1559 = vmatpush1.msra.mxu0 0.0
      %1560 = vmatprep.subr.mxu0 0.0
      %1561 = vmatpush1.msra.mxu0 0.0
      %1562 = vmatprep.subr.mxu0 0.0
      %1563 = vmatpush1.msra.mxu0 0.0
      %1564 = vmatprep.subr.mxu0 0.0
      %1565 = vmatpush1.msra.mxu0 0.0
      %1566 = vmatprep.subr.mxu0 0.0
      %1567 = vmatpush1.msra.mxu0 0.0
      %1568 = vmatprep.subr.mxu0 0.0
      %1569 = vmatpush1.msra.mxu0 0.0
      %1570 = vmatprep.subr.mxu0 0.0
      %1571 = vmatpush1.msra.mxu0 0.0
      %1572 = vmatprep.subr.mxu0 0.0
      %1573 = vmatpush1.msra.mxu0 0.0
      %1574 = vmatprep.subr.mxu0 0.0
      %1575 = vmatpush1.msra.mxu0 %v1533
      %1576 = vmatprep.subr.mxu0 0.0
      %1577 = vmatpush1.msra.mxu0 %v1531
      %1578 = vmatprep.subr.mxu0 0.0
      %1579 = vmatpush1.msra.mxu0 %v1529
      %1580 = vmatprep.subr.mxu0 0.0
      %1581 = vmatpush1.msra.mxu0 %v1527
      %1582 = vmatprep.subr.mxu0 0.0
      %1583 = vmatpush2.msra.mxu0 0.0
      %1584 = vmatprep.subr.mxu0 0.0
      %1585 = vmatpush2.msra.mxu0 0.0
      %1586 = vmatprep.subr.mxu0 0.0
      %1587 = vmatpush2.msra.mxu0 0.0
      %1588 = vmatprep.subr.mxu0 0.0
      %1589 = vmatpush2.msra.mxu0 0.0
      %1590 = vmatprep.subr.mxu0 0.0
      %1591 = vmatpush2.msra.mxu0 0.0
      %1592 = vmatprep.subr.mxu0 0.0
      %1593 = vmatpush2.msra.mxu0 0.0
      %1594 = vmatprep.subr.mxu0 0.0
      %1595 = vmatpush2.msra.mxu0 0.0
      %1596 = vmatprep.subr.mxu0 0.0
      %1597 = vmatpush2.msra.mxu0 0.0
      %1598 = vmatprep.subr.mxu0 0.0
      %1599 = vmatpush2.msra.mxu0 0.0
      %1600 = vmatprep.subr.mxu0 0.0
      %1601 = vmatpush2.msra.mxu0 0.0
      %1602 = vmatprep.subr.mxu0 0.0
      %1603 = vmatpush2.msra.mxu0 0.0
      %1604 = vmatprep.subr.mxu0 0.0
      %1605 = vmatpush2.msra.mxu0 0.0
      %1606 = vmatprep.subr.mxu0 0.0
      %1607 = vmatpush2.msra.mxu0 0.0
      %1608 = vmatprep.subr.mxu0 0.0
      %1609 = vmatpush2.msra.mxu0 0.0
      %1610 = vmatprep.subr.mxu0 0.0
      %1611 = vmatpush2.msra.mxu0 0.0
      %1612 = vmatprep.subr.mxu0 0.0
      %1613 = vmatpush2.msra.mxu0 0.0
      %1614 = vmatprep.mubr.f32.mxu0 0.0
      %1615 = vmatmul.mubr.f32.gmra.mxu0 %v1539
      %v1616 = vpop.f32.mrf.mxu0
      %v1617 = vadd.f32 0.0, %v1616
      %v1618 = vpop.f32.mrf.mxu0
      %1619 = vmatprep.mubr.f32.mxu0 0.0
      %1620 = vmatmul.mubr.f32.gmra.mxu0 %v1542
      %v1621 = vpop.f32.mrf.mxu0
      %v1622 = vadd.f32 0.0, %v1621
      %v1623 = vpop.f32.mrf.mxu0
      %1624 = vmatprep.mubr.f32.mxu0 0.0
      %1625 = vmatmul.mubr.f32.gmra.mxu0 %v1545
      %v1626 = vpop.f32.mrf.mxu0
      %v1627 = vadd.f32 0.0, %v1626
      %v1628 = vpop.f32.mrf.mxu0
      %1629 = vmatprep.mubr.f32.mxu0 0.0
      %1630 = vmatmul.mubr.f32.gmra.mxu0 %v1548
      %v1631 = vpop.f32.mrf.mxu0
      %v1632 = vadd.f32 0.0, %v1631
      %v1633 = vpop.f32.mrf.mxu0
      %1634 = vdwg.mxu0
      %v1636 = vsel %vm359, %v1514, 0
      %v1639 = vsel %vm359, %v1515, 0
      %v1642 = vsel %vm359, %v1516, 0
      %v1645 = vsel %vm359, %v1517, 0
      %1647 = vmatprep.subr.mxu0 0.0
      %1648 = vmatpush1.msra.mxu0 0.0
      %1649 = vmatprep.subr.mxu0 0.0
      %1650 = vmatpush1.msra.mxu0 0.0
      %1651 = vmatprep.subr.mxu0 0.0
      %1652 = vmatpush1.msra.mxu0 0.0
      %1653 = vmatprep.subr.mxu0 0.0
      %1654 = vmatpush1.msra.mxu0 0.0
      %1655 = vmatprep.subr.mxu0 0.0
      %1656 = vmatpush1.msra.mxu0 0.0
      %1657 = vmatprep.subr.mxu0 0.0
      %1658 = vmatpush1.msra.mxu0 0.0
      %1659 = vmatprep.subr.mxu0 0.0
      %1660 = vmatpush1.msra.mxu0 0.0
      %1661 = vmatprep.subr.mxu0 0.0
      %1662 = vmatpush1.msra.mxu0 0.0
      %1663 = vmatprep.subr.mxu0 0.0
      %1664 = vmatpush1.msra.mxu0 0.0
      %1665 = vmatprep.subr.mxu0 0.0
      %1666 = vmatpush1.msra.mxu0 0.0
      %1667 = vmatprep.subr.mxu0 0.0
      %1668 = vmatpush1.msra.mxu0 0.0
      %1669 = vmatprep.subr.mxu0 0.0
      %1670 = vmatpush1.msra.mxu0 0.0
      %1671 = vmatprep.subr.mxu0 0.0
      %1672 = vmatpush1.msra.mxu0 %v1513
      %1673 = vmatprep.subr.mxu0 0.0
      %1674 = vmatpush1.msra.mxu0 %v1512
      %1675 = vmatprep.subr.mxu0 0.0
      %1676 = vmatpush1.msra.mxu0 %v1511
      %1677 = vmatprep.subr.mxu0 0.0
      %1678 = vmatpush1.msra.mxu0 %v1510
      %1679 = vmatprep.subr.mxu0 0.0
      %1680 = vmatpush2.msra.mxu0 0.0
      %1681 = vmatprep.subr.mxu0 0.0
      %1682 = vmatpush2.msra.mxu0 0.0
      %1683 = vmatprep.subr.mxu0 0.0
      %1684 = vmatpush2.msra.mxu0 0.0
      %1685 = vmatprep.subr.mxu0 0.0
      %1686 = vmatpush2.msra.mxu0 0.0
      %1687 = vmatprep.subr.mxu0 0.0
      %1688 = vmatpush2.msra.mxu0 0.0
      %1689 = vmatprep.subr.mxu0 0.0
      %1690 = vmatpush2.msra.mxu0 0.0
      %1691 = vmatprep.subr.mxu0 0.0
      %1692 = vmatpush2.msra.mxu0 0.0
      %1693 = vmatprep.subr.mxu0 0.0
      %1694 = vmatpush2.msra.mxu0 0.0
      %1695 = vmatprep.subr.mxu0 0.0
      %1696 = vmatpush2.msra.mxu0 0.0
      %1697 = vmatprep.subr.mxu0 0.0
      %1698 = vmatpush2.msra.mxu0 0.0
      %1699 = vmatprep.subr.mxu0 0.0
      %1700 = vmatpush2.msra.mxu0 0.0
      %1701 = vmatprep.subr.mxu0 0.0
      %1702 = vmatpush2.msra.mxu0 0.0
      %1703 = vmatprep.subr.mxu0 0.0
      %1704 = vmatpush2.msra.mxu0 0.0
      %1705 = vmatprep.subr.mxu0 0.0
      %1706 = vmatpush2.msra.mxu0 0.0
      %1707 = vmatprep.subr.mxu0 0.0
      %1708 = vmatpush2.msra.mxu0 0.0
      %1709 = vmatprep.subr.mxu0 0.0
      %1710 = vmatpush2.msra.mxu0 0.0
      %1711 = vmatprep.mubr.f32.mxu0 0.0
      %1712 = vmatmul.mubr.f32.gmra.mxu0 %v1636
      %v1713 = vpop.f32.mrf.mxu0
      %v1714 = vadd.f32 %v1617, %v1713
      %v1715 = vpop.f32.mrf.mxu0
      %1716 = vmatprep.mubr.f32.mxu0 0.0
      %1717 = vmatmul.mubr.f32.gmra.mxu0 %v1639
      %v1718 = vpop.f32.mrf.mxu0
      %v1719 = vadd.f32 %v1622, %v1718
      %v1720 = vpop.f32.mrf.mxu0
      %1721 = vmatprep.mubr.f32.mxu0 0.0
      %1722 = vmatmul.mubr.f32.gmra.mxu0 %v1642
      %v1723 = vpop.f32.mrf.mxu0
      %v1724 = vadd.f32 %v1627, %v1723
      %v1725 = vpop.f32.mrf.mxu0
      %1726 = vmatprep.mubr.f32.mxu0 0.0
      %1727 = vmatmul.mubr.f32.gmra.mxu0 %v1645
      %v1728 = vpop.f32.mrf.mxu0
      %v1729 = vadd.f32 %v1632, %v1728
      %v1730 = vpop.f32.mrf.mxu0
      %1731 = vdwg.mxu0
      %v1732 = vld [vmem:[%s1 + $0x140] sm:$0xff]
      %v1733 = vld [vmem:[%s1 + $0x148] sm:$0xff]
      %v1734 = vld [vmem:[%s1 + $0x150] sm:$0xff]
      %v1735 = vld [vmem:[%s1 + $0x158] sm:$0xff]
      %1736 = vrot.lane.b32.xlu0 %v1510, 126
      %v1737 = vpop.permute.xlu0 %1736
      %1738 = vrot.lane.b32.xlu0 %v1511, 126
      %v1739 = vpop.permute.xlu0 %1738
      %1740 = vrot.lane.b32.xlu0 %v1512, 126
      %v1741 = vpop.permute.xlu0 %1740
      %1742 = vrot.lane.b32.xlu0 %v1513, 126
      %v1743 = vpop.permute.xlu0 %1742
      %v1749 = vsel %vm359, %v1732, 0
      %v1752 = vsel %vm359, %v1733, 0
      %v1755 = vsel %vm359, %v1734, 0
      %v1758 = vsel %vm359, %v1735, 0
      %1760 = vmatprep.subr.mxu0 0.0
      %1761 = vmatpush1.msra.mxu0 0.0
      %1762 = vmatprep.subr.mxu0 0.0
      %1763 = vmatpush1.msra.mxu0 0.0
      %1764 = vmatprep.subr.mxu0 0.0
      %1765 = vmatpush1.msra.mxu0 0.0
      %1766 = vmatprep.subr.mxu0 0.0
      %1767 = vmatpush1.msra.mxu0 0.0
      %1768 = vmatprep.subr.mxu0 0.0
      %1769 = vmatpush1.msra.mxu0 0.0
      %1770 = vmatprep.subr.mxu0 0.0
      %1771 = vmatpush1.msra.mxu0 0.0
      %1772 = vmatprep.subr.mxu0 0.0
      %1773 = vmatpush1.msra.mxu0 0.0
      %1774 = vmatprep.subr.mxu0 0.0
      %1775 = vmatpush1.msra.mxu0 0.0
      %1776 = vmatprep.subr.mxu0 0.0
      %1777 = vmatpush1.msra.mxu0 0.0
      %1778 = vmatprep.subr.mxu0 0.0
      %1779 = vmatpush1.msra.mxu0 0.0
      %1780 = vmatprep.subr.mxu0 0.0
      %1781 = vmatpush1.msra.mxu0 0.0
      %1782 = vmatprep.subr.mxu0 0.0
      %1783 = vmatpush1.msra.mxu0 0.0
      %1784 = vmatprep.subr.mxu0 0.0
      %1785 = vmatpush1.msra.mxu0 %v1743
      %1786 = vmatprep.subr.mxu0 0.0
      %1787 = vmatpush1.msra.mxu0 %v1741
      %1788 = vmatprep.subr.mxu0 0.0
      %1789 = vmatpush1.msra.mxu0 %v1739
      %1790 = vmatprep.subr.mxu0 0.0
      %1791 = vmatpush1.msra.mxu0 %v1737
      %1792 = vmatprep.subr.mxu0 0.0
      %1793 = vmatpush2.msra.mxu0 0.0
      %1794 = vmatprep.subr.mxu0 0.0
      %1795 = vmatpush2.msra.mxu0 0.0
      %1796 = vmatprep.subr.mxu0 0.0
      %1797 = vmatpush2.msra.mxu0 0.0
      %1798 = vmatprep.subr.mxu0 0.0
      %1799 = vmatpush2.msra.mxu0 0.0
      %1800 = vmatprep.subr.mxu0 0.0
      %1801 = vmatpush2.msra.mxu0 0.0
      %1802 = vmatprep.subr.mxu0 0.0
      %1803 = vmatpush2.msra.mxu0 0.0
      %1804 = vmatprep.subr.mxu0 0.0
      %1805 = vmatpush2.msra.mxu0 0.0
      %1806 = vmatprep.subr.mxu0 0.0
      %1807 = vmatpush2.msra.mxu0 0.0
      %1808 = vmatprep.subr.mxu0 0.0
      %1809 = vmatpush2.msra.mxu0 0.0
      %1810 = vmatprep.subr.mxu0 0.0
      %1811 = vmatpush2.msra.mxu0 0.0
      %1812 = vmatprep.subr.mxu0 0.0
      %1813 = vmatpush2.msra.mxu0 0.0
      %1814 = vmatprep.subr.mxu0 0.0
      %1815 = vmatpush2.msra.mxu0 0.0
      %1816 = vmatprep.subr.mxu0 0.0
      %1817 = vmatpush2.msra.mxu0 0.0
      %1818 = vmatprep.subr.mxu0 0.0
      %1819 = vmatpush2.msra.mxu0 0.0
      %1820 = vmatprep.subr.mxu0 0.0
      %1821 = vmatpush2.msra.mxu0 0.0
      %1822 = vmatprep.subr.mxu0 0.0
      %1823 = vmatpush2.msra.mxu0 0.0
      %1824 = vmatprep.mubr.f32.mxu0 0.0
      %1825 = vmatmul.mubr.f32.gmra.mxu0 %v1749
      %v1826 = vpop.f32.mrf.mxu0
      %v1827 = vadd.f32 0.0, %v1826
      %v1828 = vpop.f32.mrf.mxu0
      %1829 = vmatprep.mubr.f32.mxu0 0.0
      %1830 = vmatmul.mubr.f32.gmra.mxu0 %v1752
      %v1831 = vpop.f32.mrf.mxu0
      %v1832 = vadd.f32 0.0, %v1831
      %v1833 = vpop.f32.mrf.mxu0
      %1834 = vmatprep.mubr.f32.mxu0 0.0
      %1835 = vmatmul.mubr.f32.gmra.mxu0 %v1755
      %v1836 = vpop.f32.mrf.mxu0
      %v1837 = vadd.f32 0.0, %v1836
      %v1838 = vpop.f32.mrf.mxu0
      %1839 = vmatprep.mubr.f32.mxu0 0.0
      %1840 = vmatmul.mubr.f32.gmra.mxu0 %v1758
      %v1841 = vpop.f32.mrf.mxu0
      %v1842 = vadd.f32 0.0, %v1841
      %v1843 = vpop.f32.mrf.mxu0
      %1844 = vdwg.mxu0
      %v1845 = vadd.f32 %v1714, %v1827
      %v1846 = vadd.f32 %v1719, %v1832
      %v1847 = vadd.f32 %v1724, %v1837
      %v1848 = vadd.f32 %v1729, %v1842
      %v1849 = vld [vmem:[%s1 + $0x160] sm:$0xff]
      %v1850 = vld [vmem:[%s1 + $0x168] sm:$0xff]
      %v1851 = vld [vmem:[%s1 + $0x170] sm:$0xff]
      %v1852 = vld [vmem:[%s1 + $0x178] sm:$0xff]
      %1853 = vrot.lane.b32.xlu0 %v1510, 125
      %v1854 = vpop.permute.xlu0 %1853
      %1855 = vrot.lane.b32.xlu0 %v1511, 125
      %v1856 = vpop.permute.xlu0 %1855
      %1857 = vrot.lane.b32.xlu0 %v1512, 125
      %v1858 = vpop.permute.xlu0 %1857
      %1859 = vrot.lane.b32.xlu0 %v1513, 125
      %v1860 = vpop.permute.xlu0 %1859
      %v1866 = vsel %vm359, %v1849, 0
      %v1869 = vsel %vm359, %v1850, 0
      %v1872 = vsel %vm359, %v1851, 0
      %v1875 = vsel %vm359, %v1852, 0
      %1877 = vmatprep.subr.mxu0 0.0
      %1878 = vmatpush1.msra.mxu0 0.0
      %1879 = vmatprep.subr.mxu0 0.0
      %1880 = vmatpush1.msra.mxu0 0.0
      %1881 = vmatprep.subr.mxu0 0.0
      %1882 = vmatpush1.msra.mxu0 0.0
      %1883 = vmatprep.subr.mxu0 0.0
      %1884 = vmatpush1.msra.mxu0 0.0
      %1885 = vmatprep.subr.mxu0 0.0
      %1886 = vmatpush1.msra.mxu0 0.0
      %1887 = vmatprep.subr.mxu0 0.0
      %1888 = vmatpush1.msra.mxu0 0.0
      %1889 = vmatprep.subr.mxu0 0.0
      %1890 = vmatpush1.msra.mxu0 0.0
      %1891 = vmatprep.subr.mxu0 0.0
      %1892 = vmatpush1.msra.mxu0 0.0
      %1893 = vmatprep.subr.mxu0 0.0
      %1894 = vmatpush1.msra.mxu0 0.0
      %1895 = vmatprep.subr.mxu0 0.0
      %1896 = vmatpush1.msra.mxu0 0.0
      %1897 = vmatprep.subr.mxu0 0.0
      %1898 = vmatpush1.msra.mxu0 0.0
      %1899 = vmatprep.subr.mxu0 0.0
      %1900 = vmatpush1.msra.mxu0 0.0
      %1901 = vmatprep.subr.mxu0 0.0
      %1902 = vmatpush1.msra.mxu0 %v1860
      %1903 = vmatprep.subr.mxu0 0.0
      %1904 = vmatpush1.msra.mxu0 %v1858
      %1905 = vmatprep.subr.mxu0 0.0
      %1906 = vmatpush1.msra.mxu0 %v1856
      %1907 = vmatprep.subr.mxu0 0.0
      %1908 = vmatpush1.msra.mxu0 %v1854
      %1909 = vmatprep.subr.mxu0 0.0
      %1910 = vmatpush2.msra.mxu0 0.0
      %1911 = vmatprep.subr.mxu0 0.0
      %1912 = vmatpush2.msra.mxu0 0.0
      %1913 = vmatprep.subr.mxu0 0.0
      %1914 = vmatpush2.msra.mxu0 0.0
      %1915 = vmatprep.subr.mxu0 0.0
      %1916 = vmatpush2.msra.mxu0 0.0
      %1917 = vmatprep.subr.mxu0 0.0
      %1918 = vmatpush2.msra.mxu0 0.0
      %1919 = vmatprep.subr.mxu0 0.0
      %1920 = vmatpush2.msra.mxu0 0.0
      %1921 = vmatprep.subr.mxu0 0.0
      %1922 = vmatpush2.msra.mxu0 0.0
      %1923 = vmatprep.subr.mxu0 0.0
      %1924 = vmatpush2.msra.mxu0 0.0
      %1925 = vmatprep.subr.mxu0 0.0
      %1926 = vmatpush2.msra.mxu0 0.0
      %1927 = vmatprep.subr.mxu0 0.0
      %1928 = vmatpush2.msra.mxu0 0.0
      %1929 = vmatprep.subr.mxu0 0.0
      %1930 = vmatpush2.msra.mxu0 0.0
      %1931 = vmatprep.subr.mxu0 0.0
      %1932 = vmatpush2.msra.mxu0 0.0
      %1933 = vmatprep.subr.mxu0 0.0
      %1934 = vmatpush2.msra.mxu0 0.0
      %1935 = vmatprep.subr.mxu0 0.0
      %1936 = vmatpush2.msra.mxu0 0.0
      %1937 = vmatprep.subr.mxu0 0.0
      %1938 = vmatpush2.msra.mxu0 0.0
      %1939 = vmatprep.subr.mxu0 0.0
      %1940 = vmatpush2.msra.mxu0 0.0
      %1941 = vmatprep.mubr.f32.mxu0 0.0
      %1942 = vmatmul.mubr.f32.gmra.mxu0 %v1866
      %v1943 = vpop.f32.mrf.mxu0
      %v1944 = vadd.f32 0.0, %v1943
      %v1945 = vpop.f32.mrf.mxu0
      %1946 = vmatprep.mubr.f32.mxu0 0.0
      %1947 = vmatmul.mubr.f32.gmra.mxu0 %v1869
      %v1948 = vpop.f32.mrf.mxu0
      %v1949 = vadd.f32 0.0, %v1948
      %v1950 = vpop.f32.mrf.mxu0
      %1951 = vmatprep.mubr.f32.mxu0 0.0
      %1952 = vmatmul.mubr.f32.gmra.mxu0 %v1872
      %v1953 = vpop.f32.mrf.mxu0
      %v1954 = vadd.f32 0.0, %v1953
      %v1955 = vpop.f32.mrf.mxu0
      %1956 = vmatprep.mubr.f32.mxu0 0.0
      %1957 = vmatmul.mubr.f32.gmra.mxu0 %v1875
      %v1958 = vpop.f32.mrf.mxu0
      %v1959 = vadd.f32 0.0, %v1958
      %v1960 = vpop.f32.mrf.mxu0
      %1961 = vdwg.mxu0
      %v1962 = vadd.f32 %v1845, %v1944
      %v1963 = vadd.f32 %v1846, %v1949
      %v1964 = vadd.f32 %v1847, %v1954
      %v1965 = vadd.f32 %v1848, %v1959
      %v1966 = vld [vmem:[%s1 + $0x180] sm:$0xff]
      %v1967 = vld [vmem:[%s1 + $0x188] sm:$0xff]
      %v1968 = vld [vmem:[%s1 + $0x190] sm:$0xff]
      %v1969 = vld [vmem:[%s1 + $0x198] sm:$0xff]
      %1970 = vrot.lane.b32.xlu0 %v1510, 124
      %v1971 = vpop.permute.xlu0 %1970
      %1972 = vrot.lane.b32.xlu0 %v1511, 124
      %v1973 = vpop.permute.xlu0 %1972
      %1974 = vrot.lane.b32.xlu0 %v1512, 124
      %v1975 = vpop.permute.xlu0 %1974
      %1976 = vrot.lane.b32.xlu0 %v1513, 124
      %v1977 = vpop.permute.xlu0 %1976
      %v1983 = vsel %vm359, %v1966, 0
      %v1986 = vsel %vm359, %v1967, 0
      %v1989 = vsel %vm359, %v1968, 0
      %v1992 = vsel %vm359, %v1969, 0
      %1994 = vmatprep.subr.mxu0 0.0
      %1995 = vmatpush1.msra.mxu0 0.0
      %1996 = vmatprep.subr.mxu0 0.0
      %1997 = vmatpush1.msra.mxu0 0.0
      %1998 = vmatprep.subr.mxu0 0.0
      %1999 = vmatpush1.msra.mxu0 0.0
      %2000 = vmatprep.subr.mxu0 0.0
      %2001 = vmatpush1.msra.mxu0 0.0
      %2002 = vmatprep.subr.mxu0 0.0
      %2003 = vmatpush1.msra.mxu0 0.0
      %2004 = vmatprep.subr.mxu0 0.0
      %2005 = vmatpush1.msra.mxu0 0.0
      %2006 = vmatprep.subr.mxu0 0.0
      %2007 = vmatpush1.msra.mxu0 0.0
      %2008 = vmatprep.subr.mxu0 0.0
      %2009 = vmatpush1.msra.mxu0 0.0
      %2010 = vmatprep.subr.mxu0 0.0
      %2011 = vmatpush1.msra.mxu0 0.0
      %2012 = vmatprep.subr.mxu0 0.0
      %2013 = vmatpush1.msra.mxu0 0.0
      %2014 = vmatprep.subr.mxu0 0.0
      %2015 = vmatpush1.msra.mxu0 0.0
      %2016 = vmatprep.subr.mxu0 0.0
      %2017 = vmatpush1.msra.mxu0 0.0
      %2018 = vmatprep.subr.mxu0 0.0
      %2019 = vmatpush1.msra.mxu0 %v1977
      %2020 = vmatprep.subr.mxu0 0.0
      %2021 = vmatpush1.msra.mxu0 %v1975
      %2022 = vmatprep.subr.mxu0 0.0
      %2023 = vmatpush1.msra.mxu0 %v1973
      %2024 = vmatprep.subr.mxu0 0.0
      %2025 = vmatpush1.msra.mxu0 %v1971
      %2026 = vmatprep.subr.mxu0 0.0
      %2027 = vmatpush2.msra.mxu0 0.0
      %2028 = vmatprep.subr.mxu0 0.0
      %2029 = vmatpush2.msra.mxu0 0.0
      %2030 = vmatprep.subr.mxu0 0.0
      %2031 = vmatpush2.msra.mxu0 0.0
      %2032 = vmatprep.subr.mxu0 0.0
      %2033 = vmatpush2.msra.mxu0 0.0
      %2034 = vmatprep.subr.mxu0 0.0
      %2035 = vmatpush2.msra.mxu0 0.0
      %2036 = vmatprep.subr.mxu0 0.0
      %2037 = vmatpush2.msra.mxu0 0.0
      %2038 = vmatprep.subr.mxu0 0.0
      %2039 = vmatpush2.msra.mxu0 0.0
      %2040 = vmatprep.subr.mxu0 0.0
      %2041 = vmatpush2.msra.mxu0 0.0
      %2042 = vmatprep.subr.mxu0 0.0
      %2043 = vmatpush2.msra.mxu0 0.0
      %2044 = vmatprep.subr.mxu0 0.0
      %2045 = vmatpush2.msra.mxu0 0.0
      %2046 = vmatprep.subr.mxu0 0.0
      %2047 = vmatpush2.msra.mxu0 0.0
      %2048 = vmatprep.subr.mxu0 0.0
      %2049 = vmatpush2.msra.mxu0 0.0
      %2050 = vmatprep.subr.mxu0 0.0
      %2051 = vmatpush2.msra.mxu0 0.0
      %2052 = vmatprep.subr.mxu0 0.0
      %2053 = vmatpush2.msra.mxu0 0.0
      %2054 = vmatprep.subr.mxu0 0.0
      %2055 = vmatpush2.msra.mxu0 0.0
      %2056 = vmatprep.subr.mxu0 0.0
      %2057 = vmatpush2.msra.mxu0 0.0
      %2058 = vmatprep.mubr.f32.mxu0 0.0
      %2059 = vmatmul.mubr.f32.gmra.mxu0 %v1983
      %v2060 = vpop.f32.mrf.mxu0
      %v2061 = vadd.f32 0.0, %v2060
      %v2062 = vpop.f32.mrf.mxu0
      %2063 = vmatprep.mubr.f32.mxu0 0.0
      %2064 = vmatmul.mubr.f32.gmra.mxu0 %v1986
      %v2065 = vpop.f32.mrf.mxu0
      %v2066 = vadd.f32 0.0, %v2065
      %v2067 = vpop.f32.mrf.mxu0
      %2068 = vmatprep.mubr.f32.mxu0 0.0
      %2069 = vmatmul.mubr.f32.gmra.mxu0 %v1989
      %v2070 = vpop.f32.mrf.mxu0
      %v2071 = vadd.f32 0.0, %v2070
      %v2072 = vpop.f32.mrf.mxu0
      %2073 = vmatprep.mubr.f32.mxu0 0.0
      %2074 = vmatmul.mubr.f32.gmra.mxu0 %v1992
      %v2075 = vpop.f32.mrf.mxu0
      %v2076 = vadd.f32 0.0, %v2075
      %v2077 = vpop.f32.mrf.mxu0
      %2078 = vdwg.mxu0
      %v2079 = vadd.f32 %v1962, %v2061
      %v2080 = vadd.f32 %v1963, %v2066
      %v2081 = vadd.f32 %v1964, %v2071
      %v2082 = vadd.f32 %v1965, %v2076
      %v2083 = vld [vmem:[%s1 + $0x1a0] sm:$0xff]
      %v2084 = vld [vmem:[%s1 + $0x1a8] sm:$0xff]
      %v2085 = vld [vmem:[%s1 + $0x1b0] sm:$0xff]
      %v2086 = vld [vmem:[%s1 + $0x1b8] sm:$0xff]
      %2087 = vrot.lane.b32.xlu0 %v1510, 123
      %v2088 = vpop.permute.xlu0 %2087
      %2089 = vrot.lane.b32.xlu0 %v1511, 123
      %v2090 = vpop.permute.xlu0 %2089
      %2091 = vrot.lane.b32.xlu0 %v1512, 123
      %v2092 = vpop.permute.xlu0 %2091
      %2093 = vrot.lane.b32.xlu0 %v1513, 123
      %v2094 = vpop.permute.xlu0 %2093
      %v2100 = vsel %vm359, %v2083, 0
      %v2103 = vsel %vm359, %v2084, 0
      %v2106 = vsel %vm359, %v2085, 0
      %v2109 = vsel %vm359, %v2086, 0
      %2111 = vmatprep.subr.mxu0 0.0
      %2112 = vmatpush1.msra.mxu0 0.0
      %2113 = vmatprep.subr.mxu0 0.0
      %2114 = vmatpush1.msra.mxu0 0.0
      %2115 = vmatprep.subr.mxu0 0.0
      %2116 = vmatpush1.msra.mxu0 0.0
      %2117 = vmatprep.subr.mxu0 0.0
      %2118 = vmatpush1.msra.mxu0 0.0
      %2119 = vmatprep.subr.mxu0 0.0
      %2120 = vmatpush1.msra.mxu0 0.0
      %2121 = vmatprep.subr.mxu0 0.0
      %2122 = vmatpush1.msra.mxu0 0.0
      %2123 = vmatprep.subr.mxu0 0.0
      %2124 = vmatpush1.msra.mxu0 0.0
      %2125 = vmatprep.subr.mxu0 0.0
      %2126 = vmatpush1.msra.mxu0 0.0
      %2127 = vmatprep.subr.mxu0 0.0
      %2128 = vmatpush1.msra.mxu0 0.0
      %2129 = vmatprep.subr.mxu0 0.0
      %2130 = vmatpush1.msra.mxu0 0.0
      %2131 = vmatprep.subr.mxu0 0.0
      %2132 = vmatpush1.msra.mxu0 0.0
      %2133 = vmatprep.subr.mxu0 0.0
      %2134 = vmatpush1.msra.mxu0 0.0
      %2135 = vmatprep.subr.mxu0 0.0
      %2136 = vmatpush1.msra.mxu0 %v2094
      %2137 = vmatprep.subr.mxu0 0.0
      %2138 = vmatpush1.msra.mxu0 %v2092
      %2139 = vmatprep.subr.mxu0 0.0
      %2140 = vmatpush1.msra.mxu0 %v2090
      %2141 = vmatprep.subr.mxu0 0.0
      %2142 = vmatpush1.msra.mxu0 %v2088
      %2143 = vmatprep.subr.mxu0 0.0
      %2144 = vmatpush2.msra.mxu0 0.0
      %2145 = vmatprep.subr.mxu0 0.0
      %2146 = vmatpush2.msra.mxu0 0.0
      %2147 = vmatprep.subr.mxu0 0.0
      %2148 = vmatpush2.msra.mxu0 0.0
      %2149 = vmatprep.subr.mxu0 0.0
      %2150 = vmatpush2.msra.mxu0 0.0
      %2151 = vmatprep.subr.mxu0 0.0
      %2152 = vmatpush2.msra.mxu0 0.0
      %2153 = vmatprep.subr.mxu0 0.0
      %2154 = vmatpush2.msra.mxu0 0.0
      %2155 = vmatprep.subr.mxu0 0.0
      %2156 = vmatpush2.msra.mxu0 0.0
      %2157 = vmatprep.subr.mxu0 0.0
      %2158 = vmatpush2.msra.mxu0 0.0
      %2159 = vmatprep.subr.mxu0 0.0
      %2160 = vmatpush2.msra.mxu0 0.0
      %2161 = vmatprep.subr.mxu0 0.0
      %2162 = vmatpush2.msra.mxu0 0.0
      %2163 = vmatprep.subr.mxu0 0.0
      %2164 = vmatpush2.msra.mxu0 0.0
      %2165 = vmatprep.subr.mxu0 0.0
      %2166 = vmatpush2.msra.mxu0 0.0
      %2167 = vmatprep.subr.mxu0 0.0
      %2168 = vmatpush2.msra.mxu0 0.0
      %2169 = vmatprep.subr.mxu0 0.0
      %2170 = vmatpush2.msra.mxu0 0.0
      %2171 = vmatprep.subr.mxu0 0.0
      %2172 = vmatpush2.msra.mxu0 0.0
      %2173 = vmatprep.subr.mxu0 0.0
      %2174 = vmatpush2.msra.mxu0 0.0
      %2175 = vmatprep.mubr.f32.mxu0 0.0
      %2176 = vmatmul.mubr.f32.gmra.mxu0 %v2100
      %v2177 = vpop.f32.mrf.mxu0
      %v2178 = vadd.f32 0.0, %v2177
      %v2179 = vpop.f32.mrf.mxu0
      %2180 = vmatprep.mubr.f32.mxu0 0.0
      %2181 = vmatmul.mubr.f32.gmra.mxu0 %v2103
      %v2182 = vpop.f32.mrf.mxu0
      %v2183 = vadd.f32 0.0, %v2182
      %v2184 = vpop.f32.mrf.mxu0
      %2185 = vmatprep.mubr.f32.mxu0 0.0
      %2186 = vmatmul.mubr.f32.gmra.mxu0 %v2106
      %v2187 = vpop.f32.mrf.mxu0
      %v2188 = vadd.f32 0.0, %v2187
      %v2189 = vpop.f32.mrf.mxu0
      %2190 = vmatprep.mubr.f32.mxu0 0.0
      %2191 = vmatmul.mubr.f32.gmra.mxu0 %v2109
      %v2192 = vpop.f32.mrf.mxu0
      %v2193 = vadd.f32 0.0, %v2192
      %v2194 = vpop.f32.mrf.mxu0
      %2195 = vdwg.mxu0
      %v2196 = vadd.f32 %v2079, %v2178
      %v2197 = vadd.f32 %v2080, %v2183
      %v2198 = vadd.f32 %v2081, %v2188
      %v2199 = vadd.f32 %v2082, %v2193
      %v2200 = vld [vmem:[%s1 + $0x1c0] sm:$0xff]
      %v2201 = vld [vmem:[%s1 + $0x1c8] sm:$0xff]
      %v2202 = vld [vmem:[%s1 + $0x1d0] sm:$0xff]
      %v2203 = vld [vmem:[%s1 + $0x1d8] sm:$0xff]
      %2204 = vrot.lane.b32.xlu0 %v1510, 122
      %v2205 = vpop.permute.xlu0 %2204
      %2206 = vrot.lane.b32.xlu0 %v1511, 122
      %v2207 = vpop.permute.xlu0 %2206
      %2208 = vrot.lane.b32.xlu0 %v1512, 122
      %v2209 = vpop.permute.xlu0 %2208
      %2210 = vrot.lane.b32.xlu0 %v1513, 122
      %v2211 = vpop.permute.xlu0 %2210
      %v2217 = vsel %vm359, %v2200, 0
      %v2220 = vsel %vm359, %v2201, 0
      %v2223 = vsel %vm359, %v2202, 0
      %v2226 = vsel %vm359, %v2203, 0
      %2228 = vmatprep.subr.mxu0 0.0
      %2229 = vmatpush1.msra.mxu0 0.0
      %2230 = vmatprep.subr.mxu0 0.0
      %2231 = vmatpush1.msra.mxu0 0.0
      %2232 = vmatprep.subr.mxu0 0.0
      %2233 = vmatpush1.msra.mxu0 0.0
      %2234 = vmatprep.subr.mxu0 0.0
      %2235 = vmatpush1.msra.mxu0 0.0
      %2236 = vmatprep.subr.mxu0 0.0
      %2237 = vmatpush1.msra.mxu0 0.0
      %2238 = vmatprep.subr.mxu0 0.0
      %2239 = vmatpush1.msra.mxu0 0.0
      %2240 = vmatprep.subr.mxu0 0.0
      %2241 = vmatpush1.msra.mxu0 0.0
      %2242 = vmatprep.subr.mxu0 0.0
      %2243 = vmatpush1.msra.mxu0 0.0
      %2244 = vmatprep.subr.mxu0 0.0
      %2245 = vmatpush1.msra.mxu0 0.0
      %2246 = vmatprep.subr.mxu0 0.0
      %2247 = vmatpush1.msra.mxu0 0.0
      %2248 = vmatprep.subr.mxu0 0.0
      %2249 = vmatpush1.msra.mxu0 0.0
      %2250 = vmatprep.subr.mxu0 0.0
      %2251 = vmatpush1.msra.mxu0 0.0
      %2252 = vmatprep.subr.mxu0 0.0
      %2253 = vmatpush1.msra.mxu0 %v2211
      %2254 = vmatprep.subr.mxu0 0.0
      %2255 = vmatpush1.msra.mxu0 %v2209
      %2256 = vmatprep.subr.mxu0 0.0
      %2257 = vmatpush1.msra.mxu0 %v2207
      %2258 = vmatprep.subr.mxu0 0.0
      %2259 = vmatpush1.msra.mxu0 %v2205
      %2260 = vmatprep.subr.mxu0 0.0
      %2261 = vmatpush2.msra.mxu0 0.0
      %2262 = vmatprep.subr.mxu0 0.0
      %2263 = vmatpush2.msra.mxu0 0.0
      %2264 = vmatprep.subr.mxu0 0.0
      %2265 = vmatpush2.msra.mxu0 0.0
      %2266 = vmatprep.subr.mxu0 0.0
      %2267 = vmatpush2.msra.mxu0 0.0
      %2268 = vmatprep.subr.mxu0 0.0
      %2269 = vmatpush2.msra.mxu0 0.0
      %2270 = vmatprep.subr.mxu0 0.0
      %2271 = vmatpush2.msra.mxu0 0.0
      %2272 = vmatprep.subr.mxu0 0.0
      %2273 = vmatpush2.msra.mxu0 0.0
      %2274 = vmatprep.subr.mxu0 0.0
      %2275 = vmatpush2.msra.mxu0 0.0
      %2276 = vmatprep.subr.mxu0 0.0
      %2277 = vmatpush2.msra.mxu0 0.0
      %2278 = vmatprep.subr.mxu0 0.0
      %2279 = vmatpush2.msra.mxu0 0.0
      %2280 = vmatprep.subr.mxu0 0.0
      %2281 = vmatpush2.msra.mxu0 0.0
      %2282 = vmatprep.subr.mxu0 0.0
      %2283 = vmatpush2.msra.mxu0 0.0
      %2284 = vmatprep.subr.mxu0 0.0
      %2285 = vmatpush2.msra.mxu0 0.0
      %2286 = vmatprep.subr.mxu0 0.0
      %2287 = vmatpush2.msra.mxu0 0.0
      %2288 = vmatprep.subr.mxu0 0.0
      %2289 = vmatpush2.msra.mxu0 0.0
      %2290 = vmatprep.subr.mxu0 0.0
      %2291 = vmatpush2.msra.mxu0 0.0
      %2292 = vmatprep.mubr.f32.mxu0 0.0
      %2293 = vmatmul.mubr.f32.gmra.mxu0 %v2217
      %v2294 = vpop.f32.mrf.mxu0
      %v2295 = vadd.f32 0.0, %v2294
      %v2296 = vpop.f32.mrf.mxu0
      %2297 = vmatprep.mubr.f32.mxu0 0.0
      %2298 = vmatmul.mubr.f32.gmra.mxu0 %v2220
      %v2299 = vpop.f32.mrf.mxu0
      %v2300 = vadd.f32 0.0, %v2299
      %v2301 = vpop.f32.mrf.mxu0
      %2302 = vmatprep.mubr.f32.mxu0 0.0
      %2303 = vmatmul.mubr.f32.gmra.mxu0 %v2223
      %v2304 = vpop.f32.mrf.mxu0
      %v2305 = vadd.f32 0.0, %v2304
      %v2306 = vpop.f32.mrf.mxu0
      %2307 = vmatprep.mubr.f32.mxu0 0.0
      %2308 = vmatmul.mubr.f32.gmra.mxu0 %v2226
      %v2309 = vpop.f32.mrf.mxu0
      %v2310 = vadd.f32 0.0, %v2309
      %v2311 = vpop.f32.mrf.mxu0
      %2312 = vdwg.mxu0
      %v2313 = vadd.f32 %v2196, %v2295
      %v2314 = vadd.f32 %v2197, %v2300
      %v2315 = vadd.f32 %v2198, %v2305
      %v2316 = vadd.f32 %v2199, %v2310
      %v2317 = vld [vmem:[%s1 + $0x1e0] sm:$0xff]
      %v2318 = vld [vmem:[%s1 + $0x1e8] sm:$0xff]
      %v2319 = vld [vmem:[%s1 + $0x1f0] sm:$0xff]
      %v2320 = vld [vmem:[%s1 + $0x1f8] sm:$0xff]
      %2321 = vrot.lane.b32.xlu0 %v1510, 121
      %v2322 = vpop.permute.xlu0 %2321
      %2323 = vrot.lane.b32.xlu0 %v1511, 121
      %v2324 = vpop.permute.xlu0 %2323
      %2325 = vrot.lane.b32.xlu0 %v1512, 121
      %v2326 = vpop.permute.xlu0 %2325
      %2327 = vrot.lane.b32.xlu0 %v1513, 121
      %v2328 = vpop.permute.xlu0 %2327
      %v2334 = vsel %vm359, %v2317, 0
      %v2337 = vsel %vm359, %v2318, 0
      %v2340 = vsel %vm359, %v2319, 0
      %v2343 = vsel %vm359, %v2320, 0
      %2345 = vmatprep.subr.mxu0 0.0
      %2346 = vmatpush1.msra.mxu0 0.0
      %2347 = vmatprep.subr.mxu0 0.0
      %2348 = vmatpush1.msra.mxu0 0.0
      %2349 = vmatprep.subr.mxu0 0.0
      %2350 = vmatpush1.msra.mxu0 0.0
      %2351 = vmatprep.subr.mxu0 0.0
      %2352 = vmatpush1.msra.mxu0 0.0
      %2353 = vmatprep.subr.mxu0 0.0
      %2354 = vmatpush1.msra.mxu0 0.0
      %2355 = vmatprep.subr.mxu0 0.0
      %2356 = vmatpush1.msra.mxu0 0.0
      %2357 = vmatprep.subr.mxu0 0.0
      %2358 = vmatpush1.msra.mxu0 0.0
      %2359 = vmatprep.subr.mxu0 0.0
      %2360 = vmatpush1.msra.mxu0 0.0
      %2361 = vmatprep.subr.mxu0 0.0
      %2362 = vmatpush1.msra.mxu0 0.0
      %2363 = vmatprep.subr.mxu0 0.0
      %2364 = vmatpush1.msra.mxu0 0.0
      %2365 = vmatprep.subr.mxu0 0.0
      %2366 = vmatpush1.msra.mxu0 0.0
      %2367 = vmatprep.subr.mxu0 0.0
      %2368 = vmatpush1.msra.mxu0 0.0
      %2369 = vmatprep.subr.mxu0 0.0
      %2370 = vmatpush1.msra.mxu0 %v2328
      %2371 = vmatprep.subr.mxu0 0.0
      %2372 = vmatpush1.msra.mxu0 %v2326
      %2373 = vmatprep.subr.mxu0 0.0
      %2374 = vmatpush1.msra.mxu0 %v2324
      %2375 = vmatprep.subr.mxu0 0.0
      %2376 = vmatpush1.msra.mxu0 %v2322
      %2377 = vmatprep.subr.mxu0 0.0
      %2378 = vmatpush2.msra.mxu0 0.0
      %2379 = vmatprep.subr.mxu0 0.0
      %2380 = vmatpush2.msra.mxu0 0.0
      %2381 = vmatprep.subr.mxu0 0.0
      %2382 = vmatpush2.msra.mxu0 0.0
      %2383 = vmatprep.subr.mxu0 0.0
      %2384 = vmatpush2.msra.mxu0 0.0
      %2385 = vmatprep.subr.mxu0 0.0
      %2386 = vmatpush2.msra.mxu0 0.0
      %2387 = vmatprep.subr.mxu0 0.0
      %2388 = vmatpush2.msra.mxu0 0.0
      %2389 = vmatprep.subr.mxu0 0.0
      %2390 = vmatpush2.msra.mxu0 0.0
      %2391 = vmatprep.subr.mxu0 0.0
      %2392 = vmatpush2.msra.mxu0 0.0
      %2393 = vmatprep.subr.mxu0 0.0
      %2394 = vmatpush2.msra.mxu0 0.0
      %2395 = vmatprep.subr.mxu0 0.0
      %2396 = vmatpush2.msra.mxu0 0.0
      %2397 = vmatprep.subr.mxu0 0.0
      %2398 = vmatpush2.msra.mxu0 0.0
      %2399 = vmatprep.subr.mxu0 0.0
      %2400 = vmatpush2.msra.mxu0 0.0
      %2401 = vmatprep.subr.mxu0 0.0
      %2402 = vmatpush2.msra.mxu0 0.0
      %2403 = vmatprep.subr.mxu0 0.0
      %2404 = vmatpush2.msra.mxu0 0.0
      %2405 = vmatprep.subr.mxu0 0.0
      %2406 = vmatpush2.msra.mxu0 0.0
      %2407 = vmatprep.subr.mxu0 0.0
      %2408 = vmatpush2.msra.mxu0 0.0
      %2409 = vmatprep.mubr.f32.mxu0 0.0
      %2410 = vmatmul.mubr.f32.gmra.mxu0 %v2334
      %v2411 = vpop.f32.mrf.mxu0
      %v2412 = vadd.f32 0.0, %v2411
      %v2413 = vpop.f32.mrf.mxu0
      %2414 = vmatprep.mubr.f32.mxu0 0.0
      %2415 = vmatmul.mubr.f32.gmra.mxu0 %v2337
      %v2416 = vpop.f32.mrf.mxu0
      %v2417 = vadd.f32 0.0, %v2416
      %v2418 = vpop.f32.mrf.mxu0
      %2419 = vmatprep.mubr.f32.mxu0 0.0
      %2420 = vmatmul.mubr.f32.gmra.mxu0 %v2340
      %v2421 = vpop.f32.mrf.mxu0
      %v2422 = vadd.f32 0.0, %v2421
      %v2423 = vpop.f32.mrf.mxu0
      %2424 = vmatprep.mubr.f32.mxu0 0.0
      %2425 = vmatmul.mubr.f32.gmra.mxu0 %v2343
      %v2426 = vpop.f32.mrf.mxu0
      %v2427 = vadd.f32 0.0, %v2426
      %v2428 = vpop.f32.mrf.mxu0
      %2429 = vdwg.mxu0
      %v2430 = vadd.f32 %v2313, %v2412
      %v2431 = vadd.f32 %v2314, %v2417
      %v2432 = vadd.f32 %v2315, %v2422
      %v2433 = vadd.f32 %v2316, %v2427
      %2434 = vset.pattern.permute.xlu0 3
      %2435 = vperm.xlu0 %2434, %v169
      %v2436 = vpop.permute.xlu0 %2435
      %2438 = vset.pattern.permute.xlu0 3
      %2439 = vperm.xlu0 %2438, %v170
      %v2440 = vpop.permute.xlu0 %2439
      %2442 = vset.pattern.permute.xlu0 3
      %2443 = vperm.xlu0 %2442, %v171
      %v2444 = vpop.permute.xlu0 %2443
      %2446 = vset.pattern.permute.xlu0 3
      %2447 = vperm.xlu0 %2446, %v172
      %v2448 = vpop.permute.xlu0 %2447
      %v2450 = vadd.f32 %v2430, %v2436
      %v2451 = vadd.f32 %v2431, %v2440
      %v2452 = vadd.f32 %v2432, %v2444
      %v2453 = vadd.f32 %v2433, %v2448
      %v2454 = vmax.f32 %v2450, 0.0
      %v2455 = vmax.f32 %v2451, 0.0
      %v2456 = vmax.f32 %v2452, 0.0
      %v2457 = vmax.f32 %v2453, 0.0
      %2462 = vrot.lane.b32.xlu0 %v2454, 2
      %v2463 = vpop.permute.xlu0 %2462
      %2464 = vrot.lane.b32.xlu0 %v2455, 2
      %v2465 = vpop.permute.xlu0 %2464
      %2466 = vrot.lane.b32.xlu0 %v2456, 2
      %v2467 = vpop.permute.xlu0 %2466
      %2468 = vrot.lane.b32.xlu0 %v2457, 2
      %v2469 = vpop.permute.xlu0 %2468
      %v2474 = vsel %vm325, 0.0, %v2463
      %v2475 = vsel %vm325, 0.0, %v2465
      %v2476 = vsel %vm325, 0.0, %v2467
      %v2477 = vsel %vm325, 0.0, %v2469
      %vm2478 = vcmask 97280
      %v2479 = vsel %vm2478, %v2474, 0.0
      %v2480 = vsel %vm2478, %v2475, 0.0
      %v2481 = vsel %vm2478, %v2476, 0.0
      %v2482 = vsel %vm2478, %v2477, 0.0
      %v2483 = vld [vmem:[%s1 + $0x200] sm:$0xff]
      %v2484 = vld [vmem:[%s1 + $0x208] sm:$0xff]
      %v2485 = vld [vmem:[%s1 + $0x210] sm:$0xff]
      %v2486 = vld [vmem:[%s1 + $0x218] sm:$0xff]
      %v2487 = vld [vmem:[%s1 + $0x220] sm:$0xff]
      %v2488 = vld [vmem:[%s1 + $0x228] sm:$0xff]
      %v2489 = vld [vmem:[%s1 + $0x230] sm:$0xff]
      %v2490 = vld [vmem:[%s1 + $0x238] sm:$0xff]
      %2495 = vrot.lane.b32.xlu0 %v2479, 127
      %v2496 = vpop.permute.xlu0 %2495
      %2497 = vrot.lane.b32.xlu0 %v2480, 127
      %v2498 = vpop.permute.xlu0 %2497
      %2499 = vrot.lane.b32.xlu0 %v2481, 127
      %v2500 = vpop.permute.xlu0 %2499
      %2501 = vrot.lane.b32.xlu0 %v2482, 127
      %v2502 = vpop.permute.xlu0 %2501
      %v2508 = vsel %vm359, %v2487, 0
      %v2511 = vsel %vm359, %v2488, 0
      %v2514 = vsel %vm359, %v2489, 0
      %v2517 = vsel %vm359, %v2490, 0
      %2519 = vmatprep.subr.mxu0 0.0
      %2520 = vmatpush1.msra.mxu0 0.0
      %2521 = vmatprep.subr.mxu0 0.0
      %2522 = vmatpush1.msra.mxu0 0.0
      %2523 = vmatprep.subr.mxu0 0.0
      %2524 = vmatpush1.msra.mxu0 0.0
      %2525 = vmatprep.subr.mxu0 0.0
      %2526 = vmatpush1.msra.mxu0 0.0
      %2527 = vmatprep.subr.mxu0 0.0
      %2528 = vmatpush1.msra.mxu0 0.0
      %2529 = vmatprep.subr.mxu0 0.0
      %2530 = vmatpush1.msra.mxu0 0.0
      %2531 = vmatprep.subr.mxu0 0.0
      %2532 = vmatpush1.msra.mxu0 0.0
      %2533 = vmatprep.subr.mxu0 0.0
      %2534 = vmatpush1.msra.mxu0 0.0
      %2535 = vmatprep.subr.mxu0 0.0
      %2536 = vmatpush1.msra.mxu0 0.0
      %2537 = vmatprep.subr.mxu0 0.0
      %2538 = vmatpush1.msra.mxu0 0.0
      %2539 = vmatprep.subr.mxu0 0.0
      %2540 = vmatpush1.msra.mxu0 0.0
      %2541 = vmatprep.subr.mxu0 0.0
      %2542 = vmatpush1.msra.mxu0 0.0
      %2543 = vmatprep.subr.mxu0 0.0
      %2544 = vmatpush1.msra.mxu0 %v2502
      %2545 = vmatprep.subr.mxu0 0.0
      %2546 = vmatpush1.msra.mxu0 %v2500
      %2547 = vmatprep.subr.mxu0 0.0
      %2548 = vmatpush1.msra.mxu0 %v2498
      %2549 = vmatprep.subr.mxu0 0.0
      %2550 = vmatpush1.msra.mxu0 %v2496
      %2551 = vmatprep.subr.mxu0 0.0
      %2552 = vmatpush2.msra.mxu0 0.0
      %2553 = vmatprep.subr.mxu0 0.0
      %2554 = vmatpush2.msra.mxu0 0.0
      %2555 = vmatprep.subr.mxu0 0.0
      %2556 = vmatpush2.msra.mxu0 0.0
      %2557 = vmatprep.subr.mxu0 0.0
      %2558 = vmatpush2.msra.mxu0 0.0
      %2559 = vmatprep.subr.mxu0 0.0
      %2560 = vmatpush2.msra.mxu0 0.0
      %2561 = vmatprep.subr.mxu0 0.0
      %2562 = vmatpush2.msra.mxu0 0.0
      %2563 = vmatprep.subr.mxu0 0.0
      %2564 = vmatpush2.msra.mxu0 0.0
      %2565 = vmatprep.subr.mxu0 0.0
      %2566 = vmatpush2.msra.mxu0 0.0
      %2567 = vmatprep.subr.mxu0 0.0
      %2568 = vmatpush2.msra.mxu0 0.0
      %2569 = vmatprep.subr.mxu0 0.0
      %2570 = vmatpush2.msra.mxu0 0.0
      %2571 = vmatprep.subr.mxu0 0.0
      %2572 = vmatpush2.msra.mxu0 0.0
      %2573 = vmatprep.subr.mxu0 0.0
      %2574 = vmatpush2.msra.mxu0 0.0
      %2575 = vmatprep.subr.mxu0 0.0
      %2576 = vmatpush2.msra.mxu0 0.0
      %2577 = vmatprep.subr.mxu0 0.0
      %2578 = vmatpush2.msra.mxu0 0.0
      %2579 = vmatprep.subr.mxu0 0.0
      %2580 = vmatpush2.msra.mxu0 0.0
      %2581 = vmatprep.subr.mxu0 0.0
      %2582 = vmatpush2.msra.mxu0 0.0
      %2583 = vmatprep.mubr.f32.mxu0 0.0
      %2584 = vmatmul.mubr.f32.gmra.mxu0 %v2508
      %v2585 = vpop.f32.mrf.mxu0
      %v2586 = vadd.f32 0.0, %v2585
      %v2587 = vpop.f32.mrf.mxu0
      %2588 = vmatprep.mubr.f32.mxu0 0.0
      %2589 = vmatmul.mubr.f32.gmra.mxu0 %v2511
      %v2590 = vpop.f32.mrf.mxu0
      %v2591 = vadd.f32 0.0, %v2590
      %v2592 = vpop.f32.mrf.mxu0
      %2593 = vmatprep.mubr.f32.mxu0 0.0
      %2594 = vmatmul.mubr.f32.gmra.mxu0 %v2514
      %v2595 = vpop.f32.mrf.mxu0
      %v2596 = vadd.f32 0.0, %v2595
      %v2597 = vpop.f32.mrf.mxu0
      %2598 = vmatprep.mubr.f32.mxu0 0.0
      %2599 = vmatmul.mubr.f32.gmra.mxu0 %v2517
      %v2600 = vpop.f32.mrf.mxu0
      %v2601 = vadd.f32 0.0, %v2600
      %v2602 = vpop.f32.mrf.mxu0
      %2603 = vdwg.mxu0
      %v2605 = vsel %vm359, %v2483, 0
      %v2608 = vsel %vm359, %v2484, 0
      %v2611 = vsel %vm359, %v2485, 0
      %v2614 = vsel %vm359, %v2486, 0
      %2616 = vmatprep.subr.mxu0 0.0
      %2617 = vmatpush1.msra.mxu0 0.0
      %2618 = vmatprep.subr.mxu0 0.0
      %2619 = vmatpush1.msra.mxu0 0.0
      %2620 = vmatprep.subr.mxu0 0.0
      %2621 = vmatpush1.msra.mxu0 0.0
      %2622 = vmatprep.subr.mxu0 0.0
      %2623 = vmatpush1.msra.mxu0 0.0
      %2624 = vmatprep.subr.mxu0 0.0
      %2625 = vmatpush1.msra.mxu0 0.0
      %2626 = vmatprep.subr.mxu0 0.0
      %2627 = vmatpush1.msra.mxu0 0.0
      %2628 = vmatprep.subr.mxu0 0.0
      %2629 = vmatpush1.msra.mxu0 0.0
      %2630 = vmatprep.subr.mxu0 0.0
      %2631 = vmatpush1.msra.mxu0 0.0
      %2632 = vmatprep.subr.mxu0 0.0
      %2633 = vmatpush1.msra.mxu0 0.0
      %2634 = vmatprep.subr.mxu0 0.0
      %2635 = vmatpush1.msra.mxu0 0.0
      %2636 = vmatprep.subr.mxu0 0.0
      %2637 = vmatpush1.msra.mxu0 0.0
      %2638 = vmatprep.subr.mxu0 0.0
      %2639 = vmatpush1.msra.mxu0 0.0
      %2640 = vmatprep.subr.mxu0 0.0
      %2641 = vmatpush1.msra.mxu0 %v2482
      %2642 = vmatprep.subr.mxu0 0.0
      %2643 = vmatpush1.msra.mxu0 %v2481
      %2644 = vmatprep.subr.mxu0 0.0
      %2645 = vmatpush1.msra.mxu0 %v2480
      %2646 = vmatprep.subr.mxu0 0.0
      %2647 = vmatpush1.msra.mxu0 %v2479
      %2648 = vmatprep.subr.mxu0 0.0
      %2649 = vmatpush2.msra.mxu0 0.0
      %2650 = vmatprep.subr.mxu0 0.0
      %2651 = vmatpush2.msra.mxu0 0.0
      %2652 = vmatprep.subr.mxu0 0.0
      %2653 = vmatpush2.msra.mxu0 0.0
      %2654 = vmatprep.subr.mxu0 0.0
      %2655 = vmatpush2.msra.mxu0 0.0
      %2656 = vmatprep.subr.mxu0 0.0
      %2657 = vmatpush2.msra.mxu0 0.0
      %2658 = vmatprep.subr.mxu0 0.0
      %2659 = vmatpush2.msra.mxu0 0.0
      %2660 = vmatprep.subr.mxu0 0.0
      %2661 = vmatpush2.msra.mxu0 0.0
      %2662 = vmatprep.subr.mxu0 0.0
      %2663 = vmatpush2.msra.mxu0 0.0
      %2664 = vmatprep.subr.mxu0 0.0
      %2665 = vmatpush2.msra.mxu0 0.0
      %2666 = vmatprep.subr.mxu0 0.0
      %2667 = vmatpush2.msra.mxu0 0.0
      %2668 = vmatprep.subr.mxu0 0.0
      %2669 = vmatpush2.msra.mxu0 0.0
      %2670 = vmatprep.subr.mxu0 0.0
      %2671 = vmatpush2.msra.mxu0 0.0
      %2672 = vmatprep.subr.mxu0 0.0
      %2673 = vmatpush2.msra.mxu0 0.0
      %2674 = vmatprep.subr.mxu0 0.0
      %2675 = vmatpush2.msra.mxu0 0.0
      %2676 = vmatprep.subr.mxu0 0.0
      %2677 = vmatpush2.msra.mxu0 0.0
      %2678 = vmatprep.subr.mxu0 0.0
      %2679 = vmatpush2.msra.mxu0 0.0
      %2680 = vmatprep.mubr.f32.mxu0 0.0
      %2681 = vmatmul.mubr.f32.gmra.mxu0 %v2605
      %v2682 = vpop.f32.mrf.mxu0
      %v2683 = vadd.f32 %v2586, %v2682
      %v2684 = vpop.f32.mrf.mxu0
      %2685 = vmatprep.mubr.f32.mxu0 0.0
      %2686 = vmatmul.mubr.f32.gmra.mxu0 %v2608
      %v2687 = vpop.f32.mrf.mxu0
      %v2688 = vadd.f32 %v2591, %v2687
      %v2689 = vpop.f32.mrf.mxu0
      %2690 = vmatprep.mubr.f32.mxu0 0.0
      %2691 = vmatmul.mubr.f32.gmra.mxu0 %v2611
      %v2692 = vpop.f32.mrf.mxu0
      %v2693 = vadd.f32 %v2596, %v2692
      %v2694 = vpop.f32.mrf.mxu0
      %2695 = vmatprep.mubr.f32.mxu0 0.0
      %2696 = vmatmul.mubr.f32.gmra.mxu0 %v2614
      %v2697 = vpop.f32.mrf.mxu0
      %v2698 = vadd.f32 %v2601, %v2697
      %v2699 = vpop.f32.mrf.mxu0
      %2700 = vdwg.mxu0
      %v2701 = vld [vmem:[%s1 + $0x240] sm:$0xff]
      %v2702 = vld [vmem:[%s1 + $0x248] sm:$0xff]
      %v2703 = vld [vmem:[%s1 + $0x250] sm:$0xff]
      %v2704 = vld [vmem:[%s1 + $0x258] sm:$0xff]
      %2705 = vrot.lane.b32.xlu0 %v2479, 126
      %v2706 = vpop.permute.xlu0 %2705
      %2707 = vrot.lane.b32.xlu0 %v2480, 126
      %v2708 = vpop.permute.xlu0 %2707
      %2709 = vrot.lane.b32.xlu0 %v2481, 126
      %v2710 = vpop.permute.xlu0 %2709
      %2711 = vrot.lane.b32.xlu0 %v2482, 126
      %v2712 = vpop.permute.xlu0 %2711
      %v2718 = vsel %vm359, %v2701, 0
      %v2721 = vsel %vm359, %v2702, 0
      %v2724 = vsel %vm359, %v2703, 0
      %v2727 = vsel %vm359, %v2704, 0
      %2729 = vmatprep.subr.mxu0 0.0
      %2730 = vmatpush1.msra.mxu0 0.0
      %2731 = vmatprep.subr.mxu0 0.0
      %2732 = vmatpush1.msra.mxu0 0.0
      %2733 = vmatprep.subr.mxu0 0.0
      %2734 = vmatpush1.msra.mxu0 0.0
      %2735 = vmatprep.subr.mxu0 0.0
      %2736 = vmatpush1.msra.mxu0 0.0
      %2737 = vmatprep.subr.mxu0 0.0
      %2738 = vmatpush1.msra.mxu0 0.0
      %2739 = vmatprep.subr.mxu0 0.0
      %2740 = vmatpush1.msra.mxu0 0.0
      %2741 = vmatprep.subr.mxu0 0.0
      %2742 = vmatpush1.msra.mxu0 0.0
      %2743 = vmatprep.subr.mxu0 0.0
      %2744 = vmatpush1.msra.mxu0 0.0
      %2745 = vmatprep.subr.mxu0 0.0
      %2746 = vmatpush1.msra.mxu0 0.0
      %2747 = vmatprep.subr.mxu0 0.0
      %2748 = vmatpush1.msra.mxu0 0.0
      %2749 = vmatprep.subr.mxu0 0.0
      %2750 = vmatpush1.msra.mxu0 0.0
      %2751 = vmatprep.subr.mxu0 0.0
      %2752 = vmatpush1.msra.mxu0 0.0
      %2753 = vmatprep.subr.mxu0 0.0
      %2754 = vmatpush1.msra.mxu0 %v2712
      %2755 = vmatprep.subr.mxu0 0.0
      %2756 = vmatpush1.msra.mxu0 %v2710
      %2757 = vmatprep.subr.mxu0 0.0
      %2758 = vmatpush1.msra.mxu0 %v2708
      %2759 = vmatprep.subr.mxu0 0.0
      %2760 = vmatpush1.msra.mxu0 %v2706
      %2761 = vmatprep.subr.mxu0 0.0
      %2762 = vmatpush2.msra.mxu0 0.0
      %2763 = vmatprep.subr.mxu0 0.0
      %2764 = vmatpush2.msra.mxu0 0.0
      %2765 = vmatprep.subr.mxu0 0.0
      %2766 = vmatpush2.msra.mxu0 0.0
      %2767 = vmatprep.subr.mxu0 0.0
      %2768 = vmatpush2.msra.mxu0 0.0
      %2769 = vmatprep.subr.mxu0 0.0
      %2770 = vmatpush2.msra.mxu0 0.0
      %2771 = vmatprep.subr.mxu0 0.0
      %2772 = vmatpush2.msra.mxu0 0.0
      %2773 = vmatprep.subr.mxu0 0.0
      %2774 = vmatpush2.msra.mxu0 0.0
      %2775 = vmatprep.subr.mxu0 0.0
      %2776 = vmatpush2.msra.mxu0 0.0
      %2777 = vmatprep.subr.mxu0 0.0
      %2778 = vmatpush2.msra.mxu0 0.0
      %2779 = vmatprep.subr.mxu0 0.0
      %2780 = vmatpush2.msra.mxu0 0.0
      %2781 = vmatprep.subr.mxu0 0.0
      %2782 = vmatpush2.msra.mxu0 0.0
      %2783 = vmatprep.subr.mxu0 0.0
      %2784 = vmatpush2.msra.mxu0 0.0
      %2785 = vmatprep.subr.mxu0 0.0
      %2786 = vmatpush2.msra.mxu0 0.0
      %2787 = vmatprep.subr.mxu0 0.0
      %2788 = vmatpush2.msra.mxu0 0.0
      %2789 = vmatprep.subr.mxu0 0.0
      %2790 = vmatpush2.msra.mxu0 0.0
      %2791 = vmatprep.subr.mxu0 0.0
      %2792 = vmatpush2.msra.mxu0 0.0
      %2793 = vmatprep.mubr.f32.mxu0 0.0
      %2794 = vmatmul.mubr.f32.gmra.mxu0 %v2718
      %v2795 = vpop.f32.mrf.mxu0
      %v2796 = vadd.f32 0.0, %v2795
      %v2797 = vpop.f32.mrf.mxu0
      %2798 = vmatprep.mubr.f32.mxu0 0.0
      %2799 = vmatmul.mubr.f32.gmra.mxu0 %v2721
      %v2800 = vpop.f32.mrf.mxu0
      %v2801 = vadd.f32 0.0, %v2800
      %v2802 = vpop.f32.mrf.mxu0
      %2803 = vmatprep.mubr.f32.mxu0 0.0
      %2804 = vmatmul.mubr.f32.gmra.mxu0 %v2724
      %v2805 = vpop.f32.mrf.mxu0
      %v2806 = vadd.f32 0.0, %v2805
      %v2807 = vpop.f32.mrf.mxu0
      %2808 = vmatprep.mubr.f32.mxu0 0.0
      %2809 = vmatmul.mubr.f32.gmra.mxu0 %v2727
      %v2810 = vpop.f32.mrf.mxu0
      %v2811 = vadd.f32 0.0, %v2810
      %v2812 = vpop.f32.mrf.mxu0
      %2813 = vdwg.mxu0
      %v2814 = vadd.f32 %v2683, %v2796
      %v2815 = vadd.f32 %v2688, %v2801
      %v2816 = vadd.f32 %v2693, %v2806
      %v2817 = vadd.f32 %v2698, %v2811
      %v2818 = vld [vmem:[%s1 + $0x260] sm:$0xff]
      %v2819 = vld [vmem:[%s1 + $0x268] sm:$0xff]
      %v2820 = vld [vmem:[%s1 + $0x270] sm:$0xff]
      %v2821 = vld [vmem:[%s1 + $0x278] sm:$0xff]
      %2822 = vrot.lane.b32.xlu0 %v2479, 125
      %v2823 = vpop.permute.xlu0 %2822
      %2824 = vrot.lane.b32.xlu0 %v2480, 125
      %v2825 = vpop.permute.xlu0 %2824
      %2826 = vrot.lane.b32.xlu0 %v2481, 125
      %v2827 = vpop.permute.xlu0 %2826
      %2828 = vrot.lane.b32.xlu0 %v2482, 125
      %v2829 = vpop.permute.xlu0 %2828
      %v2835 = vsel %vm359, %v2818, 0
      %v2838 = vsel %vm359, %v2819, 0
      %v2841 = vsel %vm359, %v2820, 0
      %v2844 = vsel %vm359, %v2821, 0
      %2846 = vmatprep.subr.mxu0 0.0
      %2847 = vmatpush1.msra.mxu0 0.0
      %2848 = vmatprep.subr.mxu0 0.0
      %2849 = vmatpush1.msra.mxu0 0.0
      %2850 = vmatprep.subr.mxu0 0.0
      %2851 = vmatpush1.msra.mxu0 0.0
      %2852 = vmatprep.subr.mxu0 0.0
      %2853 = vmatpush1.msra.mxu0 0.0
      %2854 = vmatprep.subr.mxu0 0.0
      %2855 = vmatpush1.msra.mxu0 0.0
      %2856 = vmatprep.subr.mxu0 0.0
      %2857 = vmatpush1.msra.mxu0 0.0
      %2858 = vmatprep.subr.mxu0 0.0
      %2859 = vmatpush1.msra.mxu0 0.0
      %2860 = vmatprep.subr.mxu0 0.0
      %2861 = vmatpush1.msra.mxu0 0.0
      %2862 = vmatprep.subr.mxu0 0.0
      %2863 = vmatpush1.msra.mxu0 0.0
      %2864 = vmatprep.subr.mxu0 0.0
      %2865 = vmatpush1.msra.mxu0 0.0
      %2866 = vmatprep.subr.mxu0 0.0
      %2867 = vmatpush1.msra.mxu0 0.0
      %2868 = vmatprep.subr.mxu0 0.0
      %2869 = vmatpush1.msra.mxu0 0.0
      %2870 = vmatprep.subr.mxu0 0.0
      %2871 = vmatpush1.msra.mxu0 %v2829
      %2872 = vmatprep.subr.mxu0 0.0
      %2873 = vmatpush1.msra.mxu0 %v2827
      %2874 = vmatprep.subr.mxu0 0.0
      %2875 = vmatpush1.msra.mxu0 %v2825
      %2876 = vmatprep.subr.mxu0 0.0
      %2877 = vmatpush1.msra.mxu0 %v2823
      %2878 = vmatprep.subr.mxu0 0.0
      %2879 = vmatpush2.msra.mxu0 0.0
      %2880 = vmatprep.subr.mxu0 0.0
      %2881 = vmatpush2.msra.mxu0 0.0
      %2882 = vmatprep.subr.mxu0 0.0
      %2883 = vmatpush2.msra.mxu0 0.0
      %2884 = vmatprep.subr.mxu0 0.0
      %2885 = vmatpush2.msra.mxu0 0.0
      %2886 = vmatprep.subr.mxu0 0.0
      %2887 = vmatpush2.msra.mxu0 0.0
      %2888 = vmatprep.subr.mxu0 0.0
      %2889 = vmatpush2.msra.mxu0 0.0
      %2890 = vmatprep.subr.mxu0 0.0
      %2891 = vmatpush2.msra.mxu0 0.0
      %2892 = vmatprep.subr.mxu0 0.0
      %2893 = vmatpush2.msra.mxu0 0.0
      %2894 = vmatprep.subr.mxu0 0.0
      %2895 = vmatpush2.msra.mxu0 0.0
      %2896 = vmatprep.subr.mxu0 0.0
      %2897 = vmatpush2.msra.mxu0 0.0
      %2898 = vmatprep.subr.mxu0 0.0
      %2899 = vmatpush2.msra.mxu0 0.0
      %2900 = vmatprep.subr.mxu0 0.0
      %2901 = vmatpush2.msra.mxu0 0.0
      %2902 = vmatprep.subr.mxu0 0.0
      %2903 = vmatpush2.msra.mxu0 0.0
      %2904 = vmatprep.subr.mxu0 0.0
      %2905 = vmatpush2.msra.mxu0 0.0
      %2906 = vmatprep.subr.mxu0 0.0
      %2907 = vmatpush2.msra.mxu0 0.0
      %2908 = vmatprep.subr.mxu0 0.0
      %2909 = vmatpush2.msra.mxu0 0.0
      %2910 = vmatprep.mubr.f32.mxu0 0.0
      %2911 = vmatmul.mubr.f32.gmra.mxu0 %v2835
      %v2912 = vpop.f32.mrf.mxu0
      %v2913 = vadd.f32 0.0, %v2912
      %v2914 = vpop.f32.mrf.mxu0
      %2915 = vmatprep.mubr.f32.mxu0 0.0
      %2916 = vmatmul.mubr.f32.gmra.mxu0 %v2838
      %v2917 = vpop.f32.mrf.mxu0
      %v2918 = vadd.f32 0.0, %v2917
      %v2919 = vpop.f32.mrf.mxu0
      %2920 = vmatprep.mubr.f32.mxu0 0.0
      %2921 = vmatmul.mubr.f32.gmra.mxu0 %v2841
      %v2922 = vpop.f32.mrf.mxu0
      %v2923 = vadd.f32 0.0, %v2922
      %v2924 = vpop.f32.mrf.mxu0
      %2925 = vmatprep.mubr.f32.mxu0 0.0
      %2926 = vmatmul.mubr.f32.gmra.mxu0 %v2844
      %v2927 = vpop.f32.mrf.mxu0
      %v2928 = vadd.f32 0.0, %v2927
      %v2929 = vpop.f32.mrf.mxu0
      %2930 = vdwg.mxu0
      %v2931 = vadd.f32 %v2814, %v2913
      %v2932 = vadd.f32 %v2815, %v2918
      %v2933 = vadd.f32 %v2816, %v2923
      %v2934 = vadd.f32 %v2817, %v2928
      %v2935 = vld [vmem:[%s1 + $0x280] sm:$0xff]
      %v2936 = vld [vmem:[%s1 + $0x288] sm:$0xff]
      %v2937 = vld [vmem:[%s1 + $0x290] sm:$0xff]
      %v2938 = vld [vmem:[%s1 + $0x298] sm:$0xff]
      %2939 = vrot.lane.b32.xlu0 %v2479, 124
      %v2940 = vpop.permute.xlu0 %2939
      %2941 = vrot.lane.b32.xlu0 %v2480, 124
      %v2942 = vpop.permute.xlu0 %2941
      %2943 = vrot.lane.b32.xlu0 %v2481, 124
      %v2944 = vpop.permute.xlu0 %2943
      %2945 = vrot.lane.b32.xlu0 %v2482, 124
      %v2946 = vpop.permute.xlu0 %2945
      %v2952 = vsel %vm359, %v2935, 0
      %v2955 = vsel %vm359, %v2936, 0
      %v2958 = vsel %vm359, %v2937, 0
      %v2961 = vsel %vm359, %v2938, 0
      %2963 = vmatprep.subr.mxu0 0.0
      %2964 = vmatpush1.msra.mxu0 0.0
      %2965 = vmatprep.subr.mxu0 0.0
      %2966 = vmatpush1.msra.mxu0 0.0
      %2967 = vmatprep.subr.mxu0 0.0
      %2968 = vmatpush1.msra.mxu0 0.0
      %2969 = vmatprep.subr.mxu0 0.0
      %2970 = vmatpush1.msra.mxu0 0.0
      %2971 = vmatprep.subr.mxu0 0.0
      %2972 = vmatpush1.msra.mxu0 0.0
      %2973 = vmatprep.subr.mxu0 0.0
      %2974 = vmatpush1.msra.mxu0 0.0
      %2975 = vmatprep.subr.mxu0 0.0
      %2976 = vmatpush1.msra.mxu0 0.0
      %2977 = vmatprep.subr.mxu0 0.0
      %2978 = vmatpush1.msra.mxu0 0.0
      %2979 = vmatprep.subr.mxu0 0.0
      %2980 = vmatpush1.msra.mxu0 0.0
      %2981 = vmatprep.subr.mxu0 0.0
      %2982 = vmatpush1.msra.mxu0 0.0
      %2983 = vmatprep.subr.mxu0 0.0
      %2984 = vmatpush1.msra.mxu0 0.0
      %2985 = vmatprep.subr.mxu0 0.0
      %2986 = vmatpush1.msra.mxu0 0.0
      %2987 = vmatprep.subr.mxu0 0.0
      %2988 = vmatpush1.msra.mxu0 %v2946
      %2989 = vmatprep.subr.mxu0 0.0
      %2990 = vmatpush1.msra.mxu0 %v2944
      %2991 = vmatprep.subr.mxu0 0.0
      %2992 = vmatpush1.msra.mxu0 %v2942
      %2993 = vmatprep.subr.mxu0 0.0
      %2994 = vmatpush1.msra.mxu0 %v2940
      %2995 = vmatprep.subr.mxu0 0.0
      %2996 = vmatpush2.msra.mxu0 0.0
      %2997 = vmatprep.subr.mxu0 0.0
      %2998 = vmatpush2.msra.mxu0 0.0
      %2999 = vmatprep.subr.mxu0 0.0
      %3000 = vmatpush2.msra.mxu0 0.0
      %3001 = vmatprep.subr.mxu0 0.0
      %3002 = vmatpush2.msra.mxu0 0.0
      %3003 = vmatprep.subr.mxu0 0.0
      %3004 = vmatpush2.msra.mxu0 0.0
      %3005 = vmatprep.subr.mxu0 0.0
      %3006 = vmatpush2.msra.mxu0 0.0
      %3007 = vmatprep.subr.mxu0 0.0
      %3008 = vmatpush2.msra.mxu0 0.0
      %3009 = vmatprep.subr.mxu0 0.0
      %3010 = vmatpush2.msra.mxu0 0.0
      %3011 = vmatprep.subr.mxu0 0.0
      %3012 = vmatpush2.msra.mxu0 0.0
      %3013 = vmatprep.subr.mxu0 0.0
      %3014 = vmatpush2.msra.mxu0 0.0
      %3015 = vmatprep.subr.mxu0 0.0
      %3016 = vmatpush2.msra.mxu0 0.0
      %3017 = vmatprep.subr.mxu0 0.0
      %3018 = vmatpush2.msra.mxu0 0.0
      %3019 = vmatprep.subr.mxu0 0.0
      %3020 = vmatpush2.msra.mxu0 0.0
      %3021 = vmatprep.subr.mxu0 0.0
      %3022 = vmatpush2.msra.mxu0 0.0
      %3023 = vmatprep.subr.mxu0 0.0
      %3024 = vmatpush2.msra.mxu0 0.0
      %3025 = vmatprep.subr.mxu0 0.0
      %3026 = vmatpush2.msra.mxu0 0.0
      %3027 = vmatprep.mubr.f32.mxu0 0.0
      %3028 = vmatmul.mubr.f32.gmra.mxu0 %v2952
      %v3029 = vpop.f32.mrf.mxu0
      %v3030 = vadd.f32 0.0, %v3029
      %v3031 = vpop.f32.mrf.mxu0
      %3032 = vmatprep.mubr.f32.mxu0 0.0
      %3033 = vmatmul.mubr.f32.gmra.mxu0 %v2955
      %v3034 = vpop.f32.mrf.mxu0
      %v3035 = vadd.f32 0.0, %v3034
      %v3036 = vpop.f32.mrf.mxu0
      %3037 = vmatprep.mubr.f32.mxu0 0.0
      %3038 = vmatmul.mubr.f32.gmra.mxu0 %v2958
      %v3039 = vpop.f32.mrf.mxu0
      %v3040 = vadd.f32 0.0, %v3039
      %v3041 = vpop.f32.mrf.mxu0
      %3042 = vmatprep.mubr.f32.mxu0 0.0
      %3043 = vmatmul.mubr.f32.gmra.mxu0 %v2961
      %v3044 = vpop.f32.mrf.mxu0
      %v3045 = vadd.f32 0.0, %v3044
      %v3046 = vpop.f32.mrf.mxu0
      %3047 = vdwg.mxu0
      %v3048 = vadd.f32 %v2931, %v3030
      %v3049 = vadd.f32 %v2932, %v3035
      %v3050 = vadd.f32 %v2933, %v3040
      %v3051 = vadd.f32 %v2934, %v3045
      %3052 = vset.pattern.permute.xlu0 4
      %3053 = vperm.xlu0 %3052, %v169
      %v3054 = vpop.permute.xlu0 %3053
      %3056 = vset.pattern.permute.xlu0 4
      %3057 = vperm.xlu0 %3056, %v170
      %v3058 = vpop.permute.xlu0 %3057
      %3060 = vset.pattern.permute.xlu0 4
      %3061 = vperm.xlu0 %3060, %v171
      %v3062 = vpop.permute.xlu0 %3061
      %3064 = vset.pattern.permute.xlu0 4
      %3065 = vperm.xlu0 %3064, %v172
      %v3066 = vpop.permute.xlu0 %3065
      %v3068 = vadd.f32 %v3048, %v3054
      %v3069 = vadd.f32 %v3049, %v3058
      %v3070 = vadd.f32 %v3050, %v3062
      %v3071 = vadd.f32 %v3051, %v3066
      %v3072 = vmax.f32 %v3068, 0.0
      %v3073 = vmax.f32 %v3069, 0.0
      %v3074 = vmax.f32 %v3070, 0.0
      %v3075 = vmax.f32 %v3071, 0.0
      %3080 = vrot.lane.b32.xlu0 %v3072, 127
      %v3081 = vpop.permute.xlu0 %3080
      %3082 = vrot.lane.b32.xlu0 %v3073, 127
      %v3083 = vpop.permute.xlu0 %3082
      %3084 = vrot.lane.b32.xlu0 %v3074, 127
      %v3085 = vpop.permute.xlu0 %3084
      %3086 = vrot.lane.b32.xlu0 %v3075, 127
      %v3087 = vpop.permute.xlu0 %3086
      %v3092 = vmax.f32 %v3072, %v3081
      %v3093 = vmax.f32 %v3073, %v3083
      %v3094 = vmax.f32 %v3074, %v3085
      %v3095 = vmax.f32 %v3075, %v3087
      %3100 = vrot.lane.b32.xlu0 %v3092, 1
      %v3101 = vpop.permute.xlu0 %3100
      %3102 = vrot.lane.b32.xlu0 %v3093, 1
      %v3103 = vpop.permute.xlu0 %3102
      %3104 = vrot.lane.b32.xlu0 %v3094, 1
      %v3105 = vpop.permute.xlu0 %3104
      %3106 = vrot.lane.b32.xlu0 %v3095, 1
      %v3107 = vpop.permute.xlu0 %3106
      %3112 = vrot.lane.b32.xlu0 %v3072, 1
      %v3113 = vpop.permute.xlu0 %3112
      %3114 = vrot.lane.b32.xlu0 %v3073, 1
      %v3115 = vpop.permute.xlu0 %3114
      %3116 = vrot.lane.b32.xlu0 %v3074, 1
      %v3117 = vpop.permute.xlu0 %3116
      %3118 = vrot.lane.b32.xlu0 %v3075, 1
      %v3119 = vpop.permute.xlu0 %3118
      %v3124 = vsel %vm945, %v3072, %v3101
      %v3125 = vsel %vm945, %v3073, %v3103
      %v3126 = vsel %vm945, %v3074, %v3105
      %v3127 = vsel %vm945, %v3075, %v3107
      %vm3128 = vcmask 80896
      %v3129 = vsel %vm3128, %v3124, %v3113
      %v3130 = vsel %vm3128, %v3125, %v3115
      %v3131 = vsel %vm3128, %v3126, %v3117
      %v3132 = vsel %vm3128, %v3127, %v3119
      %vm3133 = vcmask 89088
      %v3135 = vsel %vm3133, %v3129, 0
      %v3138 = vsel %vm3133, %v3130, 0
      %v3141 = vsel %vm3133, %v3131, 0
      %v3144 = vsel %vm3133, %v3132, 0
      %vm3146 = vcmask 1042432
      %v3148 = vsel %vm3146, %v1385, 0
      %3150 = vmatprep.subr.mxu0 0.0
      %3151 = vmatpush1.msra.mxu0 0.0
      %3152 = vmatprep.subr.mxu0 0.0
      %3153 = vmatpush1.msra.mxu0 0.0
      %3154 = vmatprep.subr.mxu0 0.0
      %3155 = vmatpush1.msra.mxu0 0.0
      %3156 = vmatprep.subr.mxu0 0.0
      %3157 = vmatpush1.msra.mxu0 0.0
      %3158 = vmatprep.subr.mxu0 0.0
      %3159 = vmatpush1.msra.mxu0 0.0
      %3160 = vmatprep.subr.mxu0 0.0
      %3161 = vmatpush1.msra.mxu0 0.0
      %3162 = vmatprep.subr.mxu0 0.0
      %3163 = vmatpush1.msra.mxu0 0.0
      %3164 = vmatprep.subr.mxu0 0.0
      %3165 = vmatpush1.msra.mxu0 0.0
      %3166 = vmatprep.subr.mxu0 0.0
      %3167 = vmatpush1.msra.mxu0 0.0
      %3168 = vmatprep.subr.mxu0 0.0
      %3169 = vmatpush1.msra.mxu0 0.0
      %3170 = vmatprep.subr.mxu0 0.0
      %3171 = vmatpush1.msra.mxu0 0.0
      %3172 = vmatprep.subr.mxu0 0.0
      %3173 = vmatpush1.msra.mxu0 0.0
      %3174 = vmatprep.subr.mxu0 0.0
      %3175 = vmatpush1.msra.mxu0 0.0
      %3176 = vmatprep.subr.mxu0 0.0
      %3177 = vmatpush1.msra.mxu0 0.0
      %3178 = vmatprep.subr.mxu0 0.0
      %3179 = vmatpush1.msra.mxu0 %v3148
      %3180 = vmatprep.subr.mxu0 0.0
      %3181 = vmatpush1.msra.mxu0 %v1384
      %3182 = vmatprep.subr.mxu0 0.0
      %3183 = vmatpush2.msra.mxu0 0.0
      %3184 = vmatprep.subr.mxu0 0.0
      %3185 = vmatpush2.msra.mxu0 0.0
      %3186 = vmatprep.subr.mxu0 0.0
      %3187 = vmatpush2.msra.mxu0 0.0
      %3188 = vmatprep.subr.mxu0 0.0
      %3189 = vmatpush2.msra.mxu0 0.0
      %3190 = vmatprep.subr.mxu0 0.0
      %3191 = vmatpush2.msra.mxu0 0.0
      %3192 = vmatprep.subr.mxu0 0.0
      %3193 = vmatpush2.msra.mxu0 0.0
      %3194 = vmatprep.subr.mxu0 0.0
      %3195 = vmatpush2.msra.mxu0 0.0
      %3196 = vmatprep.subr.mxu0 0.0
      %3197 = vmatpush2.msra.mxu0 0.0
      %3198 = vmatprep.subr.mxu0 0.0
      %3199 = vmatpush2.msra.mxu0 0.0
      %3200 = vmatprep.subr.mxu0 0.0
      %3201 = vmatpush2.msra.mxu0 0.0
      %3202 = vmatprep.subr.mxu0 0.0
      %3203 = vmatpush2.msra.mxu0 0.0
      %3204 = vmatprep.subr.mxu0 0.0
      %3205 = vmatpush2.msra.mxu0 0.0
      %3206 = vmatprep.subr.mxu0 0.0
      %3207 = vmatpush2.msra.mxu0 0.0
      %3208 = vmatprep.subr.mxu0 0.0
      %3209 = vmatpush2.msra.mxu0 0.0
      %3210 = vmatprep.subr.mxu0 0.0
      %3211 = vmatpush2.msra.mxu0 0.0
      %3212 = vmatprep.subr.mxu0 0.0
      %3213 = vmatpush2.msra.mxu0 0.0
      %3214 = vmatprep.mubr.f32.mxu0 0.0
      %3215 = vmatmul.mubr.f32.gmra.mxu0 %v3135
      %v3216 = vpop.f32.mrf.mxu0
      %v3217 = vadd.f32 0.0, %v3216
      %v3218 = vpop.f32.mrf.mxu0
      %3219 = vmatprep.mubr.f32.mxu0 0.0
      %3220 = vmatmul.mubr.f32.gmra.mxu0 %v3138
      %v3221 = vpop.f32.mrf.mxu0
      %v3222 = vadd.f32 0.0, %v3221
      %v3223 = vpop.f32.mrf.mxu0
      %3224 = vmatprep.mubr.f32.mxu0 0.0
      %3225 = vmatmul.mubr.f32.gmra.mxu0 %v3141
      %v3226 = vpop.f32.mrf.mxu0
      %v3227 = vadd.f32 0.0, %v3226
      %v3228 = vpop.f32.mrf.mxu0
      %3229 = vmatprep.mubr.f32.mxu0 0.0
      %3230 = vmatmul.mubr.f32.gmra.mxu0 %v3144
      %v3231 = vpop.f32.mrf.mxu0
      %v3232 = vadd.f32 0.0, %v3231
      %v3233 = vpop.f32.mrf.mxu0
      %3234 = vdwg.mxu0
      %3239 = vrot.lane.b32.xlu0 %v3217, 4
      %v3240 = vpop.permute.xlu0 %3239
      %3241 = vrot.lane.b32.xlu0 %v3222, 4
      %v3242 = vpop.permute.xlu0 %3241
      %3243 = vrot.lane.b32.xlu0 %v3227, 4
      %v3244 = vpop.permute.xlu0 %3243
      %3245 = vrot.lane.b32.xlu0 %v3232, 4
      %v3246 = vpop.permute.xlu0 %3245
      %v3251 = vsel %vm1504, 0.0, %v3240
      %v3252 = vsel %vm1504, 0.0, %v3242
      %v3253 = vsel %vm1504, 0.0, %v3244
      %v3254 = vsel %vm1504, 0.0, %v3246
      %v3255 = vsel %vm3128, %v3251, 0.0
      %v3256 = vsel %vm3128, %v3252, 0.0
      %v3257 = vsel %vm3128, %v3253, 0.0
      %v3258 = vsel %vm3128, %v3254, 0.0
      %v3259 = vld [vmem:[%s1 + $0x2a0] sm:$0xff]
      %v3260 = vld [vmem:[%s1 + $0x2a8] sm:$0xff]
      %v3261 = vld [vmem:[%s1 + $0x2b0] sm:$0xff]
      %v3262 = vld [vmem:[%s1 + $0x2b8] sm:$0xff]
      %v3263 = vld [vmem:[%s1 + $0x2c0] sm:$0xff]
      %v3264 = vld [vmem:[%s1 + $0x2c8] sm:$0xff]
      %v3265 = vld [vmem:[%s1 + $0x2d0] sm:$0xff]
      %v3266 = vld [vmem:[%s1 + $0x2d8] sm:$0xff]
      %3271 = vrot.lane.b32.xlu0 %v3255, 127
      %v3272 = vpop.permute.xlu0 %3271
      %3273 = vrot.lane.b32.xlu0 %v3256, 127
      %v3274 = vpop.permute.xlu0 %3273
      %3275 = vrot.lane.b32.xlu0 %v3257, 127
      %v3276 = vpop.permute.xlu0 %3275
      %3277 = vrot.lane.b32.xlu0 %v3258, 127
      %v3278 = vpop.permute.xlu0 %3277
      %v3284 = vsel %vm359, %v3263, 0
      %v3287 = vsel %vm359, %v3264, 0
      %v3290 = vsel %vm359, %v3265, 0
      %v3293 = vsel %vm359, %v3266, 0
      %3295 = vmatprep.subr.mxu0 0.0
      %3296 = vmatpush1.msra.mxu0 0.0
      %3297 = vmatprep.subr.mxu0 0.0
      %3298 = vmatpush1.msra.mxu0 0.0
      %3299 = vmatprep.subr.mxu0 0.0
      %3300 = vmatpush1.msra.mxu0 0.0
      %3301 = vmatprep.subr.mxu0 0.0
      %3302 = vmatpush1.msra.mxu0 0.0
      %3303 = vmatprep.subr.mxu0 0.0
      %3304 = vmatpush1.msra.mxu0 0.0
      %3305 = vmatprep.subr.mxu0 0.0
      %3306 = vmatpush1.msra.mxu0 0.0
      %3307 = vmatprep.subr.mxu0 0.0
      %3308 = vmatpush1.msra.mxu0 0.0
      %3309 = vmatprep.subr.mxu0 0.0
      %3310 = vmatpush1.msra.mxu0 0.0
      %3311 = vmatprep.subr.mxu0 0.0
      %3312 = vmatpush1.msra.mxu0 0.0
      %3313 = vmatprep.subr.mxu0 0.0
      %3314 = vmatpush1.msra.mxu0 0.0
      %3315 = vmatprep.subr.mxu0 0.0
      %3316 = vmatpush1.msra.mxu0 0.0
      %3317 = vmatprep.subr.mxu0 0.0
      %3318 = vmatpush1.msra.mxu0 0.0
      %3319 = vmatprep.subr.mxu0 0.0
      %3320 = vmatpush1.msra.mxu0 %v3278
      %3321 = vmatprep.subr.mxu0 0.0
      %3322 = vmatpush1.msra.mxu0 %v3276
      %3323 = vmatprep.subr.mxu0 0.0
      %3324 = vmatpush1.msra.mxu0 %v3274
      %3325 = vmatprep.subr.mxu0 0.0
      %3326 = vmatpush1.msra.mxu0 %v3272
      %3327 = vmatprep.subr.mxu0 0.0
      %3328 = vmatpush2.msra.mxu0 0.0
      %3329 = vmatprep.subr.mxu0 0.0
      %3330 = vmatpush2.msra.mxu0 0.0
      %3331 = vmatprep.subr.mxu0 0.0
      %3332 = vmatpush2.msra.mxu0 0.0
      %3333 = vmatprep.subr.mxu0 0.0
      %3334 = vmatpush2.msra.mxu0 0.0
      %3335 = vmatprep.subr.mxu0 0.0
      %3336 = vmatpush2.msra.mxu0 0.0
      %3337 = vmatprep.subr.mxu0 0.0
      %3338 = vmatpush2.msra.mxu0 0.0
      %3339 = vmatprep.subr.mxu0 0.0
      %3340 = vmatpush2.msra.mxu0 0.0
      %3341 = vmatprep.subr.mxu0 0.0
      %3342 = vmatpush2.msra.mxu0 0.0
      %3343 = vmatprep.subr.mxu0 0.0
      %3344 = vmatpush2.msra.mxu0 0.0
      %3345 = vmatprep.subr.mxu0 0.0
      %3346 = vmatpush2.msra.mxu0 0.0
      %3347 = vmatprep.subr.mxu0 0.0
      %3348 = vmatpush2.msra.mxu0 0.0
      %3349 = vmatprep.subr.mxu0 0.0
      %3350 = vmatpush2.msra.mxu0 0.0
      %3351 = vmatprep.subr.mxu0 0.0
      %3352 = vmatpush2.msra.mxu0 0.0
      %3353 = vmatprep.subr.mxu0 0.0
      %3354 = vmatpush2.msra.mxu0 0.0
      %3355 = vmatprep.subr.mxu0 0.0
      %3356 = vmatpush2.msra.mxu0 0.0
      %3357 = vmatprep.subr.mxu0 0.0
      %3358 = vmatpush2.msra.mxu0 0.0
      %3359 = vmatprep.mubr.f32.mxu0 0.0
      %3360 = vmatmul.mubr.f32.gmra.mxu0 %v3284
      %v3361 = vpop.f32.mrf.mxu0
      %v3362 = vadd.f32 0.0, %v3361
      %v3363 = vpop.f32.mrf.mxu0
      %3364 = vmatprep.mubr.f32.mxu0 0.0
      %3365 = vmatmul.mubr.f32.gmra.mxu0 %v3287
      %v3366 = vpop.f32.mrf.mxu0
      %v3367 = vadd.f32 0.0, %v3366
      %v3368 = vpop.f32.mrf.mxu0
      %3369 = vmatprep.mubr.f32.mxu0 0.0
      %3370 = vmatmul.mubr.f32.gmra.mxu0 %v3290
      %v3371 = vpop.f32.mrf.mxu0
      %v3372 = vadd.f32 0.0, %v3371
      %v3373 = vpop.f32.mrf.mxu0
      %3374 = vmatprep.mubr.f32.mxu0 0.0
      %3375 = vmatmul.mubr.f32.gmra.mxu0 %v3293
      %v3376 = vpop.f32.mrf.mxu0
      %v3377 = vadd.f32 0.0, %v3376
      %v3378 = vpop.f32.mrf.mxu0
      %3379 = vdwg.mxu0
      %v3381 = vsel %vm359, %v3259, 0
      %v3384 = vsel %vm359, %v3260, 0
      %v3387 = vsel %vm359, %v3261, 0
      %v3390 = vsel %vm359, %v3262, 0
      %3392 = vmatprep.subr.mxu0 0.0
      %3393 = vmatpush1.msra.mxu0 0.0
      %3394 = vmatprep.subr.mxu0 0.0
      %3395 = vmatpush1.msra.mxu0 0.0
      %3396 = vmatprep.subr.mxu0 0.0
      %3397 = vmatpush1.msra.mxu0 0.0
      %3398 = vmatprep.subr.mxu0 0.0
      %3399 = vmatpush1.msra.mxu0 0.0
      %3400 = vmatprep.subr.mxu0 0.0
      %3401 = vmatpush1.msra.mxu0 0.0
      %3402 = vmatprep.subr.mxu0 0.0
      %3403 = vmatpush1.msra.mxu0 0.0
      %3404 = vmatprep.subr.mxu0 0.0
      %3405 = vmatpush1.msra.mxu0 0.0
      %3406 = vmatprep.subr.mxu0 0.0
      %3407 = vmatpush1.msra.mxu0 0.0
      %3408 = vmatprep.subr.mxu0 0.0
      %3409 = vmatpush1.msra.mxu0 0.0
      %3410 = vmatprep.subr.mxu0 0.0
      %3411 = vmatpush1.msra.mxu0 0.0
      %3412 = vmatprep.subr.mxu0 0.0
      %3413 = vmatpush1.msra.mxu0 0.0
      %3414 = vmatprep.subr.mxu0 0.0
      %3415 = vmatpush1.msra.mxu0 0.0
      %3416 = vmatprep.subr.mxu0 0.0
      %3417 = vmatpush1.msra.mxu0 %v3258
      %3418 = vmatprep.subr.mxu0 0.0
      %3419 = vmatpush1.msra.mxu0 %v3257
      %3420 = vmatprep.subr.mxu0 0.0
      %3421 = vmatpush1.msra.mxu0 %v3256
      %3422 = vmatprep.subr.mxu0 0.0
      %3423 = vmatpush1.msra.mxu0 %v3255
      %3424 = vmatprep.subr.mxu0 0.0
      %3425 = vmatpush2.msra.mxu0 0.0
      %3426 = vmatprep.subr.mxu0 0.0
      %3427 = vmatpush2.msra.mxu0 0.0
      %3428 = vmatprep.subr.mxu0 0.0
      %3429 = vmatpush2.msra.mxu0 0.0
      %3430 = vmatprep.subr.mxu0 0.0
      %3431 = vmatpush2.msra.mxu0 0.0
      %3432 = vmatprep.subr.mxu0 0.0
      %3433 = vmatpush2.msra.mxu0 0.0
      %3434 = vmatprep.subr.mxu0 0.0
      %3435 = vmatpush2.msra.mxu0 0.0
      %3436 = vmatprep.subr.mxu0 0.0
      %3437 = vmatpush2.msra.mxu0 0.0
      %3438 = vmatprep.subr.mxu0 0.0
      %3439 = vmatpush2.msra.mxu0 0.0
      %3440 = vmatprep.subr.mxu0 0.0
      %3441 = vmatpush2.msra.mxu0 0.0
      %3442 = vmatprep.subr.mxu0 0.0
      %3443 = vmatpush2.msra.mxu0 0.0
      %3444 = vmatprep.subr.mxu0 0.0
      %3445 = vmatpush2.msra.mxu0 0.0
      %3446 = vmatprep.subr.mxu0 0.0
      %3447 = vmatpush2.msra.mxu0 0.0
      %3448 = vmatprep.subr.mxu0 0.0
      %3449 = vmatpush2.msra.mxu0 0.0
      %3450 = vmatprep.subr.mxu0 0.0
      %3451 = vmatpush2.msra.mxu0 0.0
      %3452 = vmatprep.subr.mxu0 0.0
      %3453 = vmatpush2.msra.mxu0 0.0
      %3454 = vmatprep.subr.mxu0 0.0
      %3455 = vmatpush2.msra.mxu0 0.0
      %3456 = vmatprep.mubr.f32.mxu0 0.0
      %3457 = vmatmul.mubr.f32.gmra.mxu0 %v3381
      %v3458 = vpop.f32.mrf.mxu0
      %v3459 = vadd.f32 %v3362, %v3458
      %v3460 = vpop.f32.mrf.mxu0
      %3461 = vmatprep.mubr.f32.mxu0 0.0
      %3462 = vmatmul.mubr.f32.gmra.mxu0 %v3384
      %v3463 = vpop.f32.mrf.mxu0
      %v3464 = vadd.f32 %v3367, %v3463
      %v3465 = vpop.f32.mrf.mxu0
      %3466 = vmatprep.mubr.f32.mxu0 0.0
      %3467 = vmatmul.mubr.f32.gmra.mxu0 %v3387
      %v3468 = vpop.f32.mrf.mxu0
      %v3469 = vadd.f32 %v3372, %v3468
      %v3470 = vpop.f32.mrf.mxu0
      %3471 = vmatprep.mubr.f32.mxu0 0.0
      %3472 = vmatmul.mubr.f32.gmra.mxu0 %v3390
      %v3473 = vpop.f32.mrf.mxu0
      %v3474 = vadd.f32 %v3377, %v3473
      %v3475 = vpop.f32.mrf.mxu0
      %3476 = vdwg.mxu0
      %v3477 = vld [vmem:[%s1 + $0x2e0] sm:$0xff]
      %v3478 = vld [vmem:[%s1 + $0x2e8] sm:$0xff]
      %v3479 = vld [vmem:[%s1 + $0x2f0] sm:$0xff]
      %v3480 = vld [vmem:[%s1 + $0x2f8] sm:$0xff]
      %3481 = vrot.lane.b32.xlu0 %v3255, 126
      %v3482 = vpop.permute.xlu0 %3481
      %3483 = vrot.lane.b32.xlu0 %v3256, 126
      %v3484 = vpop.permute.xlu0 %3483
      %3485 = vrot.lane.b32.xlu0 %v3257, 126
      %v3486 = vpop.permute.xlu0 %3485
      %3487 = vrot.lane.b32.xlu0 %v3258, 126
      %v3488 = vpop.permute.xlu0 %3487
      %v3494 = vsel %vm359, %v3477, 0
      %v3497 = vsel %vm359, %v3478, 0
      %v3500 = vsel %vm359, %v3479, 0
      %v3503 = vsel %vm359, %v3480, 0
      %3505 = vmatprep.subr.mxu0 0.0
      %3506 = vmatpush1.msra.mxu0 0.0
      %3507 = vmatprep.subr.mxu0 0.0
      %3508 = vmatpush1.msra.mxu0 0.0
      %3509 = vmatprep.subr.mxu0 0.0
      %3510 = vmatpush1.msra.mxu0 0.0
      %3511 = vmatprep.subr.mxu0 0.0
      %3512 = vmatpush1.msra.mxu0 0.0
      %3513 = vmatprep.subr.mxu0 0.0
      %3514 = vmatpush1.msra.mxu0 0.0
      %3515 = vmatprep.subr.mxu0 0.0
      %3516 = vmatpush1.msra.mxu0 0.0
      %3517 = vmatprep.subr.mxu0 0.0
      %3518 = vmatpush1.msra.mxu0 0.0
      %3519 = vmatprep.subr.mxu0 0.0
      %3520 = vmatpush1.msra.mxu0 0.0
      %3521 = vmatprep.subr.mxu0 0.0
      %3522 = vmatpush1.msra.mxu0 0.0
      %3523 = vmatprep.subr.mxu0 0.0
      %3524 = vmatpush1.msra.mxu0 0.0
      %3525 = vmatprep.subr.mxu0 0.0
      %3526 = vmatpush1.msra.mxu0 0.0
      %3527 = vmatprep.subr.mxu0 0.0
      %3528 = vmatpush1.msra.mxu0 0.0
      %3529 = vmatprep.subr.mxu0 0.0
      %3530 = vmatpush1.msra.mxu0 %v3488
      %3531 = vmatprep.subr.mxu0 0.0
      %3532 = vmatpush1.msra.mxu0 %v3486
      %3533 = vmatprep.subr.mxu0 0.0
      %3534 = vmatpush1.msra.mxu0 %v3484
      %3535 = vmatprep.subr.mxu0 0.0
      %3536 = vmatpush1.msra.mxu0 %v3482
      %3537 = vmatprep.subr.mxu0 0.0
      %3538 = vmatpush2.msra.mxu0 0.0
      %3539 = vmatprep.subr.mxu0 0.0
      %3540 = vmatpush2.msra.mxu0 0.0
      %3541 = vmatprep.subr.mxu0 0.0
      %3542 = vmatpush2.msra.mxu0 0.0
      %3543 = vmatprep.subr.mxu0 0.0
      %3544 = vmatpush2.msra.mxu0 0.0
      %3545 = vmatprep.subr.mxu0 0.0
      %3546 = vmatpush2.msra.mxu0 0.0
      %3547 = vmatprep.subr.mxu0 0.0
      %3548 = vmatpush2.msra.mxu0 0.0
      %3549 = vmatprep.subr.mxu0 0.0
      %3550 = vmatpush2.msra.mxu0 0.0
      %3551 = vmatprep.subr.mxu0 0.0
      %3552 = vmatpush2.msra.mxu0 0.0
      %3553 = vmatprep.subr.mxu0 0.0
      %3554 = vmatpush2.msra.mxu0 0.0
      %3555 = vmatprep.subr.mxu0 0.0
      %3556 = vmatpush2.msra.mxu0 0.0
      %3557 = vmatprep.subr.mxu0 0.0
      %3558 = vmatpush2.msra.mxu0 0.0
      %3559 = vmatprep.subr.mxu0 0.0
      %3560 = vmatpush2.msra.mxu0 0.0
      %3561 = vmatprep.subr.mxu0 0.0
      %3562 = vmatpush2.msra.mxu0 0.0
      %3563 = vmatprep.subr.mxu0 0.0
      %3564 = vmatpush2.msra.mxu0 0.0
      %3565 = vmatprep.subr.mxu0 0.0
      %3566 = vmatpush2.msra.mxu0 0.0
      %3567 = vmatprep.subr.mxu0 0.0
      %3568 = vmatpush2.msra.mxu0 0.0
      %3569 = vmatprep.mubr.f32.mxu0 0.0
      %3570 = vmatmul.mubr.f32.gmra.mxu0 %v3494
      %v3571 = vpop.f32.mrf.mxu0
      %v3572 = vadd.f32 0.0, %v3571
      %v3573 = vpop.f32.mrf.mxu0
      %3574 = vmatprep.mubr.f32.mxu0 0.0
      %3575 = vmatmul.mubr.f32.gmra.mxu0 %v3497
      %v3576 = vpop.f32.mrf.mxu0
      %v3577 = vadd.f32 0.0, %v3576
      %v3578 = vpop.f32.mrf.mxu0
      %3579 = vmatprep.mubr.f32.mxu0 0.0
      %3580 = vmatmul.mubr.f32.gmra.mxu0 %v3500
      %v3581 = vpop.f32.mrf.mxu0
      %v3582 = vadd.f32 0.0, %v3581
      %v3583 = vpop.f32.mrf.mxu0
      %3584 = vmatprep.mubr.f32.mxu0 0.0
      %3585 = vmatmul.mubr.f32.gmra.mxu0 %v3503
      %v3586 = vpop.f32.mrf.mxu0
      %v3587 = vadd.f32 0.0, %v3586
      %v3588 = vpop.f32.mrf.mxu0
      %3589 = vdwg.mxu0
      %v3590 = vadd.f32 %v3459, %v3572
      %v3591 = vadd.f32 %v3464, %v3577
      %v3592 = vadd.f32 %v3469, %v3582
      %v3593 = vadd.f32 %v3474, %v3587
      %v3594 = vld [vmem:[%s1 + $0x300] sm:$0xff]
      %v3595 = vld [vmem:[%s1 + $0x308] sm:$0xff]
      %v3596 = vld [vmem:[%s1 + $0x310] sm:$0xff]
      %v3597 = vld [vmem:[%s1 + $0x318] sm:$0xff]
      %3598 = vrot.lane.b32.xlu0 %v3255, 125
      %v3599 = vpop.permute.xlu0 %3598
      %3600 = vrot.lane.b32.xlu0 %v3256, 125
      %v3601 = vpop.permute.xlu0 %3600
      %3602 = vrot.lane.b32.xlu0 %v3257, 125
      %v3603 = vpop.permute.xlu0 %3602
      %3604 = vrot.lane.b32.xlu0 %v3258, 125
      %v3605 = vpop.permute.xlu0 %3604
      %v3611 = vsel %vm359, %v3594, 0
      %v3614 = vsel %vm359, %v3595, 0
      %v3617 = vsel %vm359, %v3596, 0
      %v3620 = vsel %vm359, %v3597, 0
      %3622 = vmatprep.subr.mxu0 0.0
      %3623 = vmatpush1.msra.mxu0 0.0
      %3624 = vmatprep.subr.mxu0 0.0
      %3625 = vmatpush1.msra.mxu0 0.0
      %3626 = vmatprep.subr.mxu0 0.0
      %3627 = vmatpush1.msra.mxu0 0.0
      %3628 = vmatprep.subr.mxu0 0.0
      %3629 = vmatpush1.msra.mxu0 0.0
      %3630 = vmatprep.subr.mxu0 0.0
      %3631 = vmatpush1.msra.mxu0 0.0
      %3632 = vmatprep.subr.mxu0 0.0
      %3633 = vmatpush1.msra.mxu0 0.0
      %3634 = vmatprep.subr.mxu0 0.0
      %3635 = vmatpush1.msra.mxu0 0.0
      %3636 = vmatprep.subr.mxu0 0.0
      %3637 = vmatpush1.msra.mxu0 0.0
      %3638 = vmatprep.subr.mxu0 0.0
      %3639 = vmatpush1.msra.mxu0 0.0
      %3640 = vmatprep.subr.mxu0 0.0
      %3641 = vmatpush1.msra.mxu0 0.0
      %3642 = vmatprep.subr.mxu0 0.0
      %3643 = vmatpush1.msra.mxu0 0.0
      %3644 = vmatprep.subr.mxu0 0.0
      %3645 = vmatpush1.msra.mxu0 0.0
      %3646 = vmatprep.subr.mxu0 0.0
      %3647 = vmatpush1.msra.mxu0 %v3605
      %3648 = vmatprep.subr.mxu0 0.0
      %3649 = vmatpush1.msra.mxu0 %v3603
      %3650 = vmatprep.subr.mxu0 0.0
      %3651 = vmatpush1.msra.mxu0 %v3601
      %3652 = vmatprep.subr.mxu0 0.0
      %3653 = vmatpush1.msra.mxu0 %v3599
      %3654 = vmatprep.subr.mxu0 0.0
      %3655 = vmatpush2.msra.mxu0 0.0
      %3656 = vmatprep.subr.mxu0 0.0
      %3657 = vmatpush2.msra.mxu0 0.0
      %3658 = vmatprep.subr.mxu0 0.0
      %3659 = vmatpush2.msra.mxu0 0.0
      %3660 = vmatprep.subr.mxu0 0.0
      %3661 = vmatpush2.msra.mxu0 0.0
      %3662 = vmatprep.subr.mxu0 0.0
      %3663 = vmatpush2.msra.mxu0 0.0
      %3664 = vmatprep.subr.mxu0 0.0
      %3665 = vmatpush2.msra.mxu0 0.0
      %3666 = vmatprep.subr.mxu0 0.0
      %3667 = vmatpush2.msra.mxu0 0.0
      %3668 = vmatprep.subr.mxu0 0.0
      %3669 = vmatpush2.msra.mxu0 0.0
      %3670 = vmatprep.subr.mxu0 0.0
      %3671 = vmatpush2.msra.mxu0 0.0
      %3672 = vmatprep.subr.mxu0 0.0
      %3673 = vmatpush2.msra.mxu0 0.0
      %3674 = vmatprep.subr.mxu0 0.0
      %3675 = vmatpush2.msra.mxu0 0.0
      %3676 = vmatprep.subr.mxu0 0.0
      %3677 = vmatpush2.msra.mxu0 0.0
      %3678 = vmatprep.subr.mxu0 0.0
      %3679 = vmatpush2.msra.mxu0 0.0
      %3680 = vmatprep.subr.mxu0 0.0
      %3681 = vmatpush2.msra.mxu0 0.0
      %3682 = vmatprep.subr.mxu0 0.0
      %3683 = vmatpush2.msra.mxu0 0.0
      %3684 = vmatprep.subr.mxu0 0.0
      %3685 = vmatpush2.msra.mxu0 0.0
      %3686 = vmatprep.mubr.f32.mxu0 0.0
      %3687 = vmatmul.mubr.f32.gmra.mxu0 %v3611
      %v3688 = vpop.f32.mrf.mxu0
      %v3689 = vadd.f32 0.0, %v3688
      %v3690 = vpop.f32.mrf.mxu0
      %3691 = vmatprep.mubr.f32.mxu0 0.0
      %3692 = vmatmul.mubr.f32.gmra.mxu0 %v3614
      %v3693 = vpop.f32.mrf.mxu0
      %v3694 = vadd.f32 0.0, %v3693
      %v3695 = vpop.f32.mrf.mxu0
      %3696 = vmatprep.mubr.f32.mxu0 0.0
      %3697 = vmatmul.mubr.f32.gmra.mxu0 %v3617
      %v3698 = vpop.f32.mrf.mxu0
      %v3699 = vadd.f32 0.0, %v3698
      %v3700 = vpop.f32.mrf.mxu0
      %3701 = vmatprep.mubr.f32.mxu0 0.0
      %3702 = vmatmul.mubr.f32.gmra.mxu0 %v3620
      %v3703 = vpop.f32.mrf.mxu0
      %v3704 = vadd.f32 0.0, %v3703
      %v3705 = vpop.f32.mrf.mxu0
      %3706 = vdwg.mxu0
      %v3707 = vadd.f32 %v3590, %v3689
      %v3708 = vadd.f32 %v3591, %v3694
      %v3709 = vadd.f32 %v3592, %v3699
      %v3710 = vadd.f32 %v3593, %v3704
      %v3711 = vld [vmem:[%s1 + $0x320] sm:$0xff]
      %v3712 = vld [vmem:[%s1 + $0x328] sm:$0xff]
      %v3713 = vld [vmem:[%s1 + $0x330] sm:$0xff]
      %v3714 = vld [vmem:[%s1 + $0x338] sm:$0xff]
      %3715 = vrot.lane.b32.xlu0 %v3255, 124
      %v3716 = vpop.permute.xlu0 %3715
      %3717 = vrot.lane.b32.xlu0 %v3256, 124
      %v3718 = vpop.permute.xlu0 %3717
      %3719 = vrot.lane.b32.xlu0 %v3257, 124
      %v3720 = vpop.permute.xlu0 %3719
      %3721 = vrot.lane.b32.xlu0 %v3258, 124
      %v3722 = vpop.permute.xlu0 %3721
      %v3728 = vsel %vm359, %v3711, 0
      %v3731 = vsel %vm359, %v3712, 0
      %v3734 = vsel %vm359, %v3713, 0
      %v3737 = vsel %vm359, %v3714, 0
      %3739 = vmatprep.subr.mxu0 0.0
      %3740 = vmatpush1.msra.mxu0 0.0
      %3741 = vmatprep.subr.mxu0 0.0
      %3742 = vmatpush1.msra.mxu0 0.0
      %3743 = vmatprep.subr.mxu0 0.0
      %3744 = vmatpush1.msra.mxu0 0.0
      %3745 = vmatprep.subr.mxu0 0.0
      %3746 = vmatpush1.msra.mxu0 0.0
      %3747 = vmatprep.subr.mxu0 0.0
      %3748 = vmatpush1.msra.mxu0 0.0
      %3749 = vmatprep.subr.mxu0 0.0
      %3750 = vmatpush1.msra.mxu0 0.0
      %3751 = vmatprep.subr.mxu0 0.0
      %3752 = vmatpush1.msra.mxu0 0.0
      %3753 = vmatprep.subr.mxu0 0.0
      %3754 = vmatpush1.msra.mxu0 0.0
      %3755 = vmatprep.subr.mxu0 0.0
      %3756 = vmatpush1.msra.mxu0 0.0
      %3757 = vmatprep.subr.mxu0 0.0
      %3758 = vmatpush1.msra.mxu0 0.0
      %3759 = vmatprep.subr.mxu0 0.0
      %3760 = vmatpush1.msra.mxu0 0.0
      %3761 = vmatprep.subr.mxu0 0.0
      %3762 = vmatpush1.msra.mxu0 0.0
      %3763 = vmatprep.subr.mxu0 0.0
      %3764 = vmatpush1.msra.mxu0 %v3722
      %3765 = vmatprep.subr.mxu0 0.0
      %3766 = vmatpush1.msra.mxu0 %v3720
      %3767 = vmatprep.subr.mxu0 0.0
      %3768 = vmatpush1.msra.mxu0 %v3718
      %3769 = vmatprep.subr.mxu0 0.0
      %3770 = vmatpush1.msra.mxu0 %v3716
      %3771 = vmatprep.subr.mxu0 0.0
      %3772 = vmatpush2.msra.mxu0 0.0
      %3773 = vmatprep.subr.mxu0 0.0
      %3774 = vmatpush2.msra.mxu0 0.0
      %3775 = vmatprep.subr.mxu0 0.0
      %3776 = vmatpush2.msra.mxu0 0.0
      %3777 = vmatprep.subr.mxu0 0.0
      %3778 = vmatpush2.msra.mxu0 0.0
      %3779 = vmatprep.subr.mxu0 0.0
      %3780 = vmatpush2.msra.mxu0 0.0
      %3781 = vmatprep.subr.mxu0 0.0
      %3782 = vmatpush2.msra.mxu0 0.0
      %3783 = vmatprep.subr.mxu0 0.0
      %3784 = vmatpush2.msra.mxu0 0.0
      %3785 = vmatprep.subr.mxu0 0.0
      %3786 = vmatpush2.msra.mxu0 0.0
      %3787 = vmatprep.subr.mxu0 0.0
      %3788 = vmatpush2.msra.mxu0 0.0
      %3789 = vmatprep.subr.mxu0 0.0
      %3790 = vmatpush2.msra.mxu0 0.0
      %3791 = vmatprep.subr.mxu0 0.0
      %3792 = vmatpush2.msra.mxu0 0.0
      %3793 = vmatprep.subr.mxu0 0.0
      %3794 = vmatpush2.msra.mxu0 0.0
      %3795 = vmatprep.subr.mxu0 0.0
      %3796 = vmatpush2.msra.mxu0 0.0
      %3797 = vmatprep.subr.mxu0 0.0
      %3798 = vmatpush2.msra.mxu0 0.0
      %3799 = vmatprep.subr.mxu0 0.0
      %3800 = vmatpush2.msra.mxu0 0.0
      %3801 = vmatprep.subr.mxu0 0.0
      %3802 = vmatpush2.msra.mxu0 0.0
      %3803 = vmatprep.mubr.f32.mxu0 0.0
      %3804 = vmatmul.mubr.f32.gmra.mxu0 %v3728
      %v3805 = vpop.f32.mrf.mxu0
      %v3806 = vadd.f32 0.0, %v3805
      %v3807 = vpop.f32.mrf.mxu0
      %3808 = vmatprep.mubr.f32.mxu0 0.0
      %3809 = vmatmul.mubr.f32.gmra.mxu0 %v3731
      %v3810 = vpop.f32.mrf.mxu0
      %v3811 = vadd.f32 0.0, %v3810
      %v3812 = vpop.f32.mrf.mxu0
      %3813 = vmatprep.mubr.f32.mxu0 0.0
      %3814 = vmatmul.mubr.f32.gmra.mxu0 %v3734
      %v3815 = vpop.f32.mrf.mxu0
      %v3816 = vadd.f32 0.0, %v3815
      %v3817 = vpop.f32.mrf.mxu0
      %3818 = vmatprep.mubr.f32.mxu0 0.0
      %3819 = vmatmul.mubr.f32.gmra.mxu0 %v3737
      %v3820 = vpop.f32.mrf.mxu0
      %v3821 = vadd.f32 0.0, %v3820
      %v3822 = vpop.f32.mrf.mxu0
      %3823 = vdwg.mxu0
      %v3824 = vadd.f32 %v3707, %v3806
      %v3825 = vadd.f32 %v3708, %v3811
      %v3826 = vadd.f32 %v3709, %v3816
      %v3827 = vadd.f32 %v3710, %v3821
      %v3828 = vld [vmem:[%s1 + $0x340] sm:$0xff]
      %v3829 = vld [vmem:[%s1 + $0x348] sm:$0xff]
      %v3830 = vld [vmem:[%s1 + $0x350] sm:$0xff]
      %v3831 = vld [vmem:[%s1 + $0x358] sm:$0xff]
      %3832 = vrot.lane.b32.xlu0 %v3255, 123
      %v3833 = vpop.permute.xlu0 %3832
      %3834 = vrot.lane.b32.xlu0 %v3256, 123
      %v3835 = vpop.permute.xlu0 %3834
      %3836 = vrot.lane.b32.xlu0 %v3257, 123
      %v3837 = vpop.permute.xlu0 %3836
      %3838 = vrot.lane.b32.xlu0 %v3258, 123
      %v3839 = vpop.permute.xlu0 %3838
      %v3845 = vsel %vm359, %v3828, 0
      %v3848 = vsel %vm359, %v3829, 0
      %v3851 = vsel %vm359, %v3830, 0
      %v3854 = vsel %vm359, %v3831, 0
      %3856 = vmatprep.subr.mxu0 0.0
      %3857 = vmatpush1.msra.mxu0 0.0
      %3858 = vmatprep.subr.mxu0 0.0
      %3859 = vmatpush1.msra.mxu0 0.0
      %3860 = vmatprep.subr.mxu0 0.0
      %3861 = vmatpush1.msra.mxu0 0.0
      %3862 = vmatprep.subr.mxu0 0.0
      %3863 = vmatpush1.msra.mxu0 0.0
      %3864 = vmatprep.subr.mxu0 0.0
      %3865 = vmatpush1.msra.mxu0 0.0
      %3866 = vmatprep.subr.mxu0 0.0
      %3867 = vmatpush1.msra.mxu0 0.0
      %3868 = vmatprep.subr.mxu0 0.0
      %3869 = vmatpush1.msra.mxu0 0.0
      %3870 = vmatprep.subr.mxu0 0.0
      %3871 = vmatpush1.msra.mxu0 0.0
      %3872 = vmatprep.subr.mxu0 0.0
      %3873 = vmatpush1.msra.mxu0 0.0
      %3874 = vmatprep.subr.mxu0 0.0
      %3875 = vmatpush1.msra.mxu0 0.0
      %3876 = vmatprep.subr.mxu0 0.0
      %3877 = vmatpush1.msra.mxu0 0.0
      %3878 = vmatprep.subr.mxu0 0.0
      %3879 = vmatpush1.msra.mxu0 0.0
      %3880 = vmatprep.subr.mxu0 0.0
      %3881 = vmatpush1.msra.mxu0 %v3839
      %3882 = vmatprep.subr.mxu0 0.0
      %3883 = vmatpush1.msra.mxu0 %v3837
      %3884 = vmatprep.subr.mxu0 0.0
      %3885 = vmatpush1.msra.mxu0 %v3835
      %3886 = vmatprep.subr.mxu0 0.0
      %3887 = vmatpush1.msra.mxu0 %v3833
      %3888 = vmatprep.subr.mxu0 0.0
      %3889 = vmatpush2.msra.mxu0 0.0
      %3890 = vmatprep.subr.mxu0 0.0
      %3891 = vmatpush2.msra.mxu0 0.0
      %3892 = vmatprep.subr.mxu0 0.0
      %3893 = vmatpush2.msra.mxu0 0.0
      %3894 = vmatprep.subr.mxu0 0.0
      %3895 = vmatpush2.msra.mxu0 0.0
      %3896 = vmatprep.subr.mxu0 0.0
      %3897 = vmatpush2.msra.mxu0 0.0
      %3898 = vmatprep.subr.mxu0 0.0
      %3899 = vmatpush2.msra.mxu0 0.0
      %3900 = vmatprep.subr.mxu0 0.0
      %3901 = vmatpush2.msra.mxu0 0.0
      %3902 = vmatprep.subr.mxu0 0.0
      %3903 = vmatpush2.msra.mxu0 0.0
      %3904 = vmatprep.subr.mxu0 0.0
      %3905 = vmatpush2.msra.mxu0 0.0
      %3906 = vmatprep.subr.mxu0 0.0
      %3907 = vmatpush2.msra.mxu0 0.0
      %3908 = vmatprep.subr.mxu0 0.0
      %3909 = vmatpush2.msra.mxu0 0.0
      %3910 = vmatprep.subr.mxu0 0.0
      %3911 = vmatpush2.msra.mxu0 0.0
      %3912 = vmatprep.subr.mxu0 0.0
      %3913 = vmatpush2.msra.mxu0 0.0
      %3914 = vmatprep.subr.mxu0 0.0
      %3915 = vmatpush2.msra.mxu0 0.0
      %3916 = vmatprep.subr.mxu0 0.0
      %3917 = vmatpush2.msra.mxu0 0.0
      %3918 = vmatprep.subr.mxu0 0.0
      %3919 = vmatpush2.msra.mxu0 0.0
      %3920 = vmatprep.mubr.f32.mxu0 0.0
      %3921 = vmatmul.mubr.f32.gmra.mxu0 %v3845
      %v3922 = vpop.f32.mrf.mxu0
      %v3923 = vadd.f32 0.0, %v3922
      %v3924 = vpop.f32.mrf.mxu0
      %3925 = vmatprep.mubr.f32.mxu0 0.0
      %3926 = vmatmul.mubr.f32.gmra.mxu0 %v3848
      %v3927 = vpop.f32.mrf.mxu0
      %v3928 = vadd.f32 0.0, %v3927
      %v3929 = vpop.f32.mrf.mxu0
      %3930 = vmatprep.mubr.f32.mxu0 0.0
      %3931 = vmatmul.mubr.f32.gmra.mxu0 %v3851
      %v3932 = vpop.f32.mrf.mxu0
      %v3933 = vadd.f32 0.0, %v3932
      %v3934 = vpop.f32.mrf.mxu0
      %3935 = vmatprep.mubr.f32.mxu0 0.0
      %3936 = vmatmul.mubr.f32.gmra.mxu0 %v3854
      %v3937 = vpop.f32.mrf.mxu0
      %v3938 = vadd.f32 0.0, %v3937
      %v3939 = vpop.f32.mrf.mxu0
      %3940 = vdwg.mxu0
      %v3941 = vadd.f32 %v3824, %v3923
      %v3942 = vadd.f32 %v3825, %v3928
      %v3943 = vadd.f32 %v3826, %v3933
      %v3944 = vadd.f32 %v3827, %v3938
      %v3945 = vld [vmem:[%s1 + $0x360] sm:$0xff]
      %v3946 = vld [vmem:[%s1 + $0x368] sm:$0xff]
      %v3947 = vld [vmem:[%s1 + $0x370] sm:$0xff]
      %v3948 = vld [vmem:[%s1 + $0x378] sm:$0xff]
      %3949 = vrot.lane.b32.xlu0 %v3255, 122
      %v3950 = vpop.permute.xlu0 %3949
      %3951 = vrot.lane.b32.xlu0 %v3256, 122
      %v3952 = vpop.permute.xlu0 %3951
      %3953 = vrot.lane.b32.xlu0 %v3257, 122
      %v3954 = vpop.permute.xlu0 %3953
      %3955 = vrot.lane.b32.xlu0 %v3258, 122
      %v3956 = vpop.permute.xlu0 %3955
      %v3962 = vsel %vm359, %v3945, 0
      %v3965 = vsel %vm359, %v3946, 0
      %v3968 = vsel %vm359, %v3947, 0
      %v3971 = vsel %vm359, %v3948, 0
      %3973 = vmatprep.subr.mxu0 0.0
      %3974 = vmatpush1.msra.mxu0 0.0
      %3975 = vmatprep.subr.mxu0 0.0
      %3976 = vmatpush1.msra.mxu0 0.0
      %3977 = vmatprep.subr.mxu0 0.0
      %3978 = vmatpush1.msra.mxu0 0.0
      %3979 = vmatprep.subr.mxu0 0.0
      %3980 = vmatpush1.msra.mxu0 0.0
      %3981 = vmatprep.subr.mxu0 0.0
      %3982 = vmatpush1.msra.mxu0 0.0
      %3983 = vmatprep.subr.mxu0 0.0
      %3984 = vmatpush1.msra.mxu0 0.0
      %3985 = vmatprep.subr.mxu0 0.0
      %3986 = vmatpush1.msra.mxu0 0.0
      %3987 = vmatprep.subr.mxu0 0.0
      %3988 = vmatpush1.msra.mxu0 0.0
      %3989 = vmatprep.subr.mxu0 0.0
      %3990 = vmatpush1.msra.mxu0 0.0
      %3991 = vmatprep.subr.mxu0 0.0
      %3992 = vmatpush1.msra.mxu0 0.0
      %3993 = vmatprep.subr.mxu0 0.0
      %3994 = vmatpush1.msra.mxu0 0.0
      %3995 = vmatprep.subr.mxu0 0.0
      %3996 = vmatpush1.msra.mxu0 0.0
      %3997 = vmatprep.subr.mxu0 0.0
      %3998 = vmatpush1.msra.mxu0 %v3956
      %3999 = vmatprep.subr.mxu0 0.0
      %4000 = vmatpush1.msra.mxu0 %v3954
      %4001 = vmatprep.subr.mxu0 0.0
      %4002 = vmatpush1.msra.mxu0 %v3952
      %4003 = vmatprep.subr.mxu0 0.0
      %4004 = vmatpush1.msra.mxu0 %v3950
      %4005 = vmatprep.subr.mxu0 0.0
      %4006 = vmatpush2.msra.mxu0 0.0
      %4007 = vmatprep.subr.mxu0 0.0
      %4008 = vmatpush2.msra.mxu0 0.0
      %4009 = vmatprep.subr.mxu0 0.0
      %4010 = vmatpush2.msra.mxu0 0.0
      %4011 = vmatprep.subr.mxu0 0.0
      %4012 = vmatpush2.msra.mxu0 0.0
      %4013 = vmatprep.subr.mxu0 0.0
      %4014 = vmatpush2.msra.mxu0 0.0
      %4015 = vmatprep.subr.mxu0 0.0
      %4016 = vmatpush2.msra.mxu0 0.0
      %4017 = vmatprep.subr.mxu0 0.0
      %4018 = vmatpush2.msra.mxu0 0.0
      %4019 = vmatprep.subr.mxu0 0.0
      %4020 = vmatpush2.msra.mxu0 0.0
      %4021 = vmatprep.subr.mxu0 0.0
      %4022 = vmatpush2.msra.mxu0 0.0
      %4023 = vmatprep.subr.mxu0 0.0
      %4024 = vmatpush2.msra.mxu0 0.0
      %4025 = vmatprep.subr.mxu0 0.0
      %4026 = vmatpush2.msra.mxu0 0.0
      %4027 = vmatprep.subr.mxu0 0.0
      %4028 = vmatpush2.msra.mxu0 0.0
      %4029 = vmatprep.subr.mxu0 0.0
      %4030 = vmatpush2.msra.mxu0 0.0
      %4031 = vmatprep.subr.mxu0 0.0
      %4032 = vmatpush2.msra.mxu0 0.0
      %4033 = vmatprep.subr.mxu0 0.0
      %4034 = vmatpush2.msra.mxu0 0.0
      %4035 = vmatprep.subr.mxu0 0.0
      %4036 = vmatpush2.msra.mxu0 0.0
      %4037 = vmatprep.mubr.f32.mxu0 0.0
      %4038 = vmatmul.mubr.f32.gmra.mxu0 %v3962
      %v4039 = vpop.f32.mrf.mxu0
      %v4040 = vadd.f32 0.0, %v4039
      %v4041 = vpop.f32.mrf.mxu0
      %4042 = vmatprep.mubr.f32.mxu0 0.0
      %4043 = vmatmul.mubr.f32.gmra.mxu0 %v3965
      %v4044 = vpop.f32.mrf.mxu0
      %v4045 = vadd.f32 0.0, %v4044
      %v4046 = vpop.f32.mrf.mxu0
      %4047 = vmatprep.mubr.f32.mxu0 0.0
      %4048 = vmatmul.mubr.f32.gmra.mxu0 %v3968
      %v4049 = vpop.f32.mrf.mxu0
      %v4050 = vadd.f32 0.0, %v4049
      %v4051 = vpop.f32.mrf.mxu0
      %4052 = vmatprep.mubr.f32.mxu0 0.0
      %4053 = vmatmul.mubr.f32.gmra.mxu0 %v3971
      %v4054 = vpop.f32.mrf.mxu0
      %v4055 = vadd.f32 0.0, %v4054
      %v4056 = vpop.f32.mrf.mxu0
      %4057 = vdwg.mxu0
      %v4058 = vadd.f32 %v3941, %v4040
      %v4059 = vadd.f32 %v3942, %v4045
      %v4060 = vadd.f32 %v3943, %v4050
      %v4061 = vadd.f32 %v3944, %v4055
      %v4062 = vld [vmem:[%s1 + $0x380] sm:$0xff]
      %v4063 = vld [vmem:[%s1 + $0x388] sm:$0xff]
      %v4064 = vld [vmem:[%s1 + $0x390] sm:$0xff]
      %v4065 = vld [vmem:[%s1 + $0x398] sm:$0xff]
      %4066 = vrot.lane.b32.xlu0 %v3255, 121
      %v4067 = vpop.permute.xlu0 %4066
      %4068 = vrot.lane.b32.xlu0 %v3256, 121
      %v4069 = vpop.permute.xlu0 %4068
      %4070 = vrot.lane.b32.xlu0 %v3257, 121
      %v4071 = vpop.permute.xlu0 %4070
      %4072 = vrot.lane.b32.xlu0 %v3258, 121
      %v4073 = vpop.permute.xlu0 %4072
      %v4079 = vsel %vm359, %v4062, 0
      %v4082 = vsel %vm359, %v4063, 0
      %v4085 = vsel %vm359, %v4064, 0
      %v4088 = vsel %vm359, %v4065, 0
      %4090 = vmatprep.subr.mxu0 0.0
      %4091 = vmatpush1.msra.mxu0 0.0
      %4092 = vmatprep.subr.mxu0 0.0
      %4093 = vmatpush1.msra.mxu0 0.0
      %4094 = vmatprep.subr.mxu0 0.0
      %4095 = vmatpush1.msra.mxu0 0.0
      %4096 = vmatprep.subr.mxu0 0.0
      %4097 = vmatpush1.msra.mxu0 0.0
      %4098 = vmatprep.subr.mxu0 0.0
      %4099 = vmatpush1.msra.mxu0 0.0
      %4100 = vmatprep.subr.mxu0 0.0
      %4101 = vmatpush1.msra.mxu0 0.0
      %4102 = vmatprep.subr.mxu0 0.0
      %4103 = vmatpush1.msra.mxu0 0.0
      %4104 = vmatprep.subr.mxu0 0.0
      %4105 = vmatpush1.msra.mxu0 0.0
      %4106 = vmatprep.subr.mxu0 0.0
      %4107 = vmatpush1.msra.mxu0 0.0
      %4108 = vmatprep.subr.mxu0 0.0
      %4109 = vmatpush1.msra.mxu0 0.0
      %4110 = vmatprep.subr.mxu0 0.0
      %4111 = vmatpush1.msra.mxu0 0.0
      %4112 = vmatprep.subr.mxu0 0.0
      %4113 = vmatpush1.msra.mxu0 0.0
      %4114 = vmatprep.subr.mxu0 0.0
      %4115 = vmatpush1.msra.mxu0 %v4073
      %4116 = vmatprep.subr.mxu0 0.0
      %4117 = vmatpush1.msra.mxu0 %v4071
      %4118 = vmatprep.subr.mxu0 0.0
      %4119 = vmatpush1.msra.mxu0 %v4069
      %4120 = vmatprep.subr.mxu0 0.0
      %4121 = vmatpush1.msra.mxu0 %v4067
      %4122 = vmatprep.subr.mxu0 0.0
      %4123 = vmatpush2.msra.mxu0 0.0
      %4124 = vmatprep.subr.mxu0 0.0
      %4125 = vmatpush2.msra.mxu0 0.0
      %4126 = vmatprep.subr.mxu0 0.0
      %4127 = vmatpush2.msra.mxu0 0.0
      %4128 = vmatprep.subr.mxu0 0.0
      %4129 = vmatpush2.msra.mxu0 0.0
      %4130 = vmatprep.subr.mxu0 0.0
      %4131 = vmatpush2.msra.mxu0 0.0
      %4132 = vmatprep.subr.mxu0 0.0
      %4133 = vmatpush2.msra.mxu0 0.0
      %4134 = vmatprep.subr.mxu0 0.0
      %4135 = vmatpush2.msra.mxu0 0.0
      %4136 = vmatprep.subr.mxu0 0.0
      %4137 = vmatpush2.msra.mxu0 0.0
      %4138 = vmatprep.subr.mxu0 0.0
      %4139 = vmatpush2.msra.mxu0 0.0
      %4140 = vmatprep.subr.mxu0 0.0
      %4141 = vmatpush2.msra.mxu0 0.0
      %4142 = vmatprep.subr.mxu0 0.0
      %4143 = vmatpush2.msra.mxu0 0.0
      %4144 = vmatprep.subr.mxu0 0.0
      %4145 = vmatpush2.msra.mxu0 0.0
      %4146 = vmatprep.subr.mxu0 0.0
      %4147 = vmatpush2.msra.mxu0 0.0
      %4148 = vmatprep.subr.mxu0 0.0
      %4149 = vmatpush2.msra.mxu0 0.0
      %4150 = vmatprep.subr.mxu0 0.0
      %4151 = vmatpush2.msra.mxu0 0.0
      %4152 = vmatprep.subr.mxu0 0.0
      %4153 = vmatpush2.msra.mxu0 0.0
      %4154 = vmatprep.mubr.f32.mxu0 0.0
      %4155 = vmatmul.mubr.f32.gmra.mxu0 %v4079
      %v4156 = vpop.f32.mrf.mxu0
      %v4157 = vadd.f32 0.0, %v4156
      %v4158 = vpop.f32.mrf.mxu0
      %4159 = vmatprep.mubr.f32.mxu0 0.0
      %4160 = vmatmul.mubr.f32.gmra.mxu0 %v4082
      %v4161 = vpop.f32.mrf.mxu0
      %v4162 = vadd.f32 0.0, %v4161
      %v4163 = vpop.f32.mrf.mxu0
      %4164 = vmatprep.mubr.f32.mxu0 0.0
      %4165 = vmatmul.mubr.f32.gmra.mxu0 %v4085
      %v4166 = vpop.f32.mrf.mxu0
      %v4167 = vadd.f32 0.0, %v4166
      %v4168 = vpop.f32.mrf.mxu0
      %4169 = vmatprep.mubr.f32.mxu0 0.0
      %4170 = vmatmul.mubr.f32.gmra.mxu0 %v4088
      %v4171 = vpop.f32.mrf.mxu0
      %v4172 = vadd.f32 0.0, %v4171
      %v4173 = vpop.f32.mrf.mxu0
      %4174 = vdwg.mxu0
      %v4175 = vadd.f32 %v4058, %v4157
      %v4176 = vadd.f32 %v4059, %v4162
      %v4177 = vadd.f32 %v4060, %v4167
      %v4178 = vadd.f32 %v4061, %v4172
      %4179 = vset.pattern.permute.xlu0 5
      %4180 = vperm.xlu0 %4179, %v169
      %v4181 = vpop.permute.xlu0 %4180
      %4183 = vset.pattern.permute.xlu0 5
      %4184 = vperm.xlu0 %4183, %v170
      %v4185 = vpop.permute.xlu0 %4184
      %4187 = vset.pattern.permute.xlu0 5
      %4188 = vperm.xlu0 %4187, %v171
      %v4189 = vpop.permute.xlu0 %4188
      %4191 = vset.pattern.permute.xlu0 5
      %4192 = vperm.xlu0 %4191, %v172
      %v4193 = vpop.permute.xlu0 %4192
      %v4195 = vadd.f32 %v4175, %v4181
      %v4196 = vadd.f32 %v4176, %v4185
      %v4197 = vadd.f32 %v4177, %v4189
      %v4198 = vadd.f32 %v4178, %v4193
      %v4199 = vmax.f32 %v4195, 0.0
      %v4200 = vmax.f32 %v4196, 0.0
      %v4201 = vmax.f32 %v4197, 0.0
      %v4202 = vmax.f32 %v4198, 0.0
      %4207 = vrot.lane.b32.xlu0 %v4199, 2
      %v4208 = vpop.permute.xlu0 %4207
      %4209 = vrot.lane.b32.xlu0 %v4200, 2
      %v4210 = vpop.permute.xlu0 %4209
      %4211 = vrot.lane.b32.xlu0 %v4201, 2
      %v4212 = vpop.permute.xlu0 %4211
      %4213 = vrot.lane.b32.xlu0 %v4202, 2
      %v4214 = vpop.permute.xlu0 %4213
      %v4219 = vsel %vm325, 0.0, %v4208
      %v4220 = vsel %vm325, 0.0, %v4210
      %v4221 = vsel %vm325, 0.0, %v4212
      %v4222 = vsel %vm325, 0.0, %v4214
      %vm4223 = vcmask 72704
      %v4224 = vsel %vm4223, %v4219, 0.0
      %v4225 = vsel %vm4223, %v4220, 0.0
      %v4226 = vsel %vm4223, %v4221, 0.0
      %v4227 = vsel %vm4223, %v4222, 0.0
      %v4228 = vld [vmem:[%s1 + $0x3a0] sm:$0xff]
      %v4229 = vld [vmem:[%s1 + $0x3a8] sm:$0xff]
      %v4230 = vld [vmem:[%s1 + $0x3b0] sm:$0xff]
      %v4231 = vld [vmem:[%s1 + $0x3b8] sm:$0xff]
      %v4232 = vld [vmem:[%s1 + $0x3c0] sm:$0xff]
      %v4233 = vld [vmem:[%s1 + $0x3c8] sm:$0xff]
      %v4234 = vld [vmem:[%s1 + $0x3d0] sm:$0xff]
      %v4235 = vld [vmem:[%s1 + $0x3d8] sm:$0xff]
      %4240 = vrot.lane.b32.xlu0 %v4224, 127
      %v4241 = vpop.permute.xlu0 %4240
      %4242 = vrot.lane.b32.xlu0 %v4225, 127
      %v4243 = vpop.permute.xlu0 %4242
      %4244 = vrot.lane.b32.xlu0 %v4226, 127
      %v4245 = vpop.permute.xlu0 %4244
      %4246 = vrot.lane.b32.xlu0 %v4227, 127
      %v4247 = vpop.permute.xlu0 %4246
      %v4253 = vsel %vm359, %v4232, 0
      %v4256 = vsel %vm359, %v4233, 0
      %v4259 = vsel %vm359, %v4234, 0
      %v4262 = vsel %vm359, %v4235, 0
      %4264 = vmatprep.subr.mxu0 0.0
      %4265 = vmatpush1.msra.mxu0 0.0
      %4266 = vmatprep.subr.mxu0 0.0
      %4267 = vmatpush1.msra.mxu0 0.0
      %4268 = vmatprep.subr.mxu0 0.0
      %4269 = vmatpush1.msra.mxu0 0.0
      %4270 = vmatprep.subr.mxu0 0.0
      %4271 = vmatpush1.msra.mxu0 0.0
      %4272 = vmatprep.subr.mxu0 0.0
      %4273 = vmatpush1.msra.mxu0 0.0
      %4274 = vmatprep.subr.mxu0 0.0
      %4275 = vmatpush1.msra.mxu0 0.0
      %4276 = vmatprep.subr.mxu0 0.0
      %4277 = vmatpush1.msra.mxu0 0.0
      %4278 = vmatprep.subr.mxu0 0.0
      %4279 = vmatpush1.msra.mxu0 0.0
      %4280 = vmatprep.subr.mxu0 0.0
      %4281 = vmatpush1.msra.mxu0 0.0
      %4282 = vmatprep.subr.mxu0 0.0
      %4283 = vmatpush1.msra.mxu0 0.0
      %4284 = vmatprep.subr.mxu0 0.0
      %4285 = vmatpush1.msra.mxu0 0.0
      %4286 = vmatprep.subr.mxu0 0.0
      %4287 = vmatpush1.msra.mxu0 0.0
      %4288 = vmatprep.subr.mxu0 0.0
      %4289 = vmatpush1.msra.mxu0 %v4247
      %4290 = vmatprep.subr.mxu0 0.0
      %4291 = vmatpush1.msra.mxu0 %v4245
      %4292 = vmatprep.subr.mxu0 0.0
      %4293 = vmatpush1.msra.mxu0 %v4243
      %4294 = vmatprep.subr.mxu0 0.0
      %4295 = vmatpush1.msra.mxu0 %v4241
      %4296 = vmatprep.subr.mxu0 0.0
      %4297 = vmatpush2.msra.mxu0 0.0
      %4298 = vmatprep.subr.mxu0 0.0
      %4299 = vmatpush2.msra.mxu0 0.0
      %4300 = vmatprep.subr.mxu0 0.0
      %4301 = vmatpush2.msra.mxu0 0.0
      %4302 = vmatprep.subr.mxu0 0.0
      %4303 = vmatpush2.msra.mxu0 0.0
      %4304 = vmatprep.subr.mxu0 0.0
      %4305 = vmatpush2.msra.mxu0 0.0
      %4306 = vmatprep.subr.mxu0 0.0
      %4307 = vmatpush2.msra.mxu0 0.0
      %4308 = vmatprep.subr.mxu0 0.0
      %4309 = vmatpush2.msra.mxu0 0.0
      %4310 = vmatprep.subr.mxu0 0.0
      %4311 = vmatpush2.msra.mxu0 0.0
      %4312 = vmatprep.subr.mxu0 0.0
      %4313 = vmatpush2.msra.mxu0 0.0
      %4314 = vmatprep.subr.mxu0 0.0
      %4315 = vmatpush2.msra.mxu0 0.0
      %4316 = vmatprep.subr.mxu0 0.0
      %4317 = vmatpush2.msra.mxu0 0.0
      %4318 = vmatprep.subr.mxu0 0.0
      %4319 = vmatpush2.msra.mxu0 0.0
      %4320 = vmatprep.subr.mxu0 0.0
      %4321 = vmatpush2.msra.mxu0 0.0
      %4322 = vmatprep.subr.mxu0 0.0
      %4323 = vmatpush2.msra.mxu0 0.0
      %4324 = vmatprep.subr.mxu0 0.0
      %4325 = vmatpush2.msra.mxu0 0.0
      %4326 = vmatprep.subr.mxu0 0.0
      %4327 = vmatpush2.msra.mxu0 0.0
      %4328 = vmatprep.mubr.f32.mxu0 0.0
      %4329 = vmatmul.mubr.f32.gmra.mxu0 %v4253
      %v4330 = vpop.f32.mrf.mxu0
      %v4331 = vadd.f32 0.0, %v4330
      %v4332 = vpop.f32.mrf.mxu0
      %4333 = vmatprep.mubr.f32.mxu0 0.0
      %4334 = vmatmul.mubr.f32.gmra.mxu0 %v4256
      %v4335 = vpop.f32.mrf.mxu0
      %v4336 = vadd.f32 0.0, %v4335
      %v4337 = vpop.f32.mrf.mxu0
      %4338 = vmatprep.mubr.f32.mxu0 0.0
      %4339 = vmatmul.mubr.f32.gmra.mxu0 %v4259
      %v4340 = vpop.f32.mrf.mxu0
      %v4341 = vadd.f32 0.0, %v4340
      %v4342 = vpop.f32.mrf.mxu0
      %4343 = vmatprep.mubr.f32.mxu0 0.0
      %4344 = vmatmul.mubr.f32.gmra.mxu0 %v4262
      %v4345 = vpop.f32.mrf.mxu0
      %v4346 = vadd.f32 0.0, %v4345
      %v4347 = vpop.f32.mrf.mxu0
      %4348 = vdwg.mxu0
      %v4350 = vsel %vm359, %v4228, 0
      %v4353 = vsel %vm359, %v4229, 0
      %v4356 = vsel %vm359, %v4230, 0
      %v4359 = vsel %vm359, %v4231, 0
      %4361 = vmatprep.subr.mxu0 0.0
      %4362 = vmatpush1.msra.mxu0 0.0
      %4363 = vmatprep.subr.mxu0 0.0
      %4364 = vmatpush1.msra.mxu0 0.0
      %4365 = vmatprep.subr.mxu0 0.0
      %4366 = vmatpush1.msra.mxu0 0.0
      %4367 = vmatprep.subr.mxu0 0.0
      %4368 = vmatpush1.msra.mxu0 0.0
      %4369 = vmatprep.subr.mxu0 0.0
      %4370 = vmatpush1.msra.mxu0 0.0
      %4371 = vmatprep.subr.mxu0 0.0
      %4372 = vmatpush1.msra.mxu0 0.0
      %4373 = vmatprep.subr.mxu0 0.0
      %4374 = vmatpush1.msra.mxu0 0.0
      %4375 = vmatprep.subr.mxu0 0.0
      %4376 = vmatpush1.msra.mxu0 0.0
      %4377 = vmatprep.subr.mxu0 0.0
      %4378 = vmatpush1.msra.mxu0 0.0
      %4379 = vmatprep.subr.mxu0 0.0
      %4380 = vmatpush1.msra.mxu0 0.0
      %4381 = vmatprep.subr.mxu0 0.0
      %4382 = vmatpush1.msra.mxu0 0.0
      %4383 = vmatprep.subr.mxu0 0.0
      %4384 = vmatpush1.msra.mxu0 0.0
      %4385 = vmatprep.subr.mxu0 0.0
      %4386 = vmatpush1.msra.mxu0 %v4227
      %4387 = vmatprep.subr.mxu0 0.0
      %4388 = vmatpush1.msra.mxu0 %v4226
      %4389 = vmatprep.subr.mxu0 0.0
      %4390 = vmatpush1.msra.mxu0 %v4225
      %4391 = vmatprep.subr.mxu0 0.0
      %4392 = vmatpush1.msra.mxu0 %v4224
      %4393 = vmatprep.subr.mxu0 0.0
      %4394 = vmatpush2.msra.mxu0 0.0
      %4395 = vmatprep.subr.mxu0 0.0
      %4396 = vmatpush2.msra.mxu0 0.0
      %4397 = vmatprep.subr.mxu0 0.0
      %4398 = vmatpush2.msra.mxu0 0.0
      %4399 = vmatprep.subr.mxu0 0.0
      %4400 = vmatpush2.msra.mxu0 0.0
      %4401 = vmatprep.subr.mxu0 0.0
      %4402 = vmatpush2.msra.mxu0 0.0
      %4403 = vmatprep.subr.mxu0 0.0
      %4404 = vmatpush2.msra.mxu0 0.0
      %4405 = vmatprep.subr.mxu0 0.0
      %4406 = vmatpush2.msra.mxu0 0.0
      %4407 = vmatprep.subr.mxu0 0.0
      %4408 = vmatpush2.msra.mxu0 0.0
      %4409 = vmatprep.subr.mxu0 0.0
      %4410 = vmatpush2.msra.mxu0 0.0
      %4411 = vmatprep.subr.mxu0 0.0
      %4412 = vmatpush2.msra.mxu0 0.0
      %4413 = vmatprep.subr.mxu0 0.0
      %4414 = vmatpush2.msra.mxu0 0.0
      %4415 = vmatprep.subr.mxu0 0.0
      %4416 = vmatpush2.msra.mxu0 0.0
      %4417 = vmatprep.subr.mxu0 0.0
      %4418 = vmatpush2.msra.mxu0 0.0
      %4419 = vmatprep.subr.mxu0 0.0
      %4420 = vmatpush2.msra.mxu0 0.0
      %4421 = vmatprep.subr.mxu0 0.0
      %4422 = vmatpush2.msra.mxu0 0.0
      %4423 = vmatprep.subr.mxu0 0.0
      %4424 = vmatpush2.msra.mxu0 0.0
      %4425 = vmatprep.mubr.f32.mxu0 0.0
      %4426 = vmatmul.mubr.f32.gmra.mxu0 %v4350
      %v4427 = vpop.f32.mrf.mxu0
      %v4428 = vadd.f32 %v4331, %v4427
      %v4429 = vpop.f32.mrf.mxu0
      %4430 = vmatprep.mubr.f32.mxu0 0.0
      %4431 = vmatmul.mubr.f32.gmra.mxu0 %v4353
      %v4432 = vpop.f32.mrf.mxu0
      %v4433 = vadd.f32 %v4336, %v4432
      %v4434 = vpop.f32.mrf.mxu0
      %4435 = vmatprep.mubr.f32.mxu0 0.0
      %4436 = vmatmul.mubr.f32.gmra.mxu0 %v4356
      %v4437 = vpop.f32.mrf.mxu0
      %v4438 = vadd.f32 %v4341, %v4437
      %v4439 = vpop.f32.mrf.mxu0
      %4440 = vmatprep.mubr.f32.mxu0 0.0
      %4441 = vmatmul.mubr.f32.gmra.mxu0 %v4359
      %v4442 = vpop.f32.mrf.mxu0
      %v4443 = vadd.f32 %v4346, %v4442
      %v4444 = vpop.f32.mrf.mxu0
      %4445 = vdwg.mxu0
      %v4446 = vld [vmem:[%s1 + $0x3e0] sm:$0xff]
      %v4447 = vld [vmem:[%s1 + $0x3e8] sm:$0xff]
      %v4448 = vld [vmem:[%s1 + $0x3f0] sm:$0xff]
      %v4449 = vld [vmem:[%s1 + $0x3f8] sm:$0xff]
      %4450 = vrot.lane.b32.xlu0 %v4224, 126
      %v4451 = vpop.permute.xlu0 %4450
      %4452 = vrot.lane.b32.xlu0 %v4225, 126
      %v4453 = vpop.permute.xlu0 %4452
      %4454 = vrot.lane.b32.xlu0 %v4226, 126
      %v4455 = vpop.permute.xlu0 %4454
      %4456 = vrot.lane.b32.xlu0 %v4227, 126
      %v4457 = vpop.permute.xlu0 %4456
      %v4463 = vsel %vm359, %v4446, 0
      %v4466 = vsel %vm359, %v4447, 0
      %v4469 = vsel %vm359, %v4448, 0
      %v4472 = vsel %vm359, %v4449, 0
      %4474 = vmatprep.subr.mxu0 0.0
      %4475 = vmatpush1.msra.mxu0 0.0
      %4476 = vmatprep.subr.mxu0 0.0
      %4477 = vmatpush1.msra.mxu0 0.0
      %4478 = vmatprep.subr.mxu0 0.0
      %4479 = vmatpush1.msra.mxu0 0.0
      %4480 = vmatprep.subr.mxu0 0.0
      %4481 = vmatpush1.msra.mxu0 0.0
      %4482 = vmatprep.subr.mxu0 0.0
      %4483 = vmatpush1.msra.mxu0 0.0
      %4484 = vmatprep.subr.mxu0 0.0
      %4485 = vmatpush1.msra.mxu0 0.0
      %4486 = vmatprep.subr.mxu0 0.0
      %4487 = vmatpush1.msra.mxu0 0.0
      %4488 = vmatprep.subr.mxu0 0.0
      %4489 = vmatpush1.msra.mxu0 0.0
      %4490 = vmatprep.subr.mxu0 0.0
      %4491 = vmatpush1.msra.mxu0 0.0
      %4492 = vmatprep.subr.mxu0 0.0
      %4493 = vmatpush1.msra.mxu0 0.0
      %4494 = vmatprep.subr.mxu0 0.0
      %4495 = vmatpush1.msra.mxu0 0.0
      %4496 = vmatprep.subr.mxu0 0.0
      %4497 = vmatpush1.msra.mxu0 0.0
      %4498 = vmatprep.subr.mxu0 0.0
      %4499 = vmatpush1.msra.mxu0 %v4457
      %4500 = vmatprep.subr.mxu0 0.0
      %4501 = vmatpush1.msra.mxu0 %v4455
      %4502 = vmatprep.subr.mxu0 0.0
      %4503 = vmatpush1.msra.mxu0 %v4453
      %4504 = vmatprep.subr.mxu0 0.0
      %4505 = vmatpush1.msra.mxu0 %v4451
      %4506 = vmatprep.subr.mxu0 0.0
      %4507 = vmatpush2.msra.mxu0 0.0
      %4508 = vmatprep.subr.mxu0 0.0
      %4509 = vmatpush2.msra.mxu0 0.0
      %4510 = vmatprep.subr.mxu0 0.0
      %4511 = vmatpush2.msra.mxu0 0.0
      %4512 = vmatprep.subr.mxu0 0.0
      %4513 = vmatpush2.msra.mxu0 0.0
      %4514 = vmatprep.subr.mxu0 0.0
      %4515 = vmatpush2.msra.mxu0 0.0
      %4516 = vmatprep.subr.mxu0 0.0
      %4517 = vmatpush2.msra.mxu0 0.0
      %4518 = vmatprep.subr.mxu0 0.0
      %4519 = vmatpush2.msra.mxu0 0.0
      %4520 = vmatprep.subr.mxu0 0.0
      %4521 = vmatpush2.msra.mxu0 0.0
      %4522 = vmatprep.subr.mxu0 0.0
      %4523 = vmatpush2.msra.mxu0 0.0
      %4524 = vmatprep.subr.mxu0 0.0
      %4525 = vmatpush2.msra.mxu0 0.0
      %4526 = vmatprep.subr.mxu0 0.0
      %4527 = vmatpush2.msra.mxu0 0.0
      %4528 = vmatprep.subr.mxu0 0.0
      %4529 = vmatpush2.msra.mxu0 0.0
      %4530 = vmatprep.subr.mxu0 0.0
      %4531 = vmatpush2.msra.mxu0 0.0
      %4532 = vmatprep.subr.mxu0 0.0
      %4533 = vmatpush2.msra.mxu0 0.0
      %4534 = vmatprep.subr.mxu0 0.0
      %4535 = vmatpush2.msra.mxu0 0.0
      %4536 = vmatprep.subr.mxu0 0.0
      %4537 = vmatpush2.msra.mxu0 0.0
      %4538 = vmatprep.mubr.f32.mxu0 0.0
      %4539 = vmatmul.mubr.f32.gmra.mxu0 %v4463
      %v4540 = vpop.f32.mrf.mxu0
      %v4541 = vadd.f32 0.0, %v4540
      %v4542 = vpop.f32.mrf.mxu0
      %4543 = vmatprep.mubr.f32.mxu0 0.0
      %4544 = vmatmul.mubr.f32.gmra.mxu0 %v4466
      %v4545 = vpop.f32.mrf.mxu0
      %v4546 = vadd.f32 0.0, %v4545
      %v4547 = vpop.f32.mrf.mxu0
      %4548 = vmatprep.mubr.f32.mxu0 0.0
      %4549 = vmatmul.mubr.f32.gmra.mxu0 %v4469
      %v4550 = vpop.f32.mrf.mxu0
      %v4551 = vadd.f32 0.0, %v4550
      %v4552 = vpop.f32.mrf.mxu0
      %4553 = vmatprep.mubr.f32.mxu0 0.0
      %4554 = vmatmul.mubr.f32.gmra.mxu0 %v4472
      %v4555 = vpop.f32.mrf.mxu0
      %v4556 = vadd.f32 0.0, %v4555
      %v4557 = vpop.f32.mrf.mxu0
      %4558 = vdwg.mxu0
      %v4559 = vadd.f32 %v4428, %v4541
      %v4560 = vadd.f32 %v4433, %v4546
      %v4561 = vadd.f32 %v4438, %v4551
      %v4562 = vadd.f32 %v4443, %v4556
      %v4563 = vld [vmem:[%s1 + $0x400] sm:$0xff]
      %v4564 = vld [vmem:[%s1 + $0x408] sm:$0xff]
      %v4565 = vld [vmem:[%s1 + $0x410] sm:$0xff]
      %v4566 = vld [vmem:[%s1 + $0x418] sm:$0xff]
      %4567 = vrot.lane.b32.xlu0 %v4224, 125
      %v4568 = vpop.permute.xlu0 %4567
      %4569 = vrot.lane.b32.xlu0 %v4225, 125
      %v4570 = vpop.permute.xlu0 %4569
      %4571 = vrot.lane.b32.xlu0 %v4226, 125
      %v4572 = vpop.permute.xlu0 %4571
      %4573 = vrot.lane.b32.xlu0 %v4227, 125
      %v4574 = vpop.permute.xlu0 %4573
      %v4580 = vsel %vm359, %v4563, 0
      %v4583 = vsel %vm359, %v4564, 0
      %v4586 = vsel %vm359, %v4565, 0
      %v4589 = vsel %vm359, %v4566, 0
      %4591 = vmatprep.subr.mxu0 0.0
      %4592 = vmatpush1.msra.mxu0 0.0
      %4593 = vmatprep.subr.mxu0 0.0
      %4594 = vmatpush1.msra.mxu0 0.0
      %4595 = vmatprep.subr.mxu0 0.0
      %4596 = vmatpush1.msra.mxu0 0.0
      %4597 = vmatprep.subr.mxu0 0.0
      %4598 = vmatpush1.msra.mxu0 0.0
      %4599 = vmatprep.subr.mxu0 0.0
      %4600 = vmatpush1.msra.mxu0 0.0
      %4601 = vmatprep.subr.mxu0 0.0
      %4602 = vmatpush1.msra.mxu0 0.0
      %4603 = vmatprep.subr.mxu0 0.0
      %4604 = vmatpush1.msra.mxu0 0.0
      %4605 = vmatprep.subr.mxu0 0.0
      %4606 = vmatpush1.msra.mxu0 0.0
      %4607 = vmatprep.subr.mxu0 0.0
      %4608 = vmatpush1.msra.mxu0 0.0
      %4609 = vmatprep.subr.mxu0 0.0
      %4610 = vmatpush1.msra.mxu0 0.0
      %4611 = vmatprep.subr.mxu0 0.0
      %4612 = vmatpush1.msra.mxu0 0.0
      %4613 = vmatprep.subr.mxu0 0.0
      %4614 = vmatpush1.msra.mxu0 0.0
      %4615 = vmatprep.subr.mxu0 0.0
      %4616 = vmatpush1.msra.mxu0 %v4574
      %4617 = vmatprep.subr.mxu0 0.0
      %4618 = vmatpush1.msra.mxu0 %v4572
      %4619 = vmatprep.subr.mxu0 0.0
      %4620 = vmatpush1.msra.mxu0 %v4570
      %4621 = vmatprep.subr.mxu0 0.0
      %4622 = vmatpush1.msra.mxu0 %v4568
      %4623 = vmatprep.subr.mxu0 0.0
      %4624 = vmatpush2.msra.mxu0 0.0
      %4625 = vmatprep.subr.mxu0 0.0
      %4626 = vmatpush2.msra.mxu0 0.0
      %4627 = vmatprep.subr.mxu0 0.0
      %4628 = vmatpush2.msra.mxu0 0.0
      %4629 = vmatprep.subr.mxu0 0.0
      %4630 = vmatpush2.msra.mxu0 0.0
      %4631 = vmatprep.subr.mxu0 0.0
      %4632 = vmatpush2.msra.mxu0 0.0
      %4633 = vmatprep.subr.mxu0 0.0
      %4634 = vmatpush2.msra.mxu0 0.0
      %4635 = vmatprep.subr.mxu0 0.0
      %4636 = vmatpush2.msra.mxu0 0.0
      %4637 = vmatprep.subr.mxu0 0.0
      %4638 = vmatpush2.msra.mxu0 0.0
      %4639 = vmatprep.subr.mxu0 0.0
      %4640 = vmatpush2.msra.mxu0 0.0
      %4641 = vmatprep.subr.mxu0 0.0
      %4642 = vmatpush2.msra.mxu0 0.0
      %4643 = vmatprep.subr.mxu0 0.0
      %4644 = vmatpush2.msra.mxu0 0.0
      %4645 = vmatprep.subr.mxu0 0.0
      %4646 = vmatpush2.msra.mxu0 0.0
      %4647 = vmatprep.subr.mxu0 0.0
      %4648 = vmatpush2.msra.mxu0 0.0
      %4649 = vmatprep.subr.mxu0 0.0
      %4650 = vmatpush2.msra.mxu0 0.0
      %4651 = vmatprep.subr.mxu0 0.0
      %4652 = vmatpush2.msra.mxu0 0.0
      %4653 = vmatprep.subr.mxu0 0.0
      %4654 = vmatpush2.msra.mxu0 0.0
      %4655 = vmatprep.mubr.f32.mxu0 0.0
      %4656 = vmatmul.mubr.f32.gmra.mxu0 %v4580
      %v4657 = vpop.f32.mrf.mxu0
      %v4658 = vadd.f32 0.0, %v4657
      %v4659 = vpop.f32.mrf.mxu0
      %4660 = vmatprep.mubr.f32.mxu0 0.0
      %4661 = vmatmul.mubr.f32.gmra.mxu0 %v4583
      %v4662 = vpop.f32.mrf.mxu0
      %v4663 = vadd.f32 0.0, %v4662
      %v4664 = vpop.f32.mrf.mxu0
      %4665 = vmatprep.mubr.f32.mxu0 0.0
      %4666 = vmatmul.mubr.f32.gmra.mxu0 %v4586
      %v4667 = vpop.f32.mrf.mxu0
      %v4668 = vadd.f32 0.0, %v4667
      %v4669 = vpop.f32.mrf.mxu0
      %4670 = vmatprep.mubr.f32.mxu0 0.0
      %4671 = vmatmul.mubr.f32.gmra.mxu0 %v4589
      %v4672 = vpop.f32.mrf.mxu0
      %v4673 = vadd.f32 0.0, %v4672
      %v4674 = vpop.f32.mrf.mxu0
      %4675 = vdwg.mxu0
      %v4676 = vadd.f32 %v4559, %v4658
      %v4677 = vadd.f32 %v4560, %v4663
      %v4678 = vadd.f32 %v4561, %v4668
      %v4679 = vadd.f32 %v4562, %v4673
      %v4680 = vld [vmem:[%s1 + $0x420] sm:$0xff]
      %v4681 = vld [vmem:[%s1 + $0x428] sm:$0xff]
      %v4682 = vld [vmem:[%s1 + $0x430] sm:$0xff]
      %v4683 = vld [vmem:[%s1 + $0x438] sm:$0xff]
      %4684 = vrot.lane.b32.xlu0 %v4224, 124
      %v4685 = vpop.permute.xlu0 %4684
      %4686 = vrot.lane.b32.xlu0 %v4225, 124
      %v4687 = vpop.permute.xlu0 %4686
      %4688 = vrot.lane.b32.xlu0 %v4226, 124
      %v4689 = vpop.permute.xlu0 %4688
      %4690 = vrot.lane.b32.xlu0 %v4227, 124
      %v4691 = vpop.permute.xlu0 %4690
      %v4697 = vsel %vm359, %v4680, 0
      %v4700 = vsel %vm359, %v4681, 0
      %v4703 = vsel %vm359, %v4682, 0
      %v4706 = vsel %vm359, %v4683, 0
      %4708 = vmatprep.subr.mxu0 0.0
      %4709 = vmatpush1.msra.mxu0 0.0
      %4710 = vmatprep.subr.mxu0 0.0
      %4711 = vmatpush1.msra.mxu0 0.0
      %4712 = vmatprep.subr.mxu0 0.0
      %4713 = vmatpush1.msra.mxu0 0.0
      %4714 = vmatprep.subr.mxu0 0.0
      %4715 = vmatpush1.msra.mxu0 0.0
      %4716 = vmatprep.subr.mxu0 0.0
      %4717 = vmatpush1.msra.mxu0 0.0
      %4718 = vmatprep.subr.mxu0 0.0
      %4719 = vmatpush1.msra.mxu0 0.0
      %4720 = vmatprep.subr.mxu0 0.0
      %4721 = vmatpush1.msra.mxu0 0.0
      %4722 = vmatprep.subr.mxu0 0.0
      %4723 = vmatpush1.msra.mxu0 0.0
      %4724 = vmatprep.subr.mxu0 0.0
      %4725 = vmatpush1.msra.mxu0 0.0
      %4726 = vmatprep.subr.mxu0 0.0
      %4727 = vmatpush1.msra.mxu0 0.0
      %4728 = vmatprep.subr.mxu0 0.0
      %4729 = vmatpush1.msra.mxu0 0.0
      %4730 = vmatprep.subr.mxu0 0.0
      %4731 = vmatpush1.msra.mxu0 0.0
      %4732 = vmatprep.subr.mxu0 0.0
      %4733 = vmatpush1.msra.mxu0 %v4691
      %4734 = vmatprep.subr.mxu0 0.0
      %4735 = vmatpush1.msra.mxu0 %v4689
      %4736 = vmatprep.subr.mxu0 0.0
      %4737 = vmatpush1.msra.mxu0 %v4687
      %4738 = vmatprep.subr.mxu0 0.0
      %4739 = vmatpush1.msra.mxu0 %v4685
      %4740 = vmatprep.subr.mxu0 0.0
      %4741 = vmatpush2.msra.mxu0 0.0
      %4742 = vmatprep.subr.mxu0 0.0
      %4743 = vmatpush2.msra.mxu0 0.0
      %4744 = vmatprep.subr.mxu0 0.0
      %4745 = vmatpush2.msra.mxu0 0.0
      %4746 = vmatprep.subr.mxu0 0.0
      %4747 = vmatpush2.msra.mxu0 0.0
      %4748 = vmatprep.subr.mxu0 0.0
      %4749 = vmatpush2.msra.mxu0 0.0
      %4750 = vmatprep.subr.mxu0 0.0
      %4751 = vmatpush2.msra.mxu0 0.0
      %4752 = vmatprep.subr.mxu0 0.0
      %4753 = vmatpush2.msra.mxu0 0.0
      %4754 = vmatprep.subr.mxu0 0.0
      %4755 = vmatpush2.msra.mxu0 0.0
      %4756 = vmatprep.subr.mxu0 0.0
      %4757 = vmatpush2.msra.mxu0 0.0
      %4758 = vmatprep.subr.mxu0 0.0
      %4759 = vmatpush2.msra.mxu0 0.0
      %4760 = vmatprep.subr.mxu0 0.0
      %4761 = vmatpush2.msra.mxu0 0.0
      %4762 = vmatprep.subr.mxu0 0.0
      %4763 = vmatpush2.msra.mxu0 0.0
      %4764 = vmatprep.subr.mxu0 0.0
      %4765 = vmatpush2.msra.mxu0 0.0
      %4766 = vmatprep.subr.mxu0 0.0
      %4767 = vmatpush2.msra.mxu0 0.0
      %4768 = vmatprep.subr.mxu0 0.0
      %4769 = vmatpush2.msra.mxu0 0.0
      %4770 = vmatprep.subr.mxu0 0.0
      %4771 = vmatpush2.msra.mxu0 0.0
      %4772 = vmatprep.mubr.f32.mxu0 0.0
      %4773 = vmatmul.mubr.f32.gmra.mxu0 %v4697
      %v4774 = vpop.f32.mrf.mxu0
      %v4775 = vadd.f32 0.0, %v4774
      %v4776 = vpop.f32.mrf.mxu0
      %4777 = vmatprep.mubr.f32.mxu0 0.0
      %4778 = vmatmul.mubr.f32.gmra.mxu0 %v4700
      %v4779 = vpop.f32.mrf.mxu0
      %v4780 = vadd.f32 0.0, %v4779
      %v4781 = vpop.f32.mrf.mxu0
      %4782 = vmatprep.mubr.f32.mxu0 0.0
      %4783 = vmatmul.mubr.f32.gmra.mxu0 %v4703
      %v4784 = vpop.f32.mrf.mxu0
      %v4785 = vadd.f32 0.0, %v4784
      %v4786 = vpop.f32.mrf.mxu0
      %4787 = vmatprep.mubr.f32.mxu0 0.0
      %4788 = vmatmul.mubr.f32.gmra.mxu0 %v4706
      %v4789 = vpop.f32.mrf.mxu0
      %v4790 = vadd.f32 0.0, %v4789
      %v4791 = vpop.f32.mrf.mxu0
      %4792 = vdwg.mxu0
      %v4793 = vadd.f32 %v4676, %v4775
      %v4794 = vadd.f32 %v4677, %v4780
      %v4795 = vadd.f32 %v4678, %v4785
      %v4796 = vadd.f32 %v4679, %v4790
      %4797 = vset.pattern.permute.xlu0 6
      %4798 = vperm.xlu0 %4797, %v169
      %v4799 = vpop.permute.xlu0 %4798
      %4801 = vset.pattern.permute.xlu0 6
      %4802 = vperm.xlu0 %4801, %v170
      %v4803 = vpop.permute.xlu0 %4802
      %4805 = vset.pattern.permute.xlu0 6
      %4806 = vperm.xlu0 %4805, %v171
      %v4807 = vpop.permute.xlu0 %4806
      %4809 = vset.pattern.permute.xlu0 6
      %4810 = vperm.xlu0 %4809, %v172
      %v4811 = vpop.permute.xlu0 %4810
      %v4813 = vadd.f32 %v4793, %v4799
      %v4814 = vadd.f32 %v4794, %v4803
      %v4815 = vadd.f32 %v4795, %v4807
      %v4816 = vadd.f32 %v4796, %v4811
      %v4817 = vmax.f32 %v4813, 0.0
      %v4818 = vmax.f32 %v4814, 0.0
      %v4819 = vmax.f32 %v4815, 0.0
      %v4820 = vmax.f32 %v4816, 0.0
      %4825 = vrot.lane.b32.xlu0 %v4817, 127
      %v4826 = vpop.permute.xlu0 %4825
      %4827 = vrot.lane.b32.xlu0 %v4818, 127
      %v4828 = vpop.permute.xlu0 %4827
      %4829 = vrot.lane.b32.xlu0 %v4819, 127
      %v4830 = vpop.permute.xlu0 %4829
      %4831 = vrot.lane.b32.xlu0 %v4820, 127
      %v4832 = vpop.permute.xlu0 %4831
      %v4837 = vmax.f32 %v4817, %v4826
      %v4838 = vmax.f32 %v4818, %v4828
      %v4839 = vmax.f32 %v4819, %v4830
      %v4840 = vmax.f32 %v4820, %v4832
      %4845 = vrot.lane.b32.xlu0 %v4837, 1
      %v4846 = vpop.permute.xlu0 %4845
      %4847 = vrot.lane.b32.xlu0 %v4838, 1
      %v4848 = vpop.permute.xlu0 %4847
      %4849 = vrot.lane.b32.xlu0 %v4839, 1
      %v4850 = vpop.permute.xlu0 %4849
      %4851 = vrot.lane.b32.xlu0 %v4840, 1
      %v4852 = vpop.permute.xlu0 %4851
      %v4857 = vsel %vm945, %v4817, %v4846
      %v4858 = vsel %vm945, %v4818, %v4848
      %v4859 = vsel %vm945, %v4819, %v4850
      %v4860 = vsel %vm945, %v4820, %v4852
      %vm4861 = vcmask 56320
      %v4863 = vsel %vm4861, %v4857, 0
      %v4866 = vsel %vm4861, %v4858, 0
      %v4869 = vsel %vm4861, %v4859, 0
      %v4872 = vsel %vm4861, %v4860, 0
      %vm4874 = vcmask 1046528
      %v4876 = vsel %vm4874, %v1384, 0
      %4878 = vmatprep.subr.mxu0 0.0
      %4879 = vmatpush1.msra.mxu0 0.0
      %4880 = vmatprep.subr.mxu0 0.0
      %4881 = vmatpush1.msra.mxu0 0.0
      %4882 = vmatprep.subr.mxu0 0.0
      %4883 = vmatpush1.msra.mxu0 0.0
      %4884 = vmatprep.subr.mxu0 0.0
      %4885 = vmatpush1.msra.mxu0 0.0
      %4886 = vmatprep.subr.mxu0 0.0
      %4887 = vmatpush1.msra.mxu0 0.0
      %4888 = vmatprep.subr.mxu0 0.0
      %4889 = vmatpush1.msra.mxu0 0.0
      %4890 = vmatprep.subr.mxu0 0.0
      %4891 = vmatpush1.msra.mxu0 0.0
      %4892 = vmatprep.subr.mxu0 0.0
      %4893 = vmatpush1.msra.mxu0 0.0
      %4894 = vmatprep.subr.mxu0 0.0
      %4895 = vmatpush1.msra.mxu0 0.0
      %4896 = vmatprep.subr.mxu0 0.0
      %4897 = vmatpush1.msra.mxu0 0.0
      %4898 = vmatprep.subr.mxu0 0.0
      %4899 = vmatpush1.msra.mxu0 0.0
      %4900 = vmatprep.subr.mxu0 0.0
      %4901 = vmatpush1.msra.mxu0 0.0
      %4902 = vmatprep.subr.mxu0 0.0
      %4903 = vmatpush1.msra.mxu0 0.0
      %4904 = vmatprep.subr.mxu0 0.0
      %4905 = vmatpush1.msra.mxu0 0.0
      %4906 = vmatprep.subr.mxu0 0.0
      %4907 = vmatpush1.msra.mxu0 0.0
      %4908 = vmatprep.subr.mxu0 0.0
      %4909 = vmatpush1.msra.mxu0 %v4876
      %4910 = vmatprep.subr.mxu0 0.0
      %4911 = vmatpush2.msra.mxu0 0.0
      %4912 = vmatprep.subr.mxu0 0.0
      %4913 = vmatpush2.msra.mxu0 0.0
      %4914 = vmatprep.subr.mxu0 0.0
      %4915 = vmatpush2.msra.mxu0 0.0
      %4916 = vmatprep.subr.mxu0 0.0
      %4917 = vmatpush2.msra.mxu0 0.0
      %4918 = vmatprep.subr.mxu0 0.0
      %4919 = vmatpush2.msra.mxu0 0.0
      %4920 = vmatprep.subr.mxu0 0.0
      %4921 = vmatpush2.msra.mxu0 0.0
      %4922 = vmatprep.subr.mxu0 0.0
      %4923 = vmatpush2.msra.mxu0 0.0
      %4924 = vmatprep.subr.mxu0 0.0
      %4925 = vmatpush2.msra.mxu0 0.0
      %4926 = vmatprep.subr.mxu0 0.0
      %4927 = vmatpush2.msra.mxu0 0.0
      %4928 = vmatprep.subr.mxu0 0.0
      %4929 = vmatpush2.msra.mxu0 0.0
      %4930 = vmatprep.subr.mxu0 0.0
      %4931 = vmatpush2.msra.mxu0 0.0
      %4932 = vmatprep.subr.mxu0 0.0
      %4933 = vmatpush2.msra.mxu0 0.0
      %4934 = vmatprep.subr.mxu0 0.0
      %4935 = vmatpush2.msra.mxu0 0.0
      %4936 = vmatprep.subr.mxu0 0.0
      %4937 = vmatpush2.msra.mxu0 0.0
      %4938 = vmatprep.subr.mxu0 0.0
      %4939 = vmatpush2.msra.mxu0 0.0
      %4940 = vmatprep.subr.mxu0 0.0
      %4941 = vmatpush2.msra.mxu0 0.0
      %4942 = vmatprep.mubr.f32.mxu0 0.0
      %4943 = vmatmul.mubr.f32.gmra.mxu0 %v4863
      %v4944 = vpop.f32.mrf.mxu0
      %v4945 = vadd.f32 0.0, %v4944
      %v4946 = vpop.f32.mrf.mxu0
      %4947 = vmatprep.mubr.f32.mxu0 0.0
      %4948 = vmatmul.mubr.f32.gmra.mxu0 %v4866
      %v4949 = vpop.f32.mrf.mxu0
      %v4950 = vadd.f32 0.0, %v4949
      %v4951 = vpop.f32.mrf.mxu0
      %4952 = vmatprep.mubr.f32.mxu0 0.0
      %4953 = vmatmul.mubr.f32.gmra.mxu0 %v4869
      %v4954 = vpop.f32.mrf.mxu0
      %v4955 = vadd.f32 0.0, %v4954
      %v4956 = vpop.f32.mrf.mxu0
      %4957 = vmatprep.mubr.f32.mxu0 0.0
      %4958 = vmatmul.mubr.f32.gmra.mxu0 %v4872
      %v4959 = vpop.f32.mrf.mxu0
      %v4960 = vadd.f32 0.0, %v4959
      %v4961 = vpop.f32.mrf.mxu0
      %4962 = vdwg.mxu0
      %v4963 = vsel %vm325, %v4945, 0.0
      %4964 = vadd.xlane.f32.xlu0 %v4963
      %v4965 = vpop.xlane.xlu0 %4964
      %v4966 = vsel %vm325, %v4950, 0.0
      %4967 = vadd.xlane.f32.xlu0 %v4966
      %v4968 = vpop.xlane.xlu0 %4967
      %v4969 = vsel %vm325, %v4955, 0.0
      %4970 = vadd.xlane.f32.xlu0 %v4969
      %v4971 = vpop.xlane.xlu0 %4970
      %v4972 = vsel %vm325, %v4960, 0.0
      %4973 = vadd.xlane.f32.xlu0 %v4972
      %v4974 = vpop.xlane.xlu0 %4973
      %v4975 = vrcp.pop 2.0
      %v4976 = vmul.f32 %v4965, %v4975
      %v4977 = vmul.f32 %v4968, %v4975
      %v4978 = vmul.f32 %v4971, %v4975
      %v4979 = vmul.f32 %v4974, %v4975
      %4984 = vrot.lane.b32.xlu0 %v4945, 126
      %v4985 = vpop.permute.xlu0 %4984
      %4986 = vrot.lane.b32.xlu0 %v4950, 126
      %v4987 = vpop.permute.xlu0 %4986
      %4988 = vrot.lane.b32.xlu0 %v4955, 126
      %v4989 = vpop.permute.xlu0 %4988
      %4990 = vrot.lane.b32.xlu0 %v4960, 126
      %v4991 = vpop.permute.xlu0 %4990
      %v4996 = vsel %vm325, %v4985, 0.0
      %4997 = vadd.xlane.f32.xlu0 %v4996
      %v4998 = vpop.xlane.xlu0 %4997
      %v4999 = vsel %vm325, %v4987, 0.0
      %5000 = vadd.xlane.f32.xlu0 %v4999
      %v5001 = vpop.xlane.xlu0 %5000
      %v5002 = vsel %vm325, %v4989, 0.0
      %5003 = vadd.xlane.f32.xlu0 %v5002
      %v5004 = vpop.xlane.xlu0 %5003
      %v5005 = vsel %vm325, %v4991, 0.0
      %5006 = vadd.xlane.f32.xlu0 %v5005
      %v5007 = vpop.xlane.xlu0 %5006
      %v5008 = vmul.f32 %v4998, %v4975
      %v5009 = vmul.f32 %v5001, %v4975
      %v5010 = vmul.f32 %v5004, %v4975
      %v5011 = vmul.f32 %v5007, %v4975
      %v5012 = vsel %vm945, %v4976, %v5008
      %v5013 = vsel %vm945, %v4977, %v5009
      %v5014 = vsel %vm945, %v4978, %v5010
      %v5015 = vsel %vm945, %v4979, %v5011
      %5016 = vst.msk [vmem:[%s167] sm:$0xff] %vm325, %v5012
      %5017 = vst.msk [vmem:[%s167 + $0x8] sm:$0xff] %vm325, %v5013
      %5018 = vst.msk [vmem:[%s167 + $0x10] sm:$0xff] %vm325, %v5014
      %5019 = vst.msk [vmem:[%s167 + $0x18] sm:$0xff] %vm325, %v5015
      %p5020 = scmp.lt.s32.totalorder %s14, 1
      %s5021 = scalar_select %p5020, %s14, 1
      %s5022 = smul.addr %s5021, 4
      %s5023 = smul.addr %s5022, 8
      %s5024 = scalar_lea.vmem %s3, %s5023
      // Predicated region
      $region33: #{_lambda_.1} parent=31 // pred_check
        %p5025 = pneg %p100
      $region34: #{_lambda_.1} parent=31 // pred_check_branch
        %5027 = sbr.rel (%p5025) target = $region36
      $region35: #{_lambda_.1} parent=31 // pred_region
        _
      $region36: #{_lambda_.1} parent=31 // pred_fallthru
        _
    $region32: #{_lambda_.1} parent=5 // pred_fallthru
      _
    %p5028 = scmp.le.s32.totalorder 2, %s9
    // Predicated region
    $region37: #{_lambda_.1} parent=5 // pred_check
      %p5029 = pneg %p5028
    $region38: #{_lambda_.1} parent=5 // pred_check_branch
      %5031 = sbr.rel (%p5029) target = $region40
    $region39: #{_lambda_.1} parent=5 // pred_region
      %s5032 = ssub.s32 %s9, 2
      // Predicated region
      $region41: #{_lambda_.1} parent=39 // pred_check
        %p5033 = pneg %p106
      $region42: #{_lambda_.1} parent=39 // pred_check_branch
        %5035 = sbr.rel (%p5033) target = $region44
      $region43: #{_lambda_.1} parent=39 // pred_region
        %p5036 = scmp.lt.s32.totalorder %s15, 1
        %s5037 = scalar_select %p5036, %s15, 1
        %s5038 = smul.addr %s5037, 4
        %s5039 = smul.addr %s5038, 8
        %s5040 = scalar_lea.vmem %s3, %s5039
      $region44: #{_lambda_.1} parent=39 // pred_fallthru
        _
    $region40: #{_lambda_.1} parent=5 // pred_fallthru
      _
  $region6: #{_lambda_.1} parent=0 // loop_footer
    %s13 = sadd.s32 1, %s9
  $region7: #{_lambda_.1} parent=0 // loop_footer_branch
    %8 = sbr.rel target = $region3
  $region8: #{_lambda_.1} parent=0 // loop_exit
    _

</llo_original>
